<compile_context>
chip_gen: v6e
topology: v6e:2x2x1
jax: 0.10.0
libtpu: 0.0.40
codegen_flags: <defaults>
</compile_context>

<pallas_src>
import jax
import jax.numpy as jnp
from jax import lax
from jax.experimental import pallas as pl
from jax.experimental.pallas import tpu as pltpu
import numpy as np

BLOCK_B = 8  # images per grid step; multiple of 8 keeps every reshape sublane-tile aligned


# ---------------- fused Pallas kernel ----------------

def net_fused_kernel(x_ref, b1w_ref, b1b_ref, b2w_ref, b2b_ref,
                     f1w_ref, f1b_ref, f2w_ref, f2b_ref, o_ref):
    B = x_ref.shape[1]
    x = x_ref[...]                                           # (28, B, 28) f32: (row, image, col)

    # ----- conv1 (1->10, k=5): banded matmul over the 5 row taps; rows = i1*B + b -----------
    # column layout: dj*128 + jp*10 + co  (output col j = 2*jp + dj; lanes 120..127/248..255 = 0)
    c1 = b1b_ref[...]                                        # (1, 256) f32 bias row (broadcasts)
    for kh in range(5):
        lhs = x[kh:kh + 24].reshape(24 * B, 28).astype(jnp.bfloat16)   # (24B, 28) bf16
        c1 = c1 + jnp.dot(lhs, b1w_ref[kh],                  # (28, 256) bf16
                          preferred_element_type=jnp.float32)           # -> (24B, 256) f32

    # ----- 2x2 max-pool + ReLU: tile-aligned sublane split (rows) + 128-lane split (cols) ---
    c1 = c1.reshape(12, 2 * B, 256)
    r1 = jnp.maximum(c1[:, :B, :], c1[:, B:, :])             # row-pair max -> (12, B, 256)
    h1 = jnp.maximum(jnp.maximum(r1[:, :, :128], r1[:, :, 128:]), 0.0)  # (12, B, 128) lane=jp*10+ci

    # ----- conv2 (10->20, k=5); Dropout2d is identity in eval mode ---------------------------
    # TODO(synk): training-mode Dropout2d (RNG channel masking) is not implemented.
    c2 = b2b_ref[...]                                        # (1, 256)
    for kh in range(5):
        lhs = h1[kh:kh + 8].reshape(8 * B, 128).astype(jnp.bfloat16)   # (8B, 128) bf16
        c2 = c2 + jnp.dot(lhs, b2w_ref[kh],                  # (128, 256) bf16
                          preferred_element_type=jnp.float32)           # -> (8B, 256) f32

    c2 = c2.reshape(4, 2 * B, 256)
    r2 = jnp.maximum(c2[:, :B, :], c2[:, B:, :])             # (4, B, 256)
    h2 = jnp.maximum(jnp.maximum(r2[:, :, :128], r2[:, :, 128:]), 0.0)  # (4, B, 128) lane=jp2*20+co

    # ----- fc1 + ReLU: one (B,128)@(128,128) matmul per pooled row (NCHW flatten absorbed) ---
    z1 = f1b_ref[...]                                        # (1, 128)
    for ip2 in range(4):
        z1 = z1 + jnp.dot(h2[ip2].astype(jnp.bfloat16), f1w_ref[ip2],
                          preferred_element_type=jnp.float32)           # -> (B, 128)
    z1 = jnp.maximum(z1, 0.0)
    # TODO(synk): training-mode F.dropout is not implemented (identity in eval).

    # ----- fc2: lane-dense (B, 128) output block (cols 10..127 are zero; sliced in wrapper) --
    out = jnp.dot(z1.astype(jnp.bfloat16), f2w_ref[...],
                  preferred_element_type=jnp.float32) + f2b_ref[...]
    o_ref[...] = out


# ---------------- wrapper ----------------

def net_forward_impl(x, w):
    n = x.shape[0]
    n_pad = pl.cdiv(n, BLOCK_B) * BLOCK_B
    if n_pad != n:
        x = jnp.pad(x, ((0, n_pad - n), (0, 0), (0, 0)))
    xt = jnp.transpose(x, (1, 0, 2))                         # (28, n_pad, 28): (row, image, col)
    out = pl.pallas_call(
        net_fused_kernel,
        out_shape=jax.ShapeDtypeStruct((n_pad, 128), jnp.float32),
        grid=(n_pad // BLOCK_B,),
        in_specs=[
            pl.BlockSpec((28, BLOCK_B, 28), lambda i: (0, i, 0)),   # x (BLOCK_B images / step)
            pl.BlockSpec((5, 28, 256), lambda i: (0, 0, 0)),        # conv1 banded weights (bf16)
            pl.BlockSpec((1, 256), lambda i: (0, 0)),               # conv1 bias row (f32)
            pl.BlockSpec((5, 128, 256), lambda i: (0, 0, 0)),       # conv2 banded weights (bf16)
            pl.BlockSpec((1, 256), lambda i: (0, 0)),               # conv2 bias row (f32)
            pl.BlockSpec((4, 128, 128), lambda i: (0, 0, 0)),       # fc1 weights (permuted, bf16)
            pl.BlockSpec((1, 128), lambda i: (0, 0)),               # fc1 bias (padded, f32)
            pl.BlockSpec((128, 128), lambda i: (0, 0)),             # fc2 weights (padded, bf16)
            pl.BlockSpec((1, 128), lambda i: (0, 0)),               # fc2 bias (padded, f32)
        ],
        out_specs=pl.BlockSpec((BLOCK_B, 128), lambda i: (i, 0)),
        compiler_params=pltpu.CompilerParams(
            dimension_semantics=("parallel",),       # batch-tile axis -> megacore / both v7x TCs
            vmem_limit_bytes=32 * 1024 * 1024,       # well under all generations' limits
        ),
    )(xt, w["B1"], w["bias1"], w["B2"], w["bias2"],
      w["Wf1"], w["bf1"], w["Wf2"], w["bf2"])
    return out[:n, :10]


net_forward = jax.jit(net_forward_impl)


# ---------------- host-side parameter preparation (one-time, free) ----------------

def init_params(key):
    ks = jax.random.split(key, 8)
    return {
        "conv1_w": jax.random.normal(ks[0], (10, 1, 5, 5), jnp.float32) * 0.1,
        "conv1_b": jax.random.normal(ks[1], (10,), jnp.float32) * 0.1,
        "conv2_w": jax.random.normal(ks[2], (20, 10, 5, 5), jnp.float32) * 0.1,
        "conv2_b": jax.random.normal(ks[3], (20,), jnp.float32) * 0.1,
        "fc1_w": jax.random.normal(ks[4], (50, 320), jnp.float32) * 0.05,
        "fc1_b": jax.random.normal(ks[5], (50,), jnp.float32) * 0.05,
        "fc2_w": jax.random.normal(ks[6], (10, 50), jnp.float32) * 0.1,
        "fc2_b": jax.random.normal(ks[7], (10,), jnp.float32) * 0.1,
    }


def prepare_params(p):
    """Rearrange PyTorch-layout weights into the fused kernel's banded / permuted bf16 slabs."""
    w1 = np.asarray(p["conv1_w"], np.float32)   # (10, 1, 5, 5)
    b1 = np.asarray(p["conv1_b"], np.float32)
    w2 = np.asarray(p["conv2_w"], np.float32)   # (20, 10, 5, 5)
    b2 = np.asarray(p["conv2_b"], np.float32)
    fw1 = np.asarray(p["fc1_w"], np.float32)    # (50, 320)
    fb1 = np.asarray(p["fc1_b"], np.float32)
    fw2 = np.asarray(p["fc2_w"], np.float32)    # (10, 50)
    fb2 = np.asarray(p["fc2_b"], np.float32)

    # conv1: B1[kh, jw, dj*128 + jp*10 + co] = w1[co,0,kh,kw]  with jw = 2*jp + dj + kw
    B1 = np.zeros((5, 28, 256), np.float32)
    bias1 = np.zeros((1, 256), np.float32)
    for kh in range(5):
        for kw in range(5):
            for dj in range(2):
                for jp in range(12):
                    jw = 2 * jp + dj + kw
                    col = dj * 128 + jp * 10
                    B1[kh, jw, col:col + 10] = w1[:, 0, kh, kw]
    for dj in range(2):
        for jp in range(12):
            bias1[0, dj * 128 + jp * 10: dj * 128 + jp * 10 + 10] = b1

    # conv2: B2[kh, jp1*10 + ci, dj*128 + jp2*20 + co] = w2[co,ci,kh,kw]  with jp1 = 2*jp2 + dj + kw
    B2 = np.zeros((5, 128, 256), np.float32)
    bias2 = np.zeros((1, 256), np.float32)
    for kh in range(5):
        for kw in range(5):
            for dj in range(2):
                for jp2 in range(4):
                    jp1 = 2 * jp2 + dj + kw
                    row = jp1 * 10
                    col = dj * 128 + jp2 * 20
                    B2[kh, row:row + 10, col:col + 20] = w2[:, :, kh, kw].T
    for dj in range(2):
        for jp2 in range(4):
            bias2[0, dj * 128 + jp2 * 20: dj * 128 + jp2 * 20 + 20] = b2

    # fc1: Wf1[ip2, jp2*20 + co, k] = fw1[k, co*16 + ip2*4 + jp2]   (absorbs NCHW flatten), k padded to 128
    Wf1 = np.zeros((4, 128, 128), np.float32)
    for ip2 in range(4):
        for jp2 in range(4):
            for co in range(20):
                Wf1[ip2, jp2 * 20 + co, :50] = fw1[:, co * 16 + ip2 * 4 + jp2]
    bf1 = np.zeros((1, 128), np.float32)
    bf1[0, :50] = fb1

    # fc2 padded to a lane-dense 128-wide output
    Wf2 = np.zeros((128, 128), np.float32)
    Wf2[:50, :10] = fw2.T
    bf2 = np.zeros((1, 128), np.float32)
    bf2[0, :10] = fb2

    return {
        "B1": jnp.asarray(B1, jnp.bfloat16),
        "bias1": jnp.asarray(bias1),
        "B2": jnp.asarray(B2, jnp.bfloat16),
        "bias2": jnp.asarray(bias2),
        "Wf1": jnp.asarray(Wf1, jnp.bfloat16),
        "bf1": jnp.asarray(bf1),
        "Wf2": jnp.asarray(Wf2, jnp.bfloat16),
        "bf2": jnp.asarray(bf2),
    }


# ---------------- pure-JAX reference (mirrors the PyTorch forward, eval mode) ----------------

def ref_forward(x, p):
    n = x.shape[0]
    xi = x[:, None, :, :]
    c1 = lax.conv_general_dilated(xi, p["conv1_w"], (1, 1), "VALID",
                                  dimension_numbers=("NCHW", "OIHW", "NCHW"))
    c1 = c1 + p["conv1_b"][None, :, None, None]
    a1 = jax.nn.relu(c1.reshape(n, 10, 12, 2, 12, 2).max(axis=(3, 5)))
    c2 = lax.conv_general_dilated(a1, p["conv2_w"], (1, 1), "VALID",
                                  dimension_numbers=("NCHW", "OIHW", "NCHW"))
    c2 = c2 + p["conv2_b"][None, :, None, None]
    a2 = jax.nn.relu(c2.reshape(n, 20, 4, 2, 4, 2).max(axis=(3, 5)))
    f = a2.reshape(n, 320)
    h = jax.nn.relu(f @ p["fc1_w"].T + p["fc1_b"])
    return h @ p["fc2_w"].T + p["fc2_b"]


if __name__ == "__main__":
    key = jax.random.PRNGKey(0)
    kx, kp = jax.random.split(key)
    # MNIST forward requires 28x28 spatial (20*4*4 = 320 flatten); 16 images -> grid of 2 steps.
    x = jax.random.normal(kx, (16, 28, 28), jnp.float32)
    params = init_params(kp)
    prep = prepare_params(params)

    out = jax.block_until_ready(net_forward(x, prep))
    assert out.shape == (16, 10) and out.dtype == jnp.float32

    ref = ref_forward(x, params)
    np.testing.assert_allclose(np.asarray(out), np.asarray(ref), rtol=5e-2, atol=5e-2)

    print("KERNEL_OK")
</pallas_src>

<mosaic_0001>
module attributes {stable_mosaic.version = 11 : i64} {
  func.func @net_fused_kernel(%arg0: i32, %arg1: memref<28x8x28xf32, #tpu.memory_space<vmem>>, %arg2: memref<5x28x256xbf16, #tpu.memory_space<vmem>>, %arg3: memref<1x256xf32, #tpu.memory_space<vmem>>, %arg4: memref<5x128x256xbf16, #tpu.memory_space<vmem>>, %arg5: memref<1x256xf32, #tpu.memory_space<vmem>>, %arg6: memref<4x128x128xbf16, #tpu.memory_space<vmem>>, %arg7: memref<1x128xf32, #tpu.memory_space<vmem>>, %arg8: memref<128x128xbf16, #tpu.memory_space<vmem>>, %arg9: memref<1x128xf32, #tpu.memory_space<vmem>>, %arg10: memref<8x128xf32, #tpu.memory_space<vmem>>) attributes {dimension_semantics = [#tpu.dimension_semantics<parallel>], iteration_bounds = array<i64: 2>, scalar_prefetch = 0 : i64, scratch_operands = 0 : i64, tpu.core_type = #tpu.core_type<tc>, window_params = [{transform_indices = @transform_0, window_bounds = array<i64: 28, 8, 28>}, {pipeline_mode = #tpu.pipeline_mode<synchronous>, transform_indices = @transform_1, window_bounds = array<i64: 5, 28, 256>}, {pipeline_mode = #tpu.pipeline_mode<synchronous>, transform_indices = @transform_2, window_bounds = array<i64: 1, 256>}, {pipeline_mode = #tpu.pipeline_mode<synchronous>, transform_indices = @transform_3, window_bounds = array<i64: 5, 128, 256>}, {pipeline_mode = #tpu.pipeline_mode<synchronous>, transform_indices = @transform_4, window_bounds = array<i64: 1, 256>}, {pipeline_mode = #tpu.pipeline_mode<synchronous>, transform_indices = @transform_5, window_bounds = array<i64: 4, 128, 128>}, {pipeline_mode = #tpu.pipeline_mode<synchronous>, transform_indices = @transform_6, window_bounds = array<i64: 1, 128>}, {pipeline_mode = #tpu.pipeline_mode<synchronous>, transform_indices = @transform_7, window_bounds = array<i64: 128, 128>}, {pipeline_mode = #tpu.pipeline_mode<synchronous>, transform_indices = @transform_8, window_bounds = array<i64: 1, 128>}, {transform_indices = @transform_9, window_bounds = array<i64: 8, 128>}]} {
    %c0 = arith.constant 0 : index
    %c0_0 = arith.constant 0 : index
    %c0_1 = arith.constant 0 : index
    %0 = vector.load %arg1[%c0, %c0_0, %c0_1] : memref<28x8x28xf32, #tpu.memory_space<vmem>>, vector<28x8x28xf32>
    %c0_2 = arith.constant 0 : index
    %c0_3 = arith.constant 0 : index
    %1 = vector.load %arg3[%c0_2, %c0_3] : memref<1x256xf32, #tpu.memory_space<vmem>>, vector<1x256xf32>
    %2 = vector.extract_strided_slice %0 {offsets = [0, 0, 0], sizes = [24, 8, 28], strides = [1, 1, 1]} : vector<28x8x28xf32> to vector<24x8x28xf32>
    %3 = vector.shape_cast %2 : vector<24x8x28xf32> to vector<192x28xf32>
    %4 = arith.truncf %3 : vector<192x28xf32> to vector<192x28xbf16>
    %c0_4 = arith.constant 0 : index
    %c0_5 = arith.constant 0 : index
    %c0_6 = arith.constant 0 : index
    %5 = vector.load %arg2[%c0_4, %c0_5, %c0_6] : memref<5x28x256xbf16, #tpu.memory_space<vmem>>, vector<1x28x256xbf16>
    %6 = vector.shape_cast %5 : vector<1x28x256xbf16> to vector<28x256xbf16>
    %cst = arith.constant dense<0.000000e+00> : vector<192x256xf32>
    %7 = tpu.matmul %4, %6, %cst {dimension_numbers = #tpu.dot_dimension_numbers<[1], [0], [0], [1], [0, 0, 1, 1], [], []>} : vector<192x28xbf16>, vector<28x256xbf16>, vector<192x256xf32> -> vector<192x256xf32>
    %8 = vector.broadcast %1 : vector<1x256xf32> to vector<192x256xf32>
    %9 = arith.addf %8, %7 : vector<192x256xf32>
    %10 = vector.extract_strided_slice %0 {offsets = [1, 0, 0], sizes = [24, 8, 28], strides = [1, 1, 1]} : vector<28x8x28xf32> to vector<24x8x28xf32>
    %11 = vector.shape_cast %10 : vector<24x8x28xf32> to vector<192x28xf32>
    %12 = arith.truncf %11 : vector<192x28xf32> to vector<192x28xbf16>
    %c1 = arith.constant 1 : index
    %c0_7 = arith.constant 0 : index
    %c0_8 = arith.constant 0 : index
    %13 = vector.load %arg2[%c1, %c0_7, %c0_8] : memref<5x28x256xbf16, #tpu.memory_space<vmem>>, vector<1x28x256xbf16>
    %14 = vector.shape_cast %13 : vector<1x28x256xbf16> to vector<28x256xbf16>
    %cst_9 = arith.constant dense<0.000000e+00> : vector<192x256xf32>
    %15 = tpu.matmul %12, %14, %cst_9 {dimension_numbers = #tpu.dot_dimension_numbers<[1], [0], [0], [1], [0, 0, 1, 1], [], []>} : vector<192x28xbf16>, vector<28x256xbf16>, vector<192x256xf32> -> vector<192x256xf32>
    %16 = arith.addf %9, %15 : vector<192x256xf32>
    %17 = vector.extract_strided_slice %0 {offsets = [2, 0, 0], sizes = [24, 8, 28], strides = [1, 1, 1]} : vector<28x8x28xf32> to vector<24x8x28xf32>
    %18 = vector.shape_cast %17 : vector<24x8x28xf32> to vector<192x28xf32>
    %19 = arith.truncf %18 : vector<192x28xf32> to vector<192x28xbf16>
    %c2 = arith.constant 2 : index
    %c0_10 = arith.constant 0 : index
    %c0_11 = arith.constant 0 : index
    %20 = vector.load %arg2[%c2, %c0_10, %c0_11] : memref<5x28x256xbf16, #tpu.memory_space<vmem>>, vector<1x28x256xbf16>
    %21 = vector.shape_cast %20 : vector<1x28x256xbf16> to vector<28x256xbf16>
    %cst_12 = arith.constant dense<0.000000e+00> : vector<192x256xf32>
    %22 = tpu.matmul %19, %21, %cst_12 {dimension_numbers = #tpu.dot_dimension_numbers<[1], [0], [0], [1], [0, 0, 1, 1], [], []>} : vector<192x28xbf16>, vector<28x256xbf16>, vector<192x256xf32> -> vector<192x256xf32>
    %23 = arith.addf %16, %22 : vector<192x256xf32>
    %24 = vector.extract_strided_slice %0 {offsets = [3, 0, 0], sizes = [24, 8, 28], strides = [1, 1, 1]} : vector<28x8x28xf32> to vector<24x8x28xf32>
    %25 = vector.shape_cast %24 : vector<24x8x28xf32> to vector<192x28xf32>
    %26 = arith.truncf %25 : vector<192x28xf32> to vector<192x28xbf16>
    %c3 = arith.constant 3 : index
    %c0_13 = arith.constant 0 : index
    %c0_14 = arith.constant 0 : index
    %27 = vector.load %arg2[%c3, %c0_13, %c0_14] : memref<5x28x256xbf16, #tpu.memory_space<vmem>>, vector<1x28x256xbf16>
    %28 = vector.shape_cast %27 : vector<1x28x256xbf16> to vector<28x256xbf16>
    %cst_15 = arith.constant dense<0.000000e+00> : vector<192x256xf32>
    %29 = tpu.matmul %26, %28, %cst_15 {dimension_numbers = #tpu.dot_dimension_numbers<[1], [0], [0], [1], [0, 0, 1, 1], [], []>} : vector<192x28xbf16>, vector<28x256xbf16>, vector<192x256xf32> -> vector<192x256xf32>
    %30 = arith.addf %23, %29 : vector<192x256xf32>
    %31 = vector.extract_strided_slice %0 {offsets = [4, 0, 0], sizes = [24, 8, 28], strides = [1, 1, 1]} : vector<28x8x28xf32> to vector<24x8x28xf32>
    %32 = vector.shape_cast %31 : vector<24x8x28xf32> to vector<192x28xf32>
    %33 = arith.truncf %32 : vector<192x28xf32> to vector<192x28xbf16>
    %c4 = arith.constant 4 : index
    %c0_16 = arith.constant 0 : index
    %c0_17 = arith.constant 0 : index
    %34 = vector.load %arg2[%c4, %c0_16, %c0_17] : memref<5x28x256xbf16, #tpu.memory_space<vmem>>, vector<1x28x256xbf16>
    %35 = vector.shape_cast %34 : vector<1x28x256xbf16> to vector<28x256xbf16>
    %cst_18 = arith.constant dense<0.000000e+00> : vector<192x256xf32>
    %36 = tpu.matmul %33, %35, %cst_18 {dimension_numbers = #tpu.dot_dimension_numbers<[1], [0], [0], [1], [0, 0, 1, 1], [], []>} : vector<192x28xbf16>, vector<28x256xbf16>, vector<192x256xf32> -> vector<192x256xf32>
    %37 = arith.addf %30, %36 : vector<192x256xf32>
    %38 = vector.shape_cast %37 : vector<192x256xf32> to vector<12x16x256xf32>
    %39 = vector.extract_strided_slice %38 {offsets = [0, 0, 0], sizes = [12, 8, 256], strides = [1, 1, 1]} : vector<12x16x256xf32> to vector<12x8x256xf32>
    %40 = vector.extract_strided_slice %38 {offsets = [0, 8, 0], sizes = [12, 8, 256], strides = [1, 1, 1]} : vector<12x16x256xf32> to vector<12x8x256xf32>
    %41 = arith.maximumf %39, %40 : vector<12x8x256xf32>
    %42 = vector.extract_strided_slice %41 {offsets = [0, 0, 0], sizes = [12, 8, 128], strides = [1, 1, 1]} : vector<12x8x256xf32> to vector<12x8x128xf32>
    %43 = vector.extract_strided_slice %41 {offsets = [0, 0, 128], sizes = [12, 8, 128], strides = [1, 1, 1]} : vector<12x8x256xf32> to vector<12x8x128xf32>
    %44 = arith.maximumf %42, %43 : vector<12x8x128xf32>
    %cst_19 = arith.constant 0.000000e+00 : f32
    %45 = vector.broadcast %cst_19 : f32 to vector<12x8x128xf32>
    %46 = arith.maximumf %44, %45 : vector<12x8x128xf32>
    %c0_20 = arith.constant 0 : index
    %c0_21 = arith.constant 0 : index
    %47 = vector.load %arg5[%c0_20, %c0_21] : memref<1x256xf32, #tpu.memory_space<vmem>>, vector<1x256xf32>
    %48 = vector.extract_strided_slice %46 {offsets = [0, 0, 0], sizes = [8, 8, 128], strides = [1, 1, 1]} : vector<12x8x128xf32> to vector<8x8x128xf32>
    %49 = vector.shape_cast %48 : vector<8x8x128xf32> to vector<64x128xf32>
    %50 = arith.truncf %49 : vector<64x128xf32> to vector<64x128xbf16>
    %c0_22 = arith.constant 0 : index
    %c0_23 = arith.constant 0 : index
    %c0_24 = arith.constant 0 : index
    %51 = vector.load %arg4[%c0_22, %c0_23, %c0_24] : memref<5x128x256xbf16, #tpu.memory_space<vmem>>, vector<1x128x256xbf16>
    %52 = vector.shape_cast %51 : vector<1x128x256xbf16> to vector<128x256xbf16>
    %cst_25 = arith.constant dense<0.000000e+00> : vector<64x256xf32>
    %53 = tpu.matmul %50, %52, %cst_25 {dimension_numbers = #tpu.dot_dimension_numbers<[1], [0], [0], [1], [0, 0, 1, 1], [], []>} : vector<64x128xbf16>, vector<128x256xbf16>, vector<64x256xf32> -> vector<64x256xf32>
    %54 = vector.broadcast %47 : vector<1x256xf32> to vector<64x256xf32>
    %55 = arith.addf %54, %53 : vector<64x256xf32>
    %56 = vector.extract_strided_slice %46 {offsets = [1, 0, 0], sizes = [8, 8, 128], strides = [1, 1, 1]} : vector<12x8x128xf32> to vector<8x8x128xf32>
    %57 = vector.shape_cast %56 : vector<8x8x128xf32> to vector<64x128xf32>
    %58 = arith.truncf %57 : vector<64x128xf32> to vector<64x128xbf16>
    %c1_26 = arith.constant 1 : index
    %c0_27 = arith.constant 0 : index
    %c0_28 = arith.constant 0 : index
    %59 = vector.load %arg4[%c1_26, %c0_27, %c0_28] : memref<5x128x256xbf16, #tpu.memory_space<vmem>>, vector<1x128x256xbf16>
    %60 = vector.shape_cast %59 : vector<1x128x256xbf16> to vector<128x256xbf16>
    %cst_29 = arith.constant dense<0.000000e+00> : vector<64x256xf32>
    %61 = tpu.matmul %58, %60, %cst_29 {dimension_numbers = #tpu.dot_dimension_numbers<[1], [0], [0], [1], [0, 0, 1, 1], [], []>} : vector<64x128xbf16>, vector<128x256xbf16>, vector<64x256xf32> -> vector<64x256xf32>
    %62 = arith.addf %55, %61 : vector<64x256xf32>
    %63 = vector.extract_strided_slice %46 {offsets = [2, 0, 0], sizes = [8, 8, 128], strides = [1, 1, 1]} : vector<12x8x128xf32> to vector<8x8x128xf32>
    %64 = vector.shape_cast %63 : vector<8x8x128xf32> to vector<64x128xf32>
    %65 = arith.truncf %64 : vector<64x128xf32> to vector<64x128xbf16>
    %c2_30 = arith.constant 2 : index
    %c0_31 = arith.constant 0 : index
    %c0_32 = arith.constant 0 : index
    %66 = vector.load %arg4[%c2_30, %c0_31, %c0_32] : memref<5x128x256xbf16, #tpu.memory_space<vmem>>, vector<1x128x256xbf16>
    %67 = vector.shape_cast %66 : vector<1x128x256xbf16> to vector<128x256xbf16>
    %cst_33 = arith.constant dense<0.000000e+00> : vector<64x256xf32>
    %68 = tpu.matmul %65, %67, %cst_33 {dimension_numbers = #tpu.dot_dimension_numbers<[1], [0], [0], [1], [0, 0, 1, 1], [], []>} : vector<64x128xbf16>, vector<128x256xbf16>, vector<64x256xf32> -> vector<64x256xf32>
    %69 = arith.addf %62, %68 : vector<64x256xf32>
    %70 = vector.extract_strided_slice %46 {offsets = [3, 0, 0], sizes = [8, 8, 128], strides = [1, 1, 1]} : vector<12x8x128xf32> to vector<8x8x128xf32>
    %71 = vector.shape_cast %70 : vector<8x8x128xf32> to vector<64x128xf32>
    %72 = arith.truncf %71 : vector<64x128xf32> to vector<64x128xbf16>
    %c3_34 = arith.constant 3 : index
    %c0_35 = arith.constant 0 : index
    %c0_36 = arith.constant 0 : index
    %73 = vector.load %arg4[%c3_34, %c0_35, %c0_36] : memref<5x128x256xbf16, #tpu.memory_space<vmem>>, vector<1x128x256xbf16>
    %74 = vector.shape_cast %73 : vector<1x128x256xbf16> to vector<128x256xbf16>
    %cst_37 = arith.constant dense<0.000000e+00> : vector<64x256xf32>
    %75 = tpu.matmul %72, %74, %cst_37 {dimension_numbers = #tpu.dot_dimension_numbers<[1], [0], [0], [1], [0, 0, 1, 1], [], []>} : vector<64x128xbf16>, vector<128x256xbf16>, vector<64x256xf32> -> vector<64x256xf32>
    %76 = arith.addf %69, %75 : vector<64x256xf32>
    %77 = vector.extract_strided_slice %46 {offsets = [4, 0, 0], sizes = [8, 8, 128], strides = [1, 1, 1]} : vector<12x8x128xf32> to vector<8x8x128xf32>
    %78 = vector.shape_cast %77 : vector<8x8x128xf32> to vector<64x128xf32>
    %79 = arith.truncf %78 : vector<64x128xf32> to vector<64x128xbf16>
    %c4_38 = arith.constant 4 : index
    %c0_39 = arith.constant 0 : index
    %c0_40 = arith.constant 0 : index
    %80 = vector.load %arg4[%c4_38, %c0_39, %c0_40] : memref<5x128x256xbf16, #tpu.memory_space<vmem>>, vector<1x128x256xbf16>
    %81 = vector.shape_cast %80 : vector<1x128x256xbf16> to vector<128x256xbf16>
    %cst_41 = arith.constant dense<0.000000e+00> : vector<64x256xf32>
    %82 = tpu.matmul %79, %81, %cst_41 {dimension_numbers = #tpu.dot_dimension_numbers<[1], [0], [0], [1], [0, 0, 1, 1], [], []>} : vector<64x128xbf16>, vector<128x256xbf16>, vector<64x256xf32> -> vector<64x256xf32>
    %83 = arith.addf %76, %82 : vector<64x256xf32>
    %84 = vector.shape_cast %83 : vector<64x256xf32> to vector<4x16x256xf32>
    %85 = vector.extract_strided_slice %84 {offsets = [0, 0, 0], sizes = [4, 8, 256], strides = [1, 1, 1]} : vector<4x16x256xf32> to vector<4x8x256xf32>
    %86 = vector.extract_strided_slice %84 {offsets = [0, 8, 0], sizes = [4, 8, 256], strides = [1, 1, 1]} : vector<4x16x256xf32> to vector<4x8x256xf32>
    %87 = arith.maximumf %85, %86 : vector<4x8x256xf32>
    %88 = vector.extract_strided_slice %87 {offsets = [0, 0, 0], sizes = [4, 8, 128], strides = [1, 1, 1]} : vector<4x8x256xf32> to vector<4x8x128xf32>
    %89 = vector.extract_strided_slice %87 {offsets = [0, 0, 128], sizes = [4, 8, 128], strides = [1, 1, 1]} : vector<4x8x256xf32> to vector<4x8x128xf32>
    %90 = arith.maximumf %88, %89 : vector<4x8x128xf32>
    %cst_42 = arith.constant 0.000000e+00 : f32
    %91 = vector.broadcast %cst_42 : f32 to vector<4x8x128xf32>
    %92 = arith.maximumf %90, %91 : vector<4x8x128xf32>
    %c0_43 = arith.constant 0 : index
    %c0_44 = arith.constant 0 : index
    %93 = vector.load %arg7[%c0_43, %c0_44] : memref<1x128xf32, #tpu.memory_space<vmem>>, vector<1x128xf32>
    %94 = vector.extract_strided_slice %92 {offsets = [0, 0, 0], sizes = [1, 8, 128], strides = [1, 1, 1]} : vector<4x8x128xf32> to vector<1x8x128xf32>
    %95 = vector.shape_cast %94 : vector<1x8x128xf32> to vector<8x128xf32>
    %96 = arith.truncf %95 : vector<8x128xf32> to vector<8x128xbf16>
    %c0_45 = arith.constant 0 : index
    %c0_46 = arith.constant 0 : index
    %c0_47 = arith.constant 0 : index
    %97 = vector.load %arg6[%c0_45, %c0_46, %c0_47] : memref<4x128x128xbf16, #tpu.memory_space<vmem>>, vector<1x128x128xbf16>
    %98 = vector.shape_cast %97 : vector<1x128x128xbf16> to vector<128x128xbf16>
    %cst_48 = arith.constant dense<0.000000e+00> : vector<8x128xf32>
    %99 = tpu.matmul %96, %98, %cst_48 {dimension_numbers = #tpu.dot_dimension_numbers<[1], [0], [0], [1], [0, 0, 1, 1], [], []>} : vector<8x128xbf16>, vector<128x128xbf16>, vector<8x128xf32> -> vector<8x128xf32>
    %100 = vector.broadcast %93 : vector<1x128xf32> to vector<8x128xf32>
    %101 = arith.addf %100, %99 : vector<8x128xf32>
    %102 = vector.extract_strided_slice %92 {offsets = [1, 0, 0], sizes = [1, 8, 128], strides = [1, 1, 1]} : vector<4x8x128xf32> to vector<1x8x128xf32>
    %103 = vector.shape_cast %102 : vector<1x8x128xf32> to vector<8x128xf32>
    %104 = arith.truncf %103 : vector<8x128xf32> to vector<8x128xbf16>
    %c1_49 = arith.constant 1 : index
    %c0_50 = arith.constant 0 : index
    %c0_51 = arith.constant 0 : index
    %105 = vector.load %arg6[%c1_49, %c0_50, %c0_51] : memref<4x128x128xbf16, #tpu.memory_space<vmem>>, vector<1x128x128xbf16>
    %106 = vector.shape_cast %105 : vector<1x128x128xbf16> to vector<128x128xbf16>
    %cst_52 = arith.constant dense<0.000000e+00> : vector<8x128xf32>
    %107 = tpu.matmul %104, %106, %cst_52 {dimension_numbers = #tpu.dot_dimension_numbers<[1], [0], [0], [1], [0, 0, 1, 1], [], []>} : vector<8x128xbf16>, vector<128x128xbf16>, vector<8x128xf32> -> vector<8x128xf32>
    %108 = arith.addf %101, %107 : vector<8x128xf32>
    %109 = vector.extract_strided_slice %92 {offsets = [2, 0, 0], sizes = [1, 8, 128], strides = [1, 1, 1]} : vector<4x8x128xf32> to vector<1x8x128xf32>
    %110 = vector.shape_cast %109 : vector<1x8x128xf32> to vector<8x128xf32>
    %111 = arith.truncf %110 : vector<8x128xf32> to vector<8x128xbf16>
    %c2_53 = arith.constant 2 : index
    %c0_54 = arith.constant 0 : index
    %c0_55 = arith.constant 0 : index
    %112 = vector.load %arg6[%c2_53, %c0_54, %c0_55] : memref<4x128x128xbf16, #tpu.memory_space<vmem>>, vector<1x128x128xbf16>
    %113 = vector.shape_cast %112 : vector<1x128x128xbf16> to vector<128x128xbf16>
    %cst_56 = arith.constant dense<0.000000e+00> : vector<8x128xf32>
    %114 = tpu.matmul %111, %113, %cst_56 {dimension_numbers = #tpu.dot_dimension_numbers<[1], [0], [0], [1], [0, 0, 1, 1], [], []>} : vector<8x128xbf16>, vector<128x128xbf16>, vector<8x128xf32> -> vector<8x128xf32>
    %115 = arith.addf %108, %114 : vector<8x128xf32>
    %116 = vector.extract_strided_slice %92 {offsets = [3, 0, 0], sizes = [1, 8, 128], strides = [1, 1, 1]} : vector<4x8x128xf32> to vector<1x8x128xf32>
    %117 = vector.shape_cast %116 : vector<1x8x128xf32> to vector<8x128xf32>
    %118 = arith.truncf %117 : vector<8x128xf32> to vector<8x128xbf16>
    %c3_57 = arith.constant 3 : index
    %c0_58 = arith.constant 0 : index
    %c0_59 = arith.constant 0 : index
    %119 = vector.load %arg6[%c3_57, %c0_58, %c0_59] : memref<4x128x128xbf16, #tpu.memory_space<vmem>>, vector<1x128x128xbf16>
    %120 = vector.shape_cast %119 : vector<1x128x128xbf16> to vector<128x128xbf16>
    %cst_60 = arith.constant dense<0.000000e+00> : vector<8x128xf32>
    %121 = tpu.matmul %118, %120, %cst_60 {dimension_numbers = #tpu.dot_dimension_numbers<[1], [0], [0], [1], [0, 0, 1, 1], [], []>} : vector<8x128xbf16>, vector<128x128xbf16>, vector<8x128xf32> -> vector<8x128xf32>
    %122 = arith.addf %115, %121 : vector<8x128xf32>
    %cst_61 = arith.constant 0.000000e+00 : f32
    %123 = vector.broadcast %cst_61 : f32 to vector<8x128xf32>
    %124 = arith.maximumf %122, %123 : vector<8x128xf32>
    %125 = arith.truncf %124 : vector<8x128xf32> to vector<8x128xbf16>
    %c0_62 = arith.constant 0 : index
    %c0_63 = arith.constant 0 : index
    %126 = vector.load %arg8[%c0_62, %c0_63] : memref<128x128xbf16, #tpu.memory_space<vmem>>, vector<128x128xbf16>
    %cst_64 = arith.constant dense<0.000000e+00> : vector<8x128xf32>
    %127 = tpu.matmul %125, %126, %cst_64 {dimension_numbers = #tpu.dot_dimension_numbers<[1], [0], [0], [1], [0, 0, 1, 1], [], []>} : vector<8x128xbf16>, vector<128x128xbf16>, vector<8x128xf32> -> vector<8x128xf32>
    %c0_65 = arith.constant 0 : index
    %c0_66 = arith.constant 0 : index
    %128 = vector.load %arg9[%c0_65, %c0_66] : memref<1x128xf32, #tpu.memory_space<vmem>>, vector<1x128xf32>
    %129 = vector.broadcast %128 : vector<1x128xf32> to vector<8x128xf32>
    %130 = arith.addf %127, %129 : vector<8x128xf32>
    %c0_67 = arith.constant 0 : index
    %c0_68 = arith.constant 0 : index
    %131 = vector.load %arg10[%c0_67, %c0_68] : memref<8x128xf32, #tpu.memory_space<vmem>>, vector<8x128xf32>
    tpu.vector_store %arg10[%c0_67, %c0_68], %130 {strides = array<i32>} : memref<8x128xf32, #tpu.memory_space<vmem>>, vector<8x128xf32>,
    return
  }
  func.func @transform_0(%arg0: i32) -> (i32, i32, i32) {
    %c0_i32 = arith.constant 0 : i32
    %c0_i32_0 = arith.constant 0 : i32
    %c0_i32_1 = arith.constant 0 : i32
    return %c0_i32, %arg0, %c0_i32_0 : i32, i32, i32
  }
  func.func @transform_1(%arg0: i32) -> (i32, i32, i32) {
    %c0_i32 = arith.constant 0 : i32
    %c0_i32_0 = arith.constant 0 : i32
    %c0_i32_1 = arith.constant 0 : i32
    %c0_i32_2 = arith.constant 0 : i32
    return %c0_i32, %c0_i32_0, %c0_i32_1 : i32, i32, i32
  }
  func.func @transform_2(%arg0: i32) -> (i32, i32) {
    %c0_i32 = arith.constant 0 : i32
    %c0_i32_0 = arith.constant 0 : i32
    %c0_i32_1 = arith.constant 0 : i32
    return %c0_i32, %c0_i32_0 : i32, i32
  }
  func.func @transform_3(%arg0: i32) -> (i32, i32, i32) {
    %c0_i32 = arith.constant 0 : i32
    %c0_i32_0 = arith.constant 0 : i32
    %c0_i32_1 = arith.constant 0 : i32
    %c0_i32_2 = arith.constant 0 : i32
    return %c0_i32, %c0_i32_0, %c0_i32_1 : i32, i32, i32
  }
  func.func @transform_4(%arg0: i32) -> (i32, i32) {
    %c0_i32 = arith.constant 0 : i32
    %c0_i32_0 = arith.constant 0 : i32
    %c0_i32_1 = arith.constant 0 : i32
    return %c0_i32, %c0_i32_0 : i32, i32
  }
  func.func @transform_5(%arg0: i32) -> (i32, i32, i32) {
    %c0_i32 = arith.constant 0 : i32
    %c0_i32_0 = arith.constant 0 : i32
    %c0_i32_1 = arith.constant 0 : i32
    %c0_i32_2 = arith.constant 0 : i32
    return %c0_i32, %c0_i32_0, %c0_i32_1 : i32, i32, i32
  }
  func.func @transform_6(%arg0: i32) -> (i32, i32) {
    %c0_i32 = arith.constant 0 : i32
    %c0_i32_0 = arith.constant 0 : i32
    %c0_i32_1 = arith.constant 0 : i32
    return %c0_i32, %c0_i32_0 : i32, i32
  }
  func.func @transform_7(%arg0: i32) -> (i32, i32) {
    %c0_i32 = arith.constant 0 : i32
    %c0_i32_0 = arith.constant 0 : i32
    %c0_i32_1 = arith.constant 0 : i32
    return %c0_i32, %c0_i32_0 : i32, i32
  }
  func.func @transform_8(%arg0: i32) -> (i32, i32) {
    %c0_i32 = arith.constant 0 : i32
    %c0_i32_0 = arith.constant 0 : i32
    %c0_i32_1 = arith.constant 0 : i32
    return %c0_i32, %c0_i32_0 : i32, i32
  }
  func.func @transform_9(%arg0: i32) -> (i32, i32) {
    %c0_i32 = arith.constant 0 : i32
    %c0_i32_0 = arith.constant 0 : i32
    return %arg0, %c0_i32 : i32, i32
  }
}

</mosaic_0001>

<llo_original>
// kernel: net_forward_impl.1
$region0: #{net_forward_impl.1}
  #allocation0 [shape = 'u32[]', space=smem, size = 0x4, offset = 0x4, fixed_abs, tag = 'smem constant byte address 0x4 - core index']
  #allocation1 [shape = 'u32[144,128]{1,0:T(1,128)}', space=vmem, size = 0x12000, scoped, tag = 'internal scratch']
  %s0 = inlined_call_operand.hbm [shape: f32[28,16,28], index: 0, kind: input, shape index: {}]
  %s1 = inlined_call_operand.hbm [shape: bf16[5,28,256], index: 1, kind: input, shape index: {}]
  %s2 = inlined_call_operand.vmem [shape: f32[1,256], index: 2, kind: input, shape index: {}]
  %s3 = inlined_call_operand.hbm [shape: bf16[5,128,256], index: 3, kind: input, shape index: {}]
  %s4 = inlined_call_operand.vmem [shape: f32[1,256], index: 4, kind: input, shape index: {}]
  %s5 = inlined_call_operand.hbm [shape: bf16[4,128,128], index: 5, kind: input, shape index: {}]
  %s6 = inlined_call_operand.vmem [shape: f32[1,128], index: 6, kind: input, shape index: {}]
  %s7 = inlined_call_operand.hbm [shape: bf16[128,128], index: 7, kind: input, shape index: {}]
  %s8 = inlined_call_operand.vmem [shape: f32[1,128], index: 8, kind: input, shape index: {}]
  %s9 = inlined_call_operand.hbm [shape: f32[16,128], index: 9, kind: output, shape index: {}]
  %s10 = sld [smem:[#allocation0]]
  $region89: #{net_forward_impl.1} parent=0
    _
  %s12 = ssub.s32 1, %s10
  %s13 = scalar_select 0, %s12, %s10
  $region1: #{net_forward_impl.1} parent=0
    #allocation2 [shape = 'u8[229376]{0}', space=vmem, size = 0x38000, scoped, tag = 'input window, operand 0']
    #allocation3 [shape = 's32[2]{0}', space=sflag, size = 0x8, scoped, tag = 'scoped memory for net_forward_impl.1']
    #allocation4 [shape = 's32[2]{0}', space=sflag, size = 0x8, scoped, tag = 'scoped memory for net_forward_impl.1']
    #allocation5 [shape = 'u8[81920]{0}', space=vmem, size = 0x14000, scoped, tag = 'input window, operand 1, single buffered']
    #allocation6 [shape = 's32[1]{0}', space=sflag, size = 0x4, scoped, tag = 'scoped memory for net_forward_impl.1']
    #allocation7 [shape = 'u8[327680]{0}', space=vmem, size = 0x50000, scoped, tag = 'input window, operand 3, single buffered']
    #allocation8 [shape = 'u8[131072]{0}', space=vmem, size = 0x20000, scoped, tag = 'input window, operand 5, single buffered']
    #allocation9 [shape = 's32[1]{0}', space=sflag, size = 0x4, scoped, tag = 'scoped memory for net_forward_impl.1']
    #allocation10 [shape = 'u8[32768]{0}', space=vmem, size = 0x8000, scoped, tag = 'input window, operand 7, single buffered']
    #allocation11 [shape = 'u8[8192]{0}', space=vmem, size = 0x2000, scoped, tag = 'output window, operand 0']
    %14 = vsyncpa [#allocation3], 0
    %s15 = scalar_lea.sflag [#allocation3], 1
    %16 = vsyncpa %s15, 0
    %17 = vsyncpa [#allocation6], 0
    %18 = vsyncpa [#allocation9], 0
    %19 = vsyncpa [#allocation4], 0
    %s20 = scalar_lea.sflag [#allocation4], 1
    %21 = vsyncpa %s20, 0
    loop: start=0, step=1, limit=4
    $region2: #{net_forward_impl.1} parent=1 // loop_pre_header
      _
    $region3: #{net_forward_impl.1} parent=1 // loop_header
      %s23 = sphi 0, %s27
      %p24 = scmp.ge.s32.totalorder %s23, 4
      %s33 = sphi 0, %s35
      %s36 = sphi 0, %s33
      %s37 = sphi 0, %s36
      %s53 = sphi 0, %s37
      %s57 = sphi 0, %s57
      %s59 = sphi 0, %s57
      %s60 = sphi 0, %s59
      %s74 = sphi 0, %s60
      %s78 = sphi 0, %s78
      %s80 = sphi 0, %s78
      %s81 = sphi 0, %s80
      %s95 = sphi 0, %s81
      %s99 = sphi 0, %s99
      %s101 = sphi 0, %s99
      %s102 = sphi 0, %s101
      %s116 = sphi 0, %s102
      %s120 = sphi 0, %s120
      %s122 = sphi 0, %s120
      %s123 = sphi 0, %s122
      %s137 = sphi 0, %s123
      %s141 = sphi 0, %s141
      %s143 = sphi 0, %s141
      %s144 = sphi 0, %s143
      %s158 = sphi 0, %s144
      %s162 = sphi 0, %s162
      %s164 = sphi 0, %s162
      %s165 = sphi 0, %s164
      %s179 = sphi 0, %s165
      %s183 = sphi 0, %s183
      %s185 = sphi 0, %s183
      %s186 = sphi 0, %s185
      %s200 = sphi 0, %s186
      %s204 = sphi 0, %s204
      %s206 = sphi 0, %s204
      %s207 = sphi 0, %s206
      %s221 = sphi 0, %s207
      %s227 = sphi 0, %s229
      %s230 = sphi 0, %s227
      %s231 = sphi 0, %s230
      %s247 = sphi 0, %s231
    $region4: #{net_forward_impl.1} parent=1 // loop_header_branch
      %26 = sbr.rel (%p24) target = $region8
    $region5: #{net_forward_impl.1} parent=1 // loop_body
      %s28 = ssub.s32 %s23, 1
      %s29 = ssub.s32 %s23, 2
      %s30 = sadd.s32 %s23, 1
      %s31 = ssub.s32 %s23, %s30
      %p32 = scmp.eq.s32.totalorder %s31, 0
      %s34 = sadd.s32 %s33, 1
      %s35 = scalar_select %p32, %s33, %s34
      %p38 = pneg %p32
      %p39 = scmp.eq.s32.totalorder %s23, 1
      %p40 = por %p38, %p39
      %p41 = scmp.ne.s32.totalorder %s33, %s36
      %p42 = scmp.eq.s32.totalorder %s23, 0
      %p43 = por %p41, %p42
      %p44 = scmp.ne.s32.totalorder %s33, %s36
      %p45 = scmp.eq.s32.totalorder %s28, 1
      %p46 = por %p44, %p45
      %p47 = scmp.ne.s32.totalorder %s36, %s37
      %p48 = scmp.eq.s32.totalorder %s28, 0
      %p49 = por %p47, %p48
      %p50 = scmp.ne.s32.totalorder %s36, %s37
      %p51 = scmp.eq.s32.totalorder %s29, 1
      %p52 = por %p50, %p51
      %p54 = scmp.ne.s32.totalorder %s37, %s53
      %p55 = scmp.eq.s32.totalorder %s29, 0
      %p56 = por %p54, %p55
      %s58 = sadd.s32 %s57, 1
      %p61 = scmp.eq.s32.totalorder %s23, 1
      %p62 = scmp.ne.s32.totalorder %s57, %s59
      %p63 = scmp.eq.s32.totalorder %s23, 0
      %p64 = por %p62, %p63
      %p65 = scmp.ne.s32.totalorder %s57, %s59
      %p66 = scmp.eq.s32.totalorder %s28, 1
      %p67 = por %p65, %p66
      %p68 = scmp.ne.s32.totalorder %s59, %s60
      %p69 = scmp.eq.s32.totalorder %s28, 0
      %p70 = por %p68, %p69
      %p71 = scmp.ne.s32.totalorder %s59, %s60
      %p72 = scmp.eq.s32.totalorder %s29, 1
      %p73 = por %p71, %p72
      %p75 = scmp.ne.s32.totalorder %s60, %s74
      %p76 = scmp.eq.s32.totalorder %s29, 0
      %p77 = por %p75, %p76
      %s79 = sadd.s32 %s78, 1
      %p82 = scmp.eq.s32.totalorder %s23, 1
      %p83 = scmp.ne.s32.totalorder %s78, %s80
      %p84 = scmp.eq.s32.totalorder %s23, 0
      %p85 = por %p83, %p84
      %p86 = scmp.ne.s32.totalorder %s78, %s80
      %p87 = scmp.eq.s32.totalorder %s28, 1
      %p88 = por %p86, %p87
      %p89 = scmp.ne.s32.totalorder %s80, %s81
      %p90 = scmp.eq.s32.totalorder %s28, 0
      %p91 = por %p89, %p90
      %p92 = scmp.ne.s32.totalorder %s80, %s81
      %p93 = scmp.eq.s32.totalorder %s29, 1
      %p94 = por %p92, %p93
      %p96 = scmp.ne.s32.totalorder %s81, %s95
      %p97 = scmp.eq.s32.totalorder %s29, 0
      %p98 = por %p96, %p97
      %s100 = sadd.s32 %s99, 1
      %p103 = scmp.eq.s32.totalorder %s23, 1
      %p104 = scmp.ne.s32.totalorder %s99, %s101
      %p105 = scmp.eq.s32.totalorder %s23, 0
      %p106 = por %p104, %p105
      %p107 = scmp.ne.s32.totalorder %s99, %s101
      %p108 = scmp.eq.s32.totalorder %s28, 1
      %p109 = por %p107, %p108
      %p110 = scmp.ne.s32.totalorder %s101, %s102
      %p111 = scmp.eq.s32.totalorder %s28, 0
      %p112 = por %p110, %p111
      %p113 = scmp.ne.s32.totalorder %s101, %s102
      %p114 = scmp.eq.s32.totalorder %s29, 1
      %p115 = por %p113, %p114
      %p117 = scmp.ne.s32.totalorder %s102, %s116
      %p118 = scmp.eq.s32.totalorder %s29, 0
      %p119 = por %p117, %p118
      %s121 = sadd.s32 %s120, 1
      %p124 = scmp.eq.s32.totalorder %s23, 1
      %p125 = scmp.ne.s32.totalorder %s120, %s122
      %p126 = scmp.eq.s32.totalorder %s23, 0
      %p127 = por %p125, %p126
      %p128 = scmp.ne.s32.totalorder %s120, %s122
      %p129 = scmp.eq.s32.totalorder %s28, 1
      %p130 = por %p128, %p129
      %p131 = scmp.ne.s32.totalorder %s122, %s123
      %p132 = scmp.eq.s32.totalorder %s28, 0
      %p133 = por %p131, %p132
      %p134 = scmp.ne.s32.totalorder %s122, %s123
      %p135 = scmp.eq.s32.totalorder %s29, 1
      %p136 = por %p134, %p135
      %p138 = scmp.ne.s32.totalorder %s123, %s137
      %p139 = scmp.eq.s32.totalorder %s29, 0
      %p140 = por %p138, %p139
      %s142 = sadd.s32 %s141, 1
      %p145 = scmp.eq.s32.totalorder %s23, 1
      %p146 = scmp.ne.s32.totalorder %s141, %s143
      %p147 = scmp.eq.s32.totalorder %s23, 0
      %p148 = por %p146, %p147
      %p149 = scmp.ne.s32.totalorder %s141, %s143
      %p150 = scmp.eq.s32.totalorder %s28, 1
      %p151 = por %p149, %p150
      %p152 = scmp.ne.s32.totalorder %s143, %s144
      %p153 = scmp.eq.s32.totalorder %s28, 0
      %p154 = por %p152, %p153
      %p155 = scmp.ne.s32.totalorder %s143, %s144
      %p156 = scmp.eq.s32.totalorder %s29, 1
      %p157 = por %p155, %p156
      %p159 = scmp.ne.s32.totalorder %s144, %s158
      %p160 = scmp.eq.s32.totalorder %s29, 0
      %p161 = por %p159, %p160
      %s163 = sadd.s32 %s162, 1
      %p166 = scmp.eq.s32.totalorder %s23, 1
      %p167 = scmp.ne.s32.totalorder %s162, %s164
      %p168 = scmp.eq.s32.totalorder %s23, 0
      %p169 = por %p167, %p168
      %p170 = scmp.ne.s32.totalorder %s162, %s164
      %p171 = scmp.eq.s32.totalorder %s28, 1
      %p172 = por %p170, %p171
      %p173 = scmp.ne.s32.totalorder %s164, %s165
      %p174 = scmp.eq.s32.totalorder %s28, 0
      %p175 = por %p173, %p174
      %p176 = scmp.ne.s32.totalorder %s164, %s165
      %p177 = scmp.eq.s32.totalorder %s29, 1
      %p178 = por %p176, %p177
      %p180 = scmp.ne.s32.totalorder %s165, %s179
      %p181 = scmp.eq.s32.totalorder %s29, 0
      %p182 = por %p180, %p181
      %s184 = sadd.s32 %s183, 1
      %p187 = scmp.eq.s32.totalorder %s23, 1
      %p188 = scmp.ne.s32.totalorder %s183, %s185
      %p189 = scmp.eq.s32.totalorder %s23, 0
      %p190 = por %p188, %p189
      %p191 = scmp.ne.s32.totalorder %s183, %s185
      %p192 = scmp.eq.s32.totalorder %s28, 1
      %p193 = por %p191, %p192
      %p194 = scmp.ne.s32.totalorder %s185, %s186
      %p195 = scmp.eq.s32.totalorder %s28, 0
      %p196 = por %p194, %p195
      %p197 = scmp.ne.s32.totalorder %s185, %s186
      %p198 = scmp.eq.s32.totalorder %s29, 1
      %p199 = por %p197, %p198
      %p201 = scmp.ne.s32.totalorder %s186, %s200
      %p202 = scmp.eq.s32.totalorder %s29, 0
      %p203 = por %p201, %p202
      %s205 = sadd.s32 %s204, 1
      %p208 = scmp.eq.s32.totalorder %s23, 1
      %p209 = scmp.ne.s32.totalorder %s204, %s206
      %p210 = scmp.eq.s32.totalorder %s23, 0
      %p211 = por %p209, %p210
      %p212 = scmp.ne.s32.totalorder %s204, %s206
      %p213 = scmp.eq.s32.totalorder %s28, 1
      %p214 = por %p212, %p213
      %p215 = scmp.ne.s32.totalorder %s206, %s207
      %p216 = scmp.eq.s32.totalorder %s28, 0
      %p217 = por %p215, %p216
      %p218 = scmp.ne.s32.totalorder %s206, %s207
      %p219 = scmp.eq.s32.totalorder %s29, 1
      %p220 = por %p218, %p219
      %p222 = scmp.ne.s32.totalorder %s207, %s221
      %p223 = scmp.eq.s32.totalorder %s29, 0
      %p224 = por %p222, %p223
      %s225 = ssub.s32 %s23, %s30
      %p226 = scmp.eq.s32.totalorder %s225, 0
      %s228 = sadd.s32 %s227, 1
      %s229 = scalar_select %p226, %s227, %s228
      %p232 = pneg %p226
      %p233 = scmp.eq.s32.totalorder %s23, 1
      %p234 = por %p232, %p233
      %p235 = scmp.ne.s32.totalorder %s227, %s230
      %p236 = scmp.eq.s32.totalorder %s23, 0
      %p237 = por %p235, %p236
      %p238 = scmp.ne.s32.totalorder %s227, %s230
      %p239 = scmp.eq.s32.totalorder %s28, 1
      %p240 = por %p238, %p239
      %p241 = scmp.ne.s32.totalorder %s230, %s231
      %p242 = scmp.eq.s32.totalorder %s28, 0
      %p243 = por %p241, %p242
      %p244 = scmp.ne.s32.totalorder %s230, %s231
      %p245 = scmp.eq.s32.totalorder %s29, 1
      %p246 = por %p244, %p245
      %p248 = scmp.ne.s32.totalorder %s231, %s247
      %p249 = scmp.eq.s32.totalorder %s29, 0
      %p250 = por %p248, %p249
      %p251 = scmp.le.s32.totalorder 1, %s23
      %p252 = scmp.lt.s32.totalorder %s23, 3
      %p253 = pnand %p251, %p252
      %p254 = pneg %p253
      // Predicated region
      $region9: #{net_forward_impl.1} parent=5 // pred_check
        _
      $region10: #{net_forward_impl.1} parent=5 // pred_check_branch
        %256 = sbr.rel (%p253) target = $region12
      $region11: #{net_forward_impl.1} parent=5 // pred_region
        %s257 = ssub.s32 %s23, 1
        // Predicated region
        $region13: #{net_forward_impl.1} parent=11 // pred_check
          %p258 = pneg %p70
        $region14: #{net_forward_impl.1} parent=11 // pred_check_branch
          %260 = sbr.rel (%p258) target = $region16
        $region15: #{net_forward_impl.1} parent=11 // pred_region
          %s262 = ssub.s32 2560, 2560
          %263 = vsyncadd [#allocation6], %s262
          %s264 = sshll.u32 [#allocation5], 4
          %s265 = int_to_ptr.vmem [resolvable:$true] %s264
          %270 = dma.hbm_to_vmem [thread:$0]  %s1, 2560, %s265, [#allocation6], 128, 128, 8
        $region16: #{net_forward_impl.1} parent=11 // pred_fallthru
          _
        // Predicated region
        $region17: #{net_forward_impl.1} parent=11 // pred_check
          %p271 = pneg %p91
        $region18: #{net_forward_impl.1} parent=11 // pred_check_branch
          %273 = sbr.rel (%p271) target = $region20
        $region19: #{net_forward_impl.1} parent=11 // pred_region
          _
        $region20: #{net_forward_impl.1} parent=11 // pred_fallthru
          _
        // Predicated region
        $region21: #{net_forward_impl.1} parent=11 // pred_check
          %p274 = pneg %p112
        $region22: #{net_forward_impl.1} parent=11 // pred_check_branch
          %276 = sbr.rel (%p274) target = $region24
        $region23: #{net_forward_impl.1} parent=11 // pred_region
          %s278 = ssub.s32 10240, 10240
          %279 = vsyncadd [#allocation6], %s278
          %s280 = sshll.u32 [#allocation7], 4
          %s281 = int_to_ptr.vmem [resolvable:$true] %s280
          %286 = dma.hbm_to_vmem [thread:$0]  %s3, 10240, %s281, [#allocation6], 128, 128, 8
        $region24: #{net_forward_impl.1} parent=11 // pred_fallthru
          _
        // Predicated region
        $region25: #{net_forward_impl.1} parent=11 // pred_check
          %p287 = pneg %p133
        $region26: #{net_forward_impl.1} parent=11 // pred_check_branch
          %289 = sbr.rel (%p287) target = $region28
        $region27: #{net_forward_impl.1} parent=11 // pred_region
          _
        $region28: #{net_forward_impl.1} parent=11 // pred_fallthru
          _
        // Predicated region
        $region29: #{net_forward_impl.1} parent=11 // pred_check
          %p290 = pneg %p154
        $region30: #{net_forward_impl.1} parent=11 // pred_check_branch
          %292 = sbr.rel (%p290) target = $region32
        $region31: #{net_forward_impl.1} parent=11 // pred_region
          %s294 = ssub.s32 4096, 4096
          %295 = vsyncadd [#allocation9], %s294
          %s296 = sshll.u32 [#allocation8], 4
          %s297 = int_to_ptr.vmem [resolvable:$true] %s296
          %302 = dma.hbm_to_vmem [thread:$0]  %s5, 4096, %s297, [#allocation9], 64, 64, 4
        $region32: #{net_forward_impl.1} parent=11 // pred_fallthru
          _
        // Predicated region
        $region33: #{net_forward_impl.1} parent=11 // pred_check
          %p303 = pneg %p175
        $region34: #{net_forward_impl.1} parent=11 // pred_check_branch
          %305 = sbr.rel (%p303) target = $region36
        $region35: #{net_forward_impl.1} parent=11 // pred_region
          _
        $region36: #{net_forward_impl.1} parent=11 // pred_fallthru
          _
        // Predicated region
        $region37: #{net_forward_impl.1} parent=11 // pred_check
          %p306 = pneg %p196
        $region38: #{net_forward_impl.1} parent=11 // pred_check_branch
          %308 = sbr.rel (%p306) target = $region40
        $region39: #{net_forward_impl.1} parent=11 // pred_region
          %s310 = ssub.s32 1024, 1024
          %311 = vsyncadd [#allocation9], %s310
          %s312 = sshll.u32 [#allocation10], 4
          %s313 = int_to_ptr.vmem [resolvable:$true] %s312
          %318 = dma.hbm_to_vmem [thread:$0]  %s7, 1024, %s313, [#allocation9], 64, 64, 4
        $region40: #{net_forward_impl.1} parent=11 // pred_fallthru
          _
        // Predicated region
        $region41: #{net_forward_impl.1} parent=11 // pred_check
          %p319 = pneg %p217
        $region42: #{net_forward_impl.1} parent=11 // pred_check_branch
          %321 = sbr.rel (%p319) target = $region44
        $region43: #{net_forward_impl.1} parent=11 // pred_region
          _
        $region44: #{net_forward_impl.1} parent=11 // pred_fallthru
          _
      $region12: #{net_forward_impl.1} parent=5 // pred_fallthru
        _
      %p322 = scmp.lt.s32.totalorder %s23, 2
      // Predicated region
      $region45: #{net_forward_impl.1} parent=5 // pred_check
        %p323 = pneg %p322
      $region46: #{net_forward_impl.1} parent=5 // pred_check_branch
        %325 = sbr.rel (%p323) target = $region48
      $region47: #{net_forward_impl.1} parent=5 // pred_region
        // Predicated region
        $region49: #{net_forward_impl.1} parent=47 // pred_check
          %p326 = pneg %p43
        $region50: #{net_forward_impl.1} parent=47 // pred_check_branch
          %328 = sbr.rel (%p326) target = $region52
        $region51: #{net_forward_impl.1} parent=47 // pred_region
          %s329 = sand.u32 %s33, 1
          %s330 = scalar_lea.sflag [#allocation3], %s329
          %s331 = sand.u32 %s33, 1
          %s332 = smul.addr %s331, 224
          %s333 = scalar_lea.vmem [#allocation2], %s332
          %s335 = ssub.s32 3584, 3584
          %336 = vsyncadd %s330, %s335
          %s337 = smul.addr %s23, 128
          %s338 = scalar_lea.hbm %s0, %s337
          %s339 = sshll.u32 %s333, 4
          %s340 = int_to_ptr.vmem [resolvable:$true] %s339
          %345 = dma.hbm_to_vmem [thread:$0]  %s338, 3584, %s340, %s330, 256, 128, 8
        $region52: #{net_forward_impl.1} parent=47 // pred_fallthru
          _
      $region48: #{net_forward_impl.1} parent=5 // pred_fallthru
        _
      %p346 = scmp.le.s32.totalorder 1, %s23
      %p347 = scmp.lt.s32.totalorder %s23, 3
      %p348 = pnand %p346, %p347
      %p349 = pneg %p348
      // Predicated region
      $region53: #{net_forward_impl.1} parent=5 // pred_check
        _
      $region54: #{net_forward_impl.1} parent=5 // pred_check_branch
        %351 = sbr.rel (%p348) target = $region56
      $region55: #{net_forward_impl.1} parent=5 // pred_region
        %s352 = ssub.s32 %s23, 1
        %s353 = sand.u32 %s36, 1
        %s354 = scalar_lea.sflag [#allocation3], %s353
        %s355 = sand.u32 %s36, 1
        %s356 = smul.addr %s355, 224
        %s357 = scalar_lea.vmem [#allocation2], %s356
        // Predicated region
        $region57: #{net_forward_impl.1} parent=55 // pred_check
          %p358 = pneg %p49
        $region58: #{net_forward_impl.1} parent=55 // pred_check_branch
          %360 = sbr.rel (%p358) target = $region60
        $region59: #{net_forward_impl.1} parent=55 // pred_region
          %361 = dma.done %s354, 3584
        $region60: #{net_forward_impl.1} parent=55 // pred_fallthru
          _
        // Predicated region
        $region61: #{net_forward_impl.1} parent=55 // pred_check
          %p362 = pneg %p70
        $region62: #{net_forward_impl.1} parent=55 // pred_check_branch
          %364 = sbr.rel (%p362) target = $region64
        $region63: #{net_forward_impl.1} parent=55 // pred_region
          %365 = dma.done [#allocation6], 2560
        $region64: #{net_forward_impl.1} parent=55 // pred_fallthru
          _
        // Predicated region
        $region65: #{net_forward_impl.1} parent=55 // pred_check
          %p366 = pneg %p112
        $region66: #{net_forward_impl.1} parent=55 // pred_check_branch
          %368 = sbr.rel (%p366) target = $region68
        $region67: #{net_forward_impl.1} parent=55 // pred_region
          %369 = dma.done [#allocation6], 10240
        $region68: #{net_forward_impl.1} parent=55 // pred_fallthru
          _
        // Predicated region
        $region69: #{net_forward_impl.1} parent=55 // pred_check
          %p370 = pneg %p154
        $region70: #{net_forward_impl.1} parent=55 // pred_check_branch
          %372 = sbr.rel (%p370) target = $region72
        $region71: #{net_forward_impl.1} parent=55 // pred_region
          %373 = dma.done [#allocation9], 4096
        $region72: #{net_forward_impl.1} parent=55 // pred_fallthru
          _
        // Predicated region
        $region73: #{net_forward_impl.1} parent=55 // pred_check
          %p374 = pneg %p196
        $region74: #{net_forward_impl.1} parent=55 // pred_check_branch
          %376 = sbr.rel (%p374) target = $region76
        $region75: #{net_forward_impl.1} parent=55 // pred_region
          %377 = dma.done [#allocation9], 1024
        $region76: #{net_forward_impl.1} parent=55 // pred_fallthru
          _
        %s378 = sand.u32 %s36, 1
        %s379 = scalar_lea.sflag [#allocation3], %s378
        %s380 = sand.u32 %s36, 1
        %s381 = smul.addr %s380, 224
        %s382 = scalar_lea.vmem [#allocation2], %s381
        %p383 = pneg %p49
        %p384 = pneg %p46
        %p385 = pneg %p70
        %p386 = pneg %p67
        %p387 = pneg %p91
        %p388 = pneg %p88
        %p389 = pneg %p112
        %p390 = pneg %p109
        %p391 = pneg %p133
        %p392 = pneg %p130
        %p393 = pneg %p154
        %p394 = pneg %p151
        %p395 = pneg %p175
        %p396 = pneg %p172
        %p397 = pneg %p196
        %p398 = pneg %p193
        %p399 = pneg %p217
        %p400 = pneg %p214
        %p401 = pneg %p243
        %p402 = pneg %p240
        %s403 = sand.u32 %s230, 1
        %s404 = scalar_lea.sflag [#allocation4], %s403
        %s405 = sand.u32 %s230, 1
        %s406 = smul.addr %s405, 8
        %s407 = scalar_lea.vmem [#allocation11], %s406
        %v409 = vld [vmem:[%s357] sm:$0xff]
        %v410 = vld [vmem:[%s357 + $0x8] sm:$0xff]
        %v411 = vld [vmem:[%s357 + $0x10] sm:$0xff]
        %v412 = vld [vmem:[%s357 + $0x18] sm:$0xff]
        %v413 = vld [vmem:[%s357 + $0x20] sm:$0xff]
        %v414 = vld [vmem:[%s357 + $0x28] sm:$0xff]
        %v415 = vld [vmem:[%s357 + $0x30] sm:$0xff]
        %v416 = vld [vmem:[%s357 + $0x38] sm:$0xff]
        %v417 = vld [vmem:[%s357 + $0x40] sm:$0xff]
        %v418 = vld [vmem:[%s357 + $0x48] sm:$0xff]
        %v419 = vld [vmem:[%s357 + $0x50] sm:$0xff]
        %v420 = vld [vmem:[%s357 + $0x58] sm:$0xff]
        %v421 = vld [vmem:[%s357 + $0x60] sm:$0xff]
        %v422 = vld [vmem:[%s357 + $0x68] sm:$0xff]
        %v423 = vld [vmem:[%s357 + $0x70] sm:$0xff]
        %v424 = vld [vmem:[%s357 + $0x78] sm:$0xff]
        %v425 = vld [vmem:[%s357 + $0x80] sm:$0xff]
        %v426 = vld [vmem:[%s357 + $0x88] sm:$0xff]
        %v427 = vld [vmem:[%s357 + $0x90] sm:$0xff]
        %v428 = vld [vmem:[%s357 + $0x98] sm:$0xff]
        %v429 = vld [vmem:[%s357 + $0xa0] sm:$0xff]
        %v430 = vld [vmem:[%s357 + $0xa8] sm:$0xff]
        %v431 = vld [vmem:[%s357 + $0xb0] sm:$0xff]
        %v432 = vld [vmem:[%s357 + $0xb8] sm:$0xff]
        %v433 = vld [vmem:[%s357 + $0xc0] sm:$0xff]
        %v434 = vld [vmem:[%s357 + $0xc8] sm:$0xff]
        %v435 = vld [vmem:[%s357 + $0xd0] sm:$0xff]
        %v436 = vld [vmem:[%s357 + $0xd8] sm:$0xff]
        %v437 = vld [vmem:[%s2] sm:$0x3]
        %v438 = vpack.c.bf16 %v410, %v409
        %v439 = vpack.c.bf16 %v412, %v411
        %v440 = vpack.c.bf16 %v414, %v413
        %v441 = vpack.c.bf16 %v416, %v415
        %v442 = vpack.c.bf16 %v418, %v417
        %v443 = vpack.c.bf16 %v420, %v419
        %v444 = vpack.c.bf16 %v422, %v421
        %v445 = vpack.c.bf16 %v424, %v423
        %v446 = vpack.c.bf16 %v426, %v425
        %v447 = vpack.c.bf16 %v428, %v427
        %v448 = vpack.c.bf16 %v430, %v429
        %v449 = vpack.c.bf16 %v432, %v431
        %v450 = vld [vmem:[#allocation5] sm:$0xff]
        %v451 = vld [vmem:[#allocation5 + $0x8] sm:$0xff]
        %v452 = vld [vmem:[#allocation5 + $0x10] sm:$0xff]
        %v453 = vld [vmem:[#allocation5 + $0x18] sm:$0x33]
        %v458 = vunpack.c.l.b16 %v450
        %v459 = vunpack.c.h.b16 %v450
        %v460 = vunpack.c.l.b16 %v451
        %v461 = vunpack.c.h.b16 %v451
        %v462 = vunpack.c.l.b16 %v452
        %v463 = vunpack.c.h.b16 %v452
        %v464 = vunpack.c.l.b16 %v453
        %v465 = vunpack.c.h.b16 %v453
        %v466 = vpack.c.b16 %v460, %v458
        %v467 = vpack.c.b16 %v461, %v459
        %v468 = vpack.c.b16 %v464, %v462
        %v469 = vpack.c.b16 %v465, %v463
        %vm472 = vcmask 228352
        %v474 = vsel %vm472, %v438, 0
        %v477 = vsel %vm472, %v439, 0
        %v480 = vsel %vm472, %v440, 0
        %v483 = vsel %vm472, %v441, 0
        %v486 = vsel %vm472, %v442, 0
        %v489 = vsel %vm472, %v443, 0
        %v492 = vsel %vm472, %v444, 0
        %v495 = vsel %vm472, %v445, 0
        %v498 = vsel %vm472, %v446, 0
        %v501 = vsel %vm472, %v447, 0
        %v504 = vsel %vm472, %v448, 0
        %v507 = vsel %vm472, %v449, 0
        %vm509 = vcmask 1045504
        %v511 = vsel %vm509, %v468, 0
        %v514 = vsel %vm509, %v469, 0
        %516 = vmatprep.subr.bf16.mxu0 0
        %517 = vmatpush1.bf16.msra.mxu0 0
        %518 = vmatprep.subr.bf16.mxu0 0
        %519 = vmatpush1.bf16.msra.mxu0 0
        %520 = vmatprep.subr.bf16.mxu0 0
        %521 = vmatpush1.bf16.msra.mxu0 0
        %522 = vmatprep.subr.bf16.mxu0 0
        %523 = vmatpush1.bf16.msra.mxu0 0
        %524 = vmatprep.subr.bf16.mxu0 0
        %525 = vmatpush1.bf16.msra.mxu0 0
        %526 = vmatprep.subr.bf16.mxu0 0
        %527 = vmatpush1.bf16.msra.mxu0 0
        %528 = vmatprep.subr.bf16.mxu0 %v514
        %529 = vmatpush1.bf16.msra.mxu0 %v511
        %530 = vmatprep.subr.bf16.mxu0 %v467
        %531 = vmatpush1.bf16.msra.mxu0 %v466
        %532 = vmatprep.subr.bf16.mxu0 0
        %533 = vmatpush2.bf16.msra.mxu0 0
        %534 = vmatprep.subr.bf16.mxu0 0
        %535 = vmatpush2.bf16.msra.mxu0 0
        %536 = vmatprep.subr.bf16.mxu0 0
        %537 = vmatpush2.bf16.msra.mxu0 0
        %538 = vmatprep.subr.bf16.mxu0 0
        %539 = vmatpush2.bf16.msra.mxu0 0
        %540 = vmatprep.subr.bf16.mxu0 0
        %541 = vmatpush2.bf16.msra.mxu0 0
        %542 = vmatprep.subr.bf16.mxu0 0
        %543 = vmatpush2.bf16.msra.mxu0 0
        %544 = vmatprep.subr.bf16.mxu0 0
        %545 = vmatpush2.bf16.msra.mxu0 0
        %546 = vmatprep.subr.bf16.mxu0 0
        %547 = vmatpush2.bf16.msra.mxu0 0
        %548 = vmatprep.mubr.bf16.mxu0 0
        %549 = vmatmul.mubr.bf16.gmra.mxu0 %v474
        %v550 = vpop.f32.mrf.mxu0
        %v551 = vadd.f32 0.0, %v550
        %v552 = vpop.f32.mrf.mxu0
        %v553 = vadd.f32 0.0, %v552
        %v554 = vpop.f32.mrf.mxu0
        %v555 = vadd.f32 0.0, %v554
        %v556 = vpop.f32.mrf.mxu0
        %v557 = vadd.f32 0.0, %v556
        %558 = vmatprep.mubr.bf16.mxu0 0
        %559 = vmatmul.mubr.bf16.gmra.mxu0 %v477
        %v560 = vpop.f32.mrf.mxu0
        %v561 = vadd.f32 0.0, %v560
        %v562 = vpop.f32.mrf.mxu0
        %v563 = vadd.f32 0.0, %v562
        %v564 = vpop.f32.mrf.mxu0
        %v565 = vadd.f32 0.0, %v564
        %v566 = vpop.f32.mrf.mxu0
        %v567 = vadd.f32 0.0, %v566
        %568 = vmatprep.mubr.bf16.mxu0 0
        %569 = vmatmul.mubr.bf16.gmra.mxu0 %v480
        %v570 = vpop.f32.mrf.mxu0
        %v571 = vadd.f32 0.0, %v570
        %v572 = vpop.f32.mrf.mxu0
        %v573 = vadd.f32 0.0, %v572
        %v574 = vpop.f32.mrf.mxu0
        %v575 = vadd.f32 0.0, %v574
        %v576 = vpop.f32.mrf.mxu0
        %v577 = vadd.f32 0.0, %v576
        %578 = vmatprep.mubr.bf16.mxu0 0
        %579 = vmatmul.mubr.bf16.gmra.mxu0 %v483
        %v580 = vpop.f32.mrf.mxu0
        %v581 = vadd.f32 0.0, %v580
        %v582 = vpop.f32.mrf.mxu0
        %v583 = vadd.f32 0.0, %v582
        %v584 = vpop.f32.mrf.mxu0
        %v585 = vadd.f32 0.0, %v584
        %v586 = vpop.f32.mrf.mxu0
        %v587 = vadd.f32 0.0, %v586
        %588 = vmatprep.mubr.bf16.mxu0 0
        %589 = vmatmul.mubr.bf16.gmra.mxu0 %v486
        %v590 = vpop.f32.mrf.mxu0
        %v591 = vadd.f32 0.0, %v590
        %v592 = vpop.f32.mrf.mxu0
        %v593 = vadd.f32 0.0, %v592
        %v594 = vpop.f32.mrf.mxu0
        %v595 = vadd.f32 0.0, %v594
        %v596 = vpop.f32.mrf.mxu0
        %v597 = vadd.f32 0.0, %v596
        %598 = vmatprep.mubr.bf16.mxu0 0
        %599 = vmatmul.mubr.bf16.gmra.mxu0 %v489
        %v600 = vpop.f32.mrf.mxu0
        %v601 = vadd.f32 0.0, %v600
        %v602 = vpop.f32.mrf.mxu0
        %v603 = vadd.f32 0.0, %v602
        %v604 = vpop.f32.mrf.mxu0
        %v605 = vadd.f32 0.0, %v604
        %v606 = vpop.f32.mrf.mxu0
        %v607 = vadd.f32 0.0, %v606
        %608 = vmatprep.mubr.bf16.mxu0 0
        %609 = vmatmul.mubr.bf16.gmra.mxu0 %v492
        %v610 = vpop.f32.mrf.mxu0
        %v611 = vadd.f32 0.0, %v610
        %v612 = vpop.f32.mrf.mxu0
        %v613 = vadd.f32 0.0, %v612
        %v614 = vpop.f32.mrf.mxu0
        %v615 = vadd.f32 0.0, %v614
        %v616 = vpop.f32.mrf.mxu0
        %v617 = vadd.f32 0.0, %v616
        %618 = vmatprep.mubr.bf16.mxu0 0
        %619 = vmatmul.mubr.bf16.gmra.mxu0 %v495
        %v620 = vpop.f32.mrf.mxu0
        %v621 = vadd.f32 0.0, %v620
        %v622 = vpop.f32.mrf.mxu0
        %v623 = vadd.f32 0.0, %v622
        %v624 = vpop.f32.mrf.mxu0
        %v625 = vadd.f32 0.0, %v624
        %v626 = vpop.f32.mrf.mxu0
        %v627 = vadd.f32 0.0, %v626
        %628 = vmatprep.mubr.bf16.mxu0 0
        %629 = vmatmul.mubr.bf16.gmra.mxu0 %v498
        %v630 = vpop.f32.mrf.mxu0
        %v631 = vadd.f32 0.0, %v630
        %v632 = vpop.f32.mrf.mxu0
        %v633 = vadd.f32 0.0, %v632
        %v634 = vpop.f32.mrf.mxu0
        %v635 = vadd.f32 0.0, %v634
        %v636 = vpop.f32.mrf.mxu0
        %v637 = vadd.f32 0.0, %v636
        %638 = vmatprep.mubr.bf16.mxu0 0
        %639 = vmatmul.mubr.bf16.gmra.mxu0 %v501
        %v640 = vpop.f32.mrf.mxu0
        %v641 = vadd.f32 0.0, %v640
        %v642 = vpop.f32.mrf.mxu0
        %v643 = vadd.f32 0.0, %v642
        %v644 = vpop.f32.mrf.mxu0
        %v645 = vadd.f32 0.0, %v644
        %v646 = vpop.f32.mrf.mxu0
        %v647 = vadd.f32 0.0, %v646
        %648 = vmatprep.mubr.bf16.mxu0 0
        %649 = vmatmul.mubr.bf16.gmra.mxu0 %v504
        %v650 = vpop.f32.mrf.mxu0
        %v651 = vadd.f32 0.0, %v650
        %v652 = vpop.f32.mrf.mxu0
        %v653 = vadd.f32 0.0, %v652
        %v654 = vpop.f32.mrf.mxu0
        %v655 = vadd.f32 0.0, %v654
        %v656 = vpop.f32.mrf.mxu0
        %v657 = vadd.f32 0.0, %v656
        %658 = vmatprep.mubr.bf16.mxu0 0
        %659 = vmatmul.mubr.bf16.gmra.mxu0 %v507
        %v660 = vpop.f32.mrf.mxu0
        %v661 = vadd.f32 0.0, %v660
        %v662 = vpop.f32.mrf.mxu0
        %v663 = vadd.f32 0.0, %v662
        %v664 = vpop.f32.mrf.mxu0
        %v665 = vadd.f32 0.0, %v664
        %v666 = vpop.f32.mrf.mxu0
        %v667 = vadd.f32 0.0, %v666
        %668 = vdwg.mxu0
        %v670 = vlaneseq
        %v671 = vshrl.u32 %v670, 7
        %v672 = vsub.s32 0, %v671
        %v673 = vrot.slane %v437, %v672
        %v674 = vlaneseq
        %v675 = vshrl.u32 %v674, 7
        %v676 = vsub.s32 1, %v675
        %v677 = vrot.slane %v437, %v676
        %v680 = vadd.f32 %v673, %v551
        %v681 = vadd.f32 %v677, %v553
        %v682 = vadd.f32 %v673, %v555
        %v683 = vadd.f32 %v677, %v557
        %v684 = vadd.f32 %v673, %v561
        %v685 = vadd.f32 %v677, %v563
        %v686 = vadd.f32 %v673, %v565
        %v687 = vadd.f32 %v677, %v567
        %v688 = vadd.f32 %v673, %v571
        %v689 = vadd.f32 %v677, %v573
        %v690 = vadd.f32 %v673, %v575
        %v691 = vadd.f32 %v677, %v577
        %v692 = vadd.f32 %v673, %v581
        %v693 = vadd.f32 %v677, %v583
        %v694 = vadd.f32 %v673, %v585
        %v695 = vadd.f32 %v677, %v587
        %v696 = vadd.f32 %v673, %v591
        %v697 = vadd.f32 %v677, %v593
        %v698 = vadd.f32 %v673, %v595
        %v699 = vadd.f32 %v677, %v597
        %v700 = vadd.f32 %v673, %v601
        %v701 = vadd.f32 %v677, %v603
        %v702 = vadd.f32 %v673, %v605
        %v703 = vadd.f32 %v677, %v607
        %v704 = vadd.f32 %v673, %v611
        %v705 = vadd.f32 %v677, %v613
        %v706 = vadd.f32 %v673, %v615
        %v707 = vadd.f32 %v677, %v617
        %v708 = vadd.f32 %v673, %v621
        %v709 = vadd.f32 %v677, %v623
        %v710 = vadd.f32 %v673, %v625
        %v711 = vadd.f32 %v677, %v627
        %v712 = vadd.f32 %v673, %v631
        %v713 = vadd.f32 %v677, %v633
        %v714 = vadd.f32 %v673, %v635
        %v715 = vadd.f32 %v677, %v637
        %v716 = vadd.f32 %v673, %v641
        %v717 = vadd.f32 %v677, %v643
        %v718 = vadd.f32 %v673, %v645
        %v719 = vadd.f32 %v677, %v647
        %v720 = vadd.f32 %v673, %v651
        %v721 = vadd.f32 %v677, %v653
        %v722 = vadd.f32 %v673, %v655
        %v723 = vadd.f32 %v677, %v657
        %v724 = vadd.f32 %v673, %v661
        %v725 = vadd.f32 %v677, %v663
        %v726 = vadd.f32 %v673, %v665
        %v727 = vadd.f32 %v677, %v667
        %v728 = vpack.c.bf16 %v411, %v410
        %v729 = vpack.c.bf16 %v413, %v412
        %v730 = vpack.c.bf16 %v415, %v414
        %v731 = vpack.c.bf16 %v417, %v416
        %v732 = vpack.c.bf16 %v419, %v418
        %v733 = vpack.c.bf16 %v421, %v420
        %v734 = vpack.c.bf16 %v423, %v422
        %v735 = vpack.c.bf16 %v425, %v424
        %v736 = vpack.c.bf16 %v427, %v426
        %v737 = vpack.c.bf16 %v429, %v428
        %v738 = vpack.c.bf16 %v431, %v430
        %v739 = vpack.c.bf16 %v433, %v432
        %s740 = scalar_lea.vmem [#allocation5], 32
        %v741 = vld [vmem:[%s740] sm:$0xff]
        %v742 = vld [vmem:[%s740 + $0x8] sm:$0xff]
        %v743 = vld [vmem:[%s740 + $0x10] sm:$0xff]
        %v744 = vld [vmem:[%s740 + $0x18] sm:$0x33]
        %v749 = vunpack.c.l.b16 %v741
        %v750 = vunpack.c.h.b16 %v741
        %v751 = vunpack.c.l.b16 %v742
        %v752 = vunpack.c.h.b16 %v742
        %v753 = vunpack.c.l.b16 %v743
        %v754 = vunpack.c.h.b16 %v743
        %v755 = vunpack.c.l.b16 %v744
        %v756 = vunpack.c.h.b16 %v744
        %v757 = vpack.c.b16 %v751, %v749
        %v758 = vpack.c.b16 %v752, %v750
        %v759 = vpack.c.b16 %v755, %v753
        %v760 = vpack.c.b16 %v756, %v754
        %v764 = vsel %vm472, %v728, 0
        %v767 = vsel %vm472, %v729, 0
        %v770 = vsel %vm472, %v730, 0
        %v773 = vsel %vm472, %v731, 0
        %v776 = vsel %vm472, %v732, 0
        %v779 = vsel %vm472, %v733, 0
        %v782 = vsel %vm472, %v734, 0
        %v785 = vsel %vm472, %v735, 0
        %v788 = vsel %vm472, %v736, 0
        %v791 = vsel %vm472, %v737, 0
        %v794 = vsel %vm472, %v738, 0
        %v797 = vsel %vm472, %v739, 0
        %v800 = vsel %vm509, %v759, 0
        %v803 = vsel %vm509, %v760, 0
        %805 = vmatprep.subr.bf16.mxu0 0
        %806 = vmatpush1.bf16.msra.mxu0 0
        %807 = vmatprep.subr.bf16.mxu0 0
        %808 = vmatpush1.bf16.msra.mxu0 0
        %809 = vmatprep.subr.bf16.mxu0 0
        %810 = vmatpush1.bf16.msra.mxu0 0
        %811 = vmatprep.subr.bf16.mxu0 0
        %812 = vmatpush1.bf16.msra.mxu0 0
        %813 = vmatprep.subr.bf16.mxu0 0
        %814 = vmatpush1.bf16.msra.mxu0 0
        %815 = vmatprep.subr.bf16.mxu0 0
        %816 = vmatpush1.bf16.msra.mxu0 0
        %817 = vmatprep.subr.bf16.mxu0 %v803
        %818 = vmatpush1.bf16.msra.mxu0 %v800
        %819 = vmatprep.subr.bf16.mxu0 %v758
        %820 = vmatpush1.bf16.msra.mxu0 %v757
        %821 = vmatprep.subr.bf16.mxu0 0
        %822 = vmatpush2.bf16.msra.mxu0 0
        %823 = vmatprep.subr.bf16.mxu0 0
        %824 = vmatpush2.bf16.msra.mxu0 0
        %825 = vmatprep.subr.bf16.mxu0 0
        %826 = vmatpush2.bf16.msra.mxu0 0
        %827 = vmatprep.subr.bf16.mxu0 0
        %828 = vmatpush2.bf16.msra.mxu0 0
        %829 = vmatprep.subr.bf16.mxu0 0
        %830 = vmatpush2.bf16.msra.mxu0 0
        %831 = vmatprep.subr.bf16.mxu0 0
        %832 = vmatpush2.bf16.msra.mxu0 0
        %833 = vmatprep.subr.bf16.mxu0 0
        %834 = vmatpush2.bf16.msra.mxu0 0
        %835 = vmatprep.subr.bf16.mxu0 0
        %836 = vmatpush2.bf16.msra.mxu0 0
        %837 = vmatprep.mubr.bf16.mxu0 0
        %838 = vmatmul.mubr.bf16.gmra.mxu0 %v764
        %v839 = vpop.f32.mrf.mxu0
        %v840 = vadd.f32 0.0, %v839
        %v841 = vpop.f32.mrf.mxu0
        %v842 = vadd.f32 0.0, %v841
        %v843 = vpop.f32.mrf.mxu0
        %v844 = vadd.f32 0.0, %v843
        %v845 = vpop.f32.mrf.mxu0
        %v846 = vadd.f32 0.0, %v845
        %847 = vmatprep.mubr.bf16.mxu0 0
        %848 = vmatmul.mubr.bf16.gmra.mxu0 %v767
        %v849 = vpop.f32.mrf.mxu0
        %v850 = vadd.f32 0.0, %v849
        %v851 = vpop.f32.mrf.mxu0
        %v852 = vadd.f32 0.0, %v851
        %v853 = vpop.f32.mrf.mxu0
        %v854 = vadd.f32 0.0, %v853
        %v855 = vpop.f32.mrf.mxu0
        %v856 = vadd.f32 0.0, %v855
        %857 = vmatprep.mubr.bf16.mxu0 0
        %858 = vmatmul.mubr.bf16.gmra.mxu0 %v770
        %v859 = vpop.f32.mrf.mxu0
        %v860 = vadd.f32 0.0, %v859
        %v861 = vpop.f32.mrf.mxu0
        %v862 = vadd.f32 0.0, %v861
        %v863 = vpop.f32.mrf.mxu0
        %v864 = vadd.f32 0.0, %v863
        %v865 = vpop.f32.mrf.mxu0
        %v866 = vadd.f32 0.0, %v865
        %867 = vmatprep.mubr.bf16.mxu0 0
        %868 = vmatmul.mubr.bf16.gmra.mxu0 %v773
        %v869 = vpop.f32.mrf.mxu0
        %v870 = vadd.f32 0.0, %v869
        %v871 = vpop.f32.mrf.mxu0
        %v872 = vadd.f32 0.0, %v871
        %v873 = vpop.f32.mrf.mxu0
        %v874 = vadd.f32 0.0, %v873
        %v875 = vpop.f32.mrf.mxu0
        %v876 = vadd.f32 0.0, %v875
        %877 = vmatprep.mubr.bf16.mxu0 0
        %878 = vmatmul.mubr.bf16.gmra.mxu0 %v776
        %v879 = vpop.f32.mrf.mxu0
        %v880 = vadd.f32 0.0, %v879
        %v881 = vpop.f32.mrf.mxu0
        %v882 = vadd.f32 0.0, %v881
        %v883 = vpop.f32.mrf.mxu0
        %v884 = vadd.f32 0.0, %v883
        %v885 = vpop.f32.mrf.mxu0
        %v886 = vadd.f32 0.0, %v885
        %887 = vmatprep.mubr.bf16.mxu0 0
        %888 = vmatmul.mubr.bf16.gmra.mxu0 %v779
        %v889 = vpop.f32.mrf.mxu0
        %v890 = vadd.f32 0.0, %v889
        %v891 = vpop.f32.mrf.mxu0
        %v892 = vadd.f32 0.0, %v891
        %v893 = vpop.f32.mrf.mxu0
        %v894 = vadd.f32 0.0, %v893
        %v895 = vpop.f32.mrf.mxu0
        %v896 = vadd.f32 0.0, %v895
        %897 = vmatprep.mubr.bf16.mxu0 0
        %898 = vmatmul.mubr.bf16.gmra.mxu0 %v782
        %v899 = vpop.f32.mrf.mxu0
        %v900 = vadd.f32 0.0, %v899
        %v901 = vpop.f32.mrf.mxu0
        %v902 = vadd.f32 0.0, %v901
        %v903 = vpop.f32.mrf.mxu0
        %v904 = vadd.f32 0.0, %v903
        %v905 = vpop.f32.mrf.mxu0
        %v906 = vadd.f32 0.0, %v905
        %907 = vmatprep.mubr.bf16.mxu0 0
        %908 = vmatmul.mubr.bf16.gmra.mxu0 %v785
        %v909 = vpop.f32.mrf.mxu0
        %v910 = vadd.f32 0.0, %v909
        %v911 = vpop.f32.mrf.mxu0
        %v912 = vadd.f32 0.0, %v911
        %v913 = vpop.f32.mrf.mxu0
        %v914 = vadd.f32 0.0, %v913
        %v915 = vpop.f32.mrf.mxu0
        %v916 = vadd.f32 0.0, %v915
        %917 = vmatprep.mubr.bf16.mxu0 0
        %918 = vmatmul.mubr.bf16.gmra.mxu0 %v788
        %v919 = vpop.f32.mrf.mxu0
        %v920 = vadd.f32 0.0, %v919
        %v921 = vpop.f32.mrf.mxu0
        %v922 = vadd.f32 0.0, %v921
        %v923 = vpop.f32.mrf.mxu0
        %v924 = vadd.f32 0.0, %v923
        %v925 = vpop.f32.mrf.mxu0
        %v926 = vadd.f32 0.0, %v925
        %927 = vmatprep.mubr.bf16.mxu0 0
        %928 = vmatmul.mubr.bf16.gmra.mxu0 %v791
        %v929 = vpop.f32.mrf.mxu0
        %v930 = vadd.f32 0.0, %v929
        %v931 = vpop.f32.mrf.mxu0
        %v932 = vadd.f32 0.0, %v931
        %v933 = vpop.f32.mrf.mxu0
        %v934 = vadd.f32 0.0, %v933
        %v935 = vpop.f32.mrf.mxu0
        %v936 = vadd.f32 0.0, %v935
        %937 = vmatprep.mubr.bf16.mxu0 0
        %938 = vmatmul.mubr.bf16.gmra.mxu0 %v794
        %v939 = vpop.f32.mrf.mxu0
        %v940 = vadd.f32 0.0, %v939
        %v941 = vpop.f32.mrf.mxu0
        %v942 = vadd.f32 0.0, %v941
        %v943 = vpop.f32.mrf.mxu0
        %v944 = vadd.f32 0.0, %v943
        %v945 = vpop.f32.mrf.mxu0
        %v946 = vadd.f32 0.0, %v945
        %947 = vmatprep.mubr.bf16.mxu0 0
        %948 = vmatmul.mubr.bf16.gmra.mxu0 %v797
        %v949 = vpop.f32.mrf.mxu0
        %v950 = vadd.f32 0.0, %v949
        %v951 = vpop.f32.mrf.mxu0
        %v952 = vadd.f32 0.0, %v951
        %v953 = vpop.f32.mrf.mxu0
        %v954 = vadd.f32 0.0, %v953
        %v955 = vpop.f32.mrf.mxu0
        %v956 = vadd.f32 0.0, %v955
        %957 = vdwg.mxu0
        %v958 = vadd.f32 %v680, %v840
        %v959 = vadd.f32 %v681, %v842
        %v960 = vadd.f32 %v682, %v844
        %v961 = vadd.f32 %v683, %v846
        %v962 = vadd.f32 %v684, %v850
        %v963 = vadd.f32 %v685, %v852
        %v964 = vadd.f32 %v686, %v854
        %v965 = vadd.f32 %v687, %v856
        %v966 = vadd.f32 %v688, %v860
        %v967 = vadd.f32 %v689, %v862
        %v968 = vadd.f32 %v690, %v864
        %v969 = vadd.f32 %v691, %v866
        %v970 = vadd.f32 %v692, %v870
        %v971 = vadd.f32 %v693, %v872
        %v972 = vadd.f32 %v694, %v874
        %v973 = vadd.f32 %v695, %v876
        %v974 = vadd.f32 %v696, %v880
        %v975 = vadd.f32 %v697, %v882
        %v976 = vadd.f32 %v698, %v884
        %v977 = vadd.f32 %v699, %v886
        %v978 = vadd.f32 %v700, %v890
        %v979 = vadd.f32 %v701, %v892
        %v980 = vadd.f32 %v702, %v894
        %v981 = vadd.f32 %v703, %v896
        %v982 = vadd.f32 %v704, %v900
        %v983 = vadd.f32 %v705, %v902
        %v984 = vadd.f32 %v706, %v904
        %v985 = vadd.f32 %v707, %v906
        %v986 = vadd.f32 %v708, %v910
        %v987 = vadd.f32 %v709, %v912
        %v988 = vadd.f32 %v710, %v914
        %v989 = vadd.f32 %v711, %v916
        %v990 = vadd.f32 %v712, %v920
        %v991 = vadd.f32 %v713, %v922
        %v992 = vadd.f32 %v714, %v924
        %v993 = vadd.f32 %v715, %v926
        %v994 = vadd.f32 %v716, %v930
        %v995 = vadd.f32 %v717, %v932
        %v996 = vadd.f32 %v718, %v934
        %v997 = vadd.f32 %v719, %v936
        %v998 = vadd.f32 %v720, %v940
        %v999 = vadd.f32 %v721, %v942
        %v1000 = vadd.f32 %v722, %v944
        %v1001 = vadd.f32 %v723, %v946
        %v1002 = vadd.f32 %v724, %v950
        %v1003 = vadd.f32 %v725, %v952
        %v1004 = vadd.f32 %v726, %v954
        %v1005 = vadd.f32 %v727, %v956
        %v1006 = vpack.c.bf16 %v434, %v433
        %s1007 = scalar_lea.vmem [#allocation5], 64
        %v1008 = vld [vmem:[%s1007] sm:$0xff]
        %v1009 = vld [vmem:[%s1007 + $0x8] sm:$0xff]
        %v1010 = vld [vmem:[%s1007 + $0x10] sm:$0xff]
        %v1011 = vld [vmem:[%s1007 + $0x18] sm:$0x33]
        %v1016 = vunpack.c.l.b16 %v1008
        %v1017 = vunpack.c.h.b16 %v1008
        %v1018 = vunpack.c.l.b16 %v1009
        %v1019 = vunpack.c.h.b16 %v1009
        %v1020 = vunpack.c.l.b16 %v1010
        %v1021 = vunpack.c.h.b16 %v1010
        %v1022 = vunpack.c.l.b16 %v1011
        %v1023 = vunpack.c.h.b16 %v1011
        %v1024 = vpack.c.b16 %v1018, %v1016
        %v1025 = vpack.c.b16 %v1019, %v1017
        %v1026 = vpack.c.b16 %v1022, %v1020
        %v1027 = vpack.c.b16 %v1023, %v1021
        %v1031 = vsel %vm472, %v1006, 0
        %v1034 = vsel %vm509, %v1026, 0
        %v1037 = vsel %vm509, %v1027, 0
        %1039 = vmatprep.subr.bf16.mxu0 0
        %1040 = vmatpush1.bf16.msra.mxu0 0
        %1041 = vmatprep.subr.bf16.mxu0 0
        %1042 = vmatpush1.bf16.msra.mxu0 0
        %1043 = vmatprep.subr.bf16.mxu0 0
        %1044 = vmatpush1.bf16.msra.mxu0 0
        %1045 = vmatprep.subr.bf16.mxu0 0
        %1046 = vmatpush1.bf16.msra.mxu0 0
        %1047 = vmatprep.subr.bf16.mxu0 0
        %1048 = vmatpush1.bf16.msra.mxu0 0
        %1049 = vmatprep.subr.bf16.mxu0 0
        %1050 = vmatpush1.bf16.msra.mxu0 0
        %1051 = vmatprep.subr.bf16.mxu0 %v1037
        %1052 = vmatpush1.bf16.msra.mxu0 %v1034
        %1053 = vmatprep.subr.bf16.mxu0 %v1025
        %1054 = vmatpush1.bf16.msra.mxu0 %v1024
        %1055 = vmatprep.subr.bf16.mxu0 0
        %1056 = vmatpush2.bf16.msra.mxu0 0
        %1057 = vmatprep.subr.bf16.mxu0 0
        %1058 = vmatpush2.bf16.msra.mxu0 0
        %1059 = vmatprep.subr.bf16.mxu0 0
        %1060 = vmatpush2.bf16.msra.mxu0 0
        %1061 = vmatprep.subr.bf16.mxu0 0
        %1062 = vmatpush2.bf16.msra.mxu0 0
        %1063 = vmatprep.subr.bf16.mxu0 0
        %1064 = vmatpush2.bf16.msra.mxu0 0
        %1065 = vmatprep.subr.bf16.mxu0 0
        %1066 = vmatpush2.bf16.msra.mxu0 0
        %1067 = vmatprep.subr.bf16.mxu0 0
        %1068 = vmatpush2.bf16.msra.mxu0 0
        %1069 = vmatprep.subr.bf16.mxu0 0
        %1070 = vmatpush2.bf16.msra.mxu0 0
        %1071 = vmatprep.mubr.bf16.mxu0 0
        %1072 = vmatmul.mubr.bf16.gmra.mxu0 %v477
        %v1073 = vpop.f32.mrf.mxu0
        %v1074 = vadd.f32 0.0, %v1073
        %v1075 = vpop.f32.mrf.mxu0
        %v1076 = vadd.f32 0.0, %v1075
        %v1077 = vpop.f32.mrf.mxu0
        %v1078 = vadd.f32 0.0, %v1077
        %v1079 = vpop.f32.mrf.mxu0
        %v1080 = vadd.f32 0.0, %v1079
        %1081 = vmatprep.mubr.bf16.mxu0 0
        %1082 = vmatmul.mubr.bf16.gmra.mxu0 %v480
        %v1083 = vpop.f32.mrf.mxu0
        %v1084 = vadd.f32 0.0, %v1083
        %v1085 = vpop.f32.mrf.mxu0
        %v1086 = vadd.f32 0.0, %v1085
        %v1087 = vpop.f32.mrf.mxu0
        %v1088 = vadd.f32 0.0, %v1087
        %v1089 = vpop.f32.mrf.mxu0
        %v1090 = vadd.f32 0.0, %v1089
        %1091 = vmatprep.mubr.bf16.mxu0 0
        %1092 = vmatmul.mubr.bf16.gmra.mxu0 %v483
        %v1093 = vpop.f32.mrf.mxu0
        %v1094 = vadd.f32 0.0, %v1093
        %v1095 = vpop.f32.mrf.mxu0
        %v1096 = vadd.f32 0.0, %v1095
        %v1097 = vpop.f32.mrf.mxu0
        %v1098 = vadd.f32 0.0, %v1097
        %v1099 = vpop.f32.mrf.mxu0
        %v1100 = vadd.f32 0.0, %v1099
        %1101 = vmatprep.mubr.bf16.mxu0 0
        %1102 = vmatmul.mubr.bf16.gmra.mxu0 %v486
        %v1103 = vpop.f32.mrf.mxu0
        %v1104 = vadd.f32 0.0, %v1103
        %v1105 = vpop.f32.mrf.mxu0
        %v1106 = vadd.f32 0.0, %v1105
        %v1107 = vpop.f32.mrf.mxu0
        %v1108 = vadd.f32 0.0, %v1107
        %v1109 = vpop.f32.mrf.mxu0
        %v1110 = vadd.f32 0.0, %v1109
        %1111 = vmatprep.mubr.bf16.mxu0 0
        %1112 = vmatmul.mubr.bf16.gmra.mxu0 %v489
        %v1113 = vpop.f32.mrf.mxu0
        %v1114 = vadd.f32 0.0, %v1113
        %v1115 = vpop.f32.mrf.mxu0
        %v1116 = vadd.f32 0.0, %v1115
        %v1117 = vpop.f32.mrf.mxu0
        %v1118 = vadd.f32 0.0, %v1117
        %v1119 = vpop.f32.mrf.mxu0
        %v1120 = vadd.f32 0.0, %v1119
        %1121 = vmatprep.mubr.bf16.mxu0 0
        %1122 = vmatmul.mubr.bf16.gmra.mxu0 %v492
        %v1123 = vpop.f32.mrf.mxu0
        %v1124 = vadd.f32 0.0, %v1123
        %v1125 = vpop.f32.mrf.mxu0
        %v1126 = vadd.f32 0.0, %v1125
        %v1127 = vpop.f32.mrf.mxu0
        %v1128 = vadd.f32 0.0, %v1127
        %v1129 = vpop.f32.mrf.mxu0
        %v1130 = vadd.f32 0.0, %v1129
        %1131 = vmatprep.mubr.bf16.mxu0 0
        %1132 = vmatmul.mubr.bf16.gmra.mxu0 %v495
        %v1133 = vpop.f32.mrf.mxu0
        %v1134 = vadd.f32 0.0, %v1133
        %v1135 = vpop.f32.mrf.mxu0
        %v1136 = vadd.f32 0.0, %v1135
        %v1137 = vpop.f32.mrf.mxu0
        %v1138 = vadd.f32 0.0, %v1137
        %v1139 = vpop.f32.mrf.mxu0
        %v1140 = vadd.f32 0.0, %v1139
        %1141 = vmatprep.mubr.bf16.mxu0 0
        %1142 = vmatmul.mubr.bf16.gmra.mxu0 %v498
        %v1143 = vpop.f32.mrf.mxu0
        %v1144 = vadd.f32 0.0, %v1143
        %v1145 = vpop.f32.mrf.mxu0
        %v1146 = vadd.f32 0.0, %v1145
        %v1147 = vpop.f32.mrf.mxu0
        %v1148 = vadd.f32 0.0, %v1147
        %v1149 = vpop.f32.mrf.mxu0
        %v1150 = vadd.f32 0.0, %v1149
        %1151 = vmatprep.mubr.bf16.mxu0 0
        %1152 = vmatmul.mubr.bf16.gmra.mxu0 %v501
        %v1153 = vpop.f32.mrf.mxu0
        %v1154 = vadd.f32 0.0, %v1153
        %v1155 = vpop.f32.mrf.mxu0
        %v1156 = vadd.f32 0.0, %v1155
        %v1157 = vpop.f32.mrf.mxu0
        %v1158 = vadd.f32 0.0, %v1157
        %v1159 = vpop.f32.mrf.mxu0
        %v1160 = vadd.f32 0.0, %v1159
        %1161 = vmatprep.mubr.bf16.mxu0 0
        %1162 = vmatmul.mubr.bf16.gmra.mxu0 %v504
        %v1163 = vpop.f32.mrf.mxu0
        %v1164 = vadd.f32 0.0, %v1163
        %v1165 = vpop.f32.mrf.mxu0
        %v1166 = vadd.f32 0.0, %v1165
        %v1167 = vpop.f32.mrf.mxu0
        %v1168 = vadd.f32 0.0, %v1167
        %v1169 = vpop.f32.mrf.mxu0
        %v1170 = vadd.f32 0.0, %v1169
        %1171 = vmatprep.mubr.bf16.mxu0 0
        %1172 = vmatmul.mubr.bf16.gmra.mxu0 %v507
        %v1173 = vpop.f32.mrf.mxu0
        %v1174 = vadd.f32 0.0, %v1173
        %v1175 = vpop.f32.mrf.mxu0
        %v1176 = vadd.f32 0.0, %v1175
        %v1177 = vpop.f32.mrf.mxu0
        %v1178 = vadd.f32 0.0, %v1177
        %v1179 = vpop.f32.mrf.mxu0
        %v1180 = vadd.f32 0.0, %v1179
        %1181 = vmatprep.mubr.bf16.mxu0 0
        %1182 = vmatmul.mubr.bf16.gmra.mxu0 %v1031
        %v1183 = vpop.f32.mrf.mxu0
        %v1184 = vadd.f32 0.0, %v1183
        %v1185 = vpop.f32.mrf.mxu0
        %v1186 = vadd.f32 0.0, %v1185
        %v1187 = vpop.f32.mrf.mxu0
        %v1188 = vadd.f32 0.0, %v1187
        %v1189 = vpop.f32.mrf.mxu0
        %v1190 = vadd.f32 0.0, %v1189
        %1191 = vdwg.mxu0
        %v1192 = vadd.f32 %v958, %v1074
        %v1193 = vadd.f32 %v959, %v1076
        %v1194 = vadd.f32 %v960, %v1078
        %v1195 = vadd.f32 %v961, %v1080
        %v1196 = vadd.f32 %v962, %v1084
        %v1197 = vadd.f32 %v963, %v1086
        %v1198 = vadd.f32 %v964, %v1088
        %v1199 = vadd.f32 %v965, %v1090
        %v1200 = vadd.f32 %v966, %v1094
        %v1201 = vadd.f32 %v967, %v1096
        %v1202 = vadd.f32 %v968, %v1098
        %v1203 = vadd.f32 %v969, %v1100
        %v1204 = vadd.f32 %v970, %v1104
        %v1205 = vadd.f32 %v971, %v1106
        %v1206 = vadd.f32 %v972, %v1108
        %v1207 = vadd.f32 %v973, %v1110
        %v1208 = vadd.f32 %v974, %v1114
        %v1209 = vadd.f32 %v975, %v1116
        %v1210 = vadd.f32 %v976, %v1118
        %v1211 = vadd.f32 %v977, %v1120
        %v1212 = vadd.f32 %v978, %v1124
        %v1213 = vadd.f32 %v979, %v1126
        %v1214 = vadd.f32 %v980, %v1128
        %v1215 = vadd.f32 %v981, %v1130
        %v1216 = vadd.f32 %v982, %v1134
        %v1217 = vadd.f32 %v983, %v1136
        %v1218 = vadd.f32 %v984, %v1138
        %v1219 = vadd.f32 %v985, %v1140
        %v1220 = vadd.f32 %v986, %v1144
        %v1221 = vadd.f32 %v987, %v1146
        %v1222 = vadd.f32 %v988, %v1148
        %v1223 = vadd.f32 %v989, %v1150
        %v1224 = vadd.f32 %v990, %v1154
        %v1225 = vadd.f32 %v991, %v1156
        %v1226 = vadd.f32 %v992, %v1158
        %v1227 = vadd.f32 %v993, %v1160
        %v1228 = vadd.f32 %v994, %v1164
        %v1229 = vadd.f32 %v995, %v1166
        %v1230 = vadd.f32 %v996, %v1168
        %v1231 = vadd.f32 %v997, %v1170
        %v1232 = vadd.f32 %v998, %v1174
        %v1233 = vadd.f32 %v999, %v1176
        %v1234 = vadd.f32 %v1000, %v1178
        %v1235 = vadd.f32 %v1001, %v1180
        %v1236 = vadd.f32 %v1002, %v1184
        %v1237 = vadd.f32 %v1003, %v1186
        %v1238 = vadd.f32 %v1004, %v1188
        %v1239 = vadd.f32 %v1005, %v1190
        %v1240 = vpack.c.bf16 %v435, %v434
        %s1241 = scalar_lea.vmem [#allocation5], 96
        %v1242 = vld [vmem:[%s1241] sm:$0xff]
        %v1243 = vld [vmem:[%s1241 + $0x8] sm:$0xff]
        %v1244 = vld [vmem:[%s1241 + $0x10] sm:$0xff]
        %v1245 = vld [vmem:[%s1241 + $0x18] sm:$0x33]
        %v1250 = vunpack.c.l.b16 %v1242
        %v1251 = vunpack.c.h.b16 %v1242
        %v1252 = vunpack.c.l.b16 %v1243
        %v1253 = vunpack.c.h.b16 %v1243
        %v1254 = vunpack.c.l.b16 %v1244
        %v1255 = vunpack.c.h.b16 %v1244
        %v1256 = vunpack.c.l.b16 %v1245
        %v1257 = vunpack.c.h.b16 %v1245
        %v1258 = vpack.c.b16 %v1252, %v1250
        %v1259 = vpack.c.b16 %v1253, %v1251
        %v1260 = vpack.c.b16 %v1256, %v1254
        %v1261 = vpack.c.b16 %v1257, %v1255
        %v1265 = vsel %vm472, %v1240, 0
        %v1268 = vsel %vm509, %v1260, 0
        %v1271 = vsel %vm509, %v1261, 0
        %1273 = vmatprep.subr.bf16.mxu0 0
        %1274 = vmatpush1.bf16.msra.mxu0 0
        %1275 = vmatprep.subr.bf16.mxu0 0
        %1276 = vmatpush1.bf16.msra.mxu0 0
        %1277 = vmatprep.subr.bf16.mxu0 0
        %1278 = vmatpush1.bf16.msra.mxu0 0
        %1279 = vmatprep.subr.bf16.mxu0 0
        %1280 = vmatpush1.bf16.msra.mxu0 0
        %1281 = vmatprep.subr.bf16.mxu0 0
        %1282 = vmatpush1.bf16.msra.mxu0 0
        %1283 = vmatprep.subr.bf16.mxu0 0
        %1284 = vmatpush1.bf16.msra.mxu0 0
        %1285 = vmatprep.subr.bf16.mxu0 %v1271
        %1286 = vmatpush1.bf16.msra.mxu0 %v1268
        %1287 = vmatprep.subr.bf16.mxu0 %v1259
        %1288 = vmatpush1.bf16.msra.mxu0 %v1258
        %1289 = vmatprep.subr.bf16.mxu0 0
        %1290 = vmatpush2.bf16.msra.mxu0 0
        %1291 = vmatprep.subr.bf16.mxu0 0
        %1292 = vmatpush2.bf16.msra.mxu0 0
        %1293 = vmatprep.subr.bf16.mxu0 0
        %1294 = vmatpush2.bf16.msra.mxu0 0
        %1295 = vmatprep.subr.bf16.mxu0 0
        %1296 = vmatpush2.bf16.msra.mxu0 0
        %1297 = vmatprep.subr.bf16.mxu0 0
        %1298 = vmatpush2.bf16.msra.mxu0 0
        %1299 = vmatprep.subr.bf16.mxu0 0
        %1300 = vmatpush2.bf16.msra.mxu0 0
        %1301 = vmatprep.subr.bf16.mxu0 0
        %1302 = vmatpush2.bf16.msra.mxu0 0
        %1303 = vmatprep.subr.bf16.mxu0 0
        %1304 = vmatpush2.bf16.msra.mxu0 0
        %1305 = vmatprep.mubr.bf16.mxu0 0
        %1306 = vmatmul.mubr.bf16.gmra.mxu0 %v767
        %v1307 = vpop.f32.mrf.mxu0
        %v1308 = vadd.f32 0.0, %v1307
        %v1309 = vpop.f32.mrf.mxu0
        %v1310 = vadd.f32 0.0, %v1309
        %v1311 = vpop.f32.mrf.mxu0
        %v1312 = vadd.f32 0.0, %v1311
        %v1313 = vpop.f32.mrf.mxu0
        %v1314 = vadd.f32 0.0, %v1313
        %1315 = vmatprep.mubr.bf16.mxu0 0
        %1316 = vmatmul.mubr.bf16.gmra.mxu0 %v770
        %v1317 = vpop.f32.mrf.mxu0
        %v1318 = vadd.f32 0.0, %v1317
        %v1319 = vpop.f32.mrf.mxu0
        %v1320 = vadd.f32 0.0, %v1319
        %v1321 = vpop.f32.mrf.mxu0
        %v1322 = vadd.f32 0.0, %v1321
        %v1323 = vpop.f32.mrf.mxu0
        %v1324 = vadd.f32 0.0, %v1323
        %1325 = vmatprep.mubr.bf16.mxu0 0
        %1326 = vmatmul.mubr.bf16.gmra.mxu0 %v773
        %v1327 = vpop.f32.mrf.mxu0
        %v1328 = vadd.f32 0.0, %v1327
        %v1329 = vpop.f32.mrf.mxu0
        %v1330 = vadd.f32 0.0, %v1329
        %v1331 = vpop.f32.mrf.mxu0
        %v1332 = vadd.f32 0.0, %v1331
        %v1333 = vpop.f32.mrf.mxu0
        %v1334 = vadd.f32 0.0, %v1333
        %1335 = vmatprep.mubr.bf16.mxu0 0
        %1336 = vmatmul.mubr.bf16.gmra.mxu0 %v776
        %v1337 = vpop.f32.mrf.mxu0
        %v1338 = vadd.f32 0.0, %v1337
        %v1339 = vpop.f32.mrf.mxu0
        %v1340 = vadd.f32 0.0, %v1339
        %v1341 = vpop.f32.mrf.mxu0
        %v1342 = vadd.f32 0.0, %v1341
        %v1343 = vpop.f32.mrf.mxu0
        %v1344 = vadd.f32 0.0, %v1343
        %1345 = vmatprep.mubr.bf16.mxu0 0
        %1346 = vmatmul.mubr.bf16.gmra.mxu0 %v779
        %v1347 = vpop.f32.mrf.mxu0
        %v1348 = vadd.f32 0.0, %v1347
        %v1349 = vpop.f32.mrf.mxu0
        %v1350 = vadd.f32 0.0, %v1349
        %v1351 = vpop.f32.mrf.mxu0
        %v1352 = vadd.f32 0.0, %v1351
        %v1353 = vpop.f32.mrf.mxu0
        %v1354 = vadd.f32 0.0, %v1353
        %1355 = vmatprep.mubr.bf16.mxu0 0
        %1356 = vmatmul.mubr.bf16.gmra.mxu0 %v782
        %v1357 = vpop.f32.mrf.mxu0
        %v1358 = vadd.f32 0.0, %v1357
        %v1359 = vpop.f32.mrf.mxu0
        %v1360 = vadd.f32 0.0, %v1359
        %v1361 = vpop.f32.mrf.mxu0
        %v1362 = vadd.f32 0.0, %v1361
        %v1363 = vpop.f32.mrf.mxu0
        %v1364 = vadd.f32 0.0, %v1363
        %1365 = vmatprep.mubr.bf16.mxu0 0
        %1366 = vmatmul.mubr.bf16.gmra.mxu0 %v785
        %v1367 = vpop.f32.mrf.mxu0
        %v1368 = vadd.f32 0.0, %v1367
        %v1369 = vpop.f32.mrf.mxu0
        %v1370 = vadd.f32 0.0, %v1369
        %v1371 = vpop.f32.mrf.mxu0
        %v1372 = vadd.f32 0.0, %v1371
        %v1373 = vpop.f32.mrf.mxu0
        %v1374 = vadd.f32 0.0, %v1373
        %1375 = vmatprep.mubr.bf16.mxu0 0
        %1376 = vmatmul.mubr.bf16.gmra.mxu0 %v788
        %v1377 = vpop.f32.mrf.mxu0
        %v1378 = vadd.f32 0.0, %v1377
        %v1379 = vpop.f32.mrf.mxu0
        %v1380 = vadd.f32 0.0, %v1379
        %v1381 = vpop.f32.mrf.mxu0
        %v1382 = vadd.f32 0.0, %v1381
        %v1383 = vpop.f32.mrf.mxu0
        %v1384 = vadd.f32 0.0, %v1383
        %1385 = vmatprep.mubr.bf16.mxu0 0
        %1386 = vmatmul.mubr.bf16.gmra.mxu0 %v791
        %v1387 = vpop.f32.mrf.mxu0
        %v1388 = vadd.f32 0.0, %v1387
        %v1389 = vpop.f32.mrf.mxu0
        %v1390 = vadd.f32 0.0, %v1389
        %v1391 = vpop.f32.mrf.mxu0
        %v1392 = vadd.f32 0.0, %v1391
        %v1393 = vpop.f32.mrf.mxu0
        %v1394 = vadd.f32 0.0, %v1393
        %1395 = vmatprep.mubr.bf16.mxu0 0
        %1396 = vmatmul.mubr.bf16.gmra.mxu0 %v794
        %v1397 = vpop.f32.mrf.mxu0
        %v1398 = vadd.f32 0.0, %v1397
        %v1399 = vpop.f32.mrf.mxu0
        %v1400 = vadd.f32 0.0, %v1399
        %v1401 = vpop.f32.mrf.mxu0
        %v1402 = vadd.f32 0.0, %v1401
        %v1403 = vpop.f32.mrf.mxu0
        %v1404 = vadd.f32 0.0, %v1403
        %1405 = vmatprep.mubr.bf16.mxu0 0
        %1406 = vmatmul.mubr.bf16.gmra.mxu0 %v797
        %v1407 = vpop.f32.mrf.mxu0
        %v1408 = vadd.f32 0.0, %v1407
        %v1409 = vpop.f32.mrf.mxu0
        %v1410 = vadd.f32 0.0, %v1409
        %v1411 = vpop.f32.mrf.mxu0
        %v1412 = vadd.f32 0.0, %v1411
        %v1413 = vpop.f32.mrf.mxu0
        %v1414 = vadd.f32 0.0, %v1413
        %1415 = vmatprep.mubr.bf16.mxu0 0
        %1416 = vmatmul.mubr.bf16.gmra.mxu0 %v1265
        %v1417 = vpop.f32.mrf.mxu0
        %v1418 = vadd.f32 0.0, %v1417
        %v1419 = vpop.f32.mrf.mxu0
        %v1420 = vadd.f32 0.0, %v1419
        %v1421 = vpop.f32.mrf.mxu0
        %v1422 = vadd.f32 0.0, %v1421
        %v1423 = vpop.f32.mrf.mxu0
        %v1424 = vadd.f32 0.0, %v1423
        %1425 = vdwg.mxu0
        %v1426 = vadd.f32 %v1192, %v1308
        %v1427 = vadd.f32 %v1193, %v1310
        %v1428 = vadd.f32 %v1194, %v1312
        %v1429 = vadd.f32 %v1195, %v1314
        %v1430 = vadd.f32 %v1196, %v1318
        %v1431 = vadd.f32 %v1197, %v1320
        %v1432 = vadd.f32 %v1198, %v1322
        %v1433 = vadd.f32 %v1199, %v1324
        %v1434 = vadd.f32 %v1200, %v1328
        %v1435 = vadd.f32 %v1201, %v1330
        %v1436 = vadd.f32 %v1202, %v1332
        %v1437 = vadd.f32 %v1203, %v1334
        %v1438 = vadd.f32 %v1204, %v1338
        %v1439 = vadd.f32 %v1205, %v1340
        %v1440 = vadd.f32 %v1206, %v1342
        %v1441 = vadd.f32 %v1207, %v1344
        %v1442 = vadd.f32 %v1208, %v1348
        %v1443 = vadd.f32 %v1209, %v1350
        %v1444 = vadd.f32 %v1210, %v1352
        %v1445 = vadd.f32 %v1211, %v1354
        %v1446 = vadd.f32 %v1212, %v1358
        %v1447 = vadd.f32 %v1213, %v1360
        %v1448 = vadd.f32 %v1214, %v1362
        %v1449 = vadd.f32 %v1215, %v1364
        %v1450 = vadd.f32 %v1216, %v1368
        %v1451 = vadd.f32 %v1217, %v1370
        %v1452 = vadd.f32 %v1218, %v1372
        %v1453 = vadd.f32 %v1219, %v1374
        %v1454 = vadd.f32 %v1220, %v1378
        %v1455 = vadd.f32 %v1221, %v1380
        %v1456 = vadd.f32 %v1222, %v1382
        %v1457 = vadd.f32 %v1223, %v1384
        %v1458 = vadd.f32 %v1224, %v1388
        %v1459 = vadd.f32 %v1225, %v1390
        %v1460 = vadd.f32 %v1226, %v1392
        %v1461 = vadd.f32 %v1227, %v1394
        %v1462 = vadd.f32 %v1228, %v1398
        %v1463 = vadd.f32 %v1229, %v1400
        %v1464 = vadd.f32 %v1230, %v1402
        %v1465 = vadd.f32 %v1231, %v1404
        %v1466 = vadd.f32 %v1232, %v1408
        %v1467 = vadd.f32 %v1233, %v1410
        %v1468 = vadd.f32 %v1234, %v1412
        %v1469 = vadd.f32 %v1235, %v1414
        %v1470 = vadd.f32 %v1236, %v1418
        %v1471 = vadd.f32 %v1237, %v1420
        %v1472 = vadd.f32 %v1238, %v1422
        %v1473 = vadd.f32 %v1239, %v1424
        %v1474 = vpack.c.bf16 %v436, %v435
        %s1475 = scalar_lea.vmem [#allocation5], 128
        %v1476 = vld [vmem:[%s1475] sm:$0xff]
        %v1477 = vld [vmem:[%s1475 + $0x8] sm:$0xff]
        %v1478 = vld [vmem:[%s1475 + $0x10] sm:$0xff]
        %v1479 = vld [vmem:[%s1475 + $0x18] sm:$0x33]
        %v1484 = vunpack.c.l.b16 %v1476
        %v1485 = vunpack.c.h.b16 %v1476
        %v1486 = vunpack.c.l.b16 %v1477
        %v1487 = vunpack.c.h.b16 %v1477
        %v1488 = vunpack.c.l.b16 %v1478
        %v1489 = vunpack.c.h.b16 %v1478
        %v1490 = vunpack.c.l.b16 %v1479
        %v1491 = vunpack.c.h.b16 %v1479
        %v1492 = vpack.c.b16 %v1486, %v1484
        %v1493 = vpack.c.b16 %v1487, %v1485
        %v1494 = vpack.c.b16 %v1490, %v1488
        %v1495 = vpack.c.b16 %v1491, %v1489
        %v1499 = vsel %vm472, %v1474, 0
        %v1502 = vsel %vm509, %v1494, 0
        %v1505 = vsel %vm509, %v1495, 0
        %1507 = vmatprep.subr.bf16.mxu0 0
        %1508 = vmatpush1.bf16.msra.mxu0 0
        %1509 = vmatprep.subr.bf16.mxu0 0
        %1510 = vmatpush1.bf16.msra.mxu0 0
        %1511 = vmatprep.subr.bf16.mxu0 0
        %1512 = vmatpush1.bf16.msra.mxu0 0
        %1513 = vmatprep.subr.bf16.mxu0 0
        %1514 = vmatpush1.bf16.msra.mxu0 0
        %1515 = vmatprep.subr.bf16.mxu0 0
        %1516 = vmatpush1.bf16.msra.mxu0 0
        %1517 = vmatprep.subr.bf16.mxu0 0
        %1518 = vmatpush1.bf16.msra.mxu0 0
        %1519 = vmatprep.subr.bf16.mxu0 %v1505
        %1520 = vmatpush1.bf16.msra.mxu0 %v1502
        %1521 = vmatprep.subr.bf16.mxu0 %v1493
        %1522 = vmatpush1.bf16.msra.mxu0 %v1492
        %1523 = vmatprep.subr.bf16.mxu0 0
        %1524 = vmatpush2.bf16.msra.mxu0 0
        %1525 = vmatprep.subr.bf16.mxu0 0
        %1526 = vmatpush2.bf16.msra.mxu0 0
        %1527 = vmatprep.subr.bf16.mxu0 0
        %1528 = vmatpush2.bf16.msra.mxu0 0
        %1529 = vmatprep.subr.bf16.mxu0 0
        %1530 = vmatpush2.bf16.msra.mxu0 0
        %1531 = vmatprep.subr.bf16.mxu0 0
        %1532 = vmatpush2.bf16.msra.mxu0 0
        %1533 = vmatprep.subr.bf16.mxu0 0
        %1534 = vmatpush2.bf16.msra.mxu0 0
        %1535 = vmatprep.subr.bf16.mxu0 0
        %1536 = vmatpush2.bf16.msra.mxu0 0
        %1537 = vmatprep.subr.bf16.mxu0 0
        %1538 = vmatpush2.bf16.msra.mxu0 0
        %1539 = vmatprep.mubr.bf16.mxu0 0
        %1540 = vmatmul.mubr.bf16.gmra.mxu0 %v480
        %v1541 = vpop.f32.mrf.mxu0
        %v1542 = vadd.f32 0.0, %v1541
        %v1543 = vpop.f32.mrf.mxu0
        %v1544 = vadd.f32 0.0, %v1543
        %v1545 = vpop.f32.mrf.mxu0
        %v1546 = vadd.f32 0.0, %v1545
        %v1547 = vpop.f32.mrf.mxu0
        %v1548 = vadd.f32 0.0, %v1547
        %1549 = vmatprep.mubr.bf16.mxu0 0
        %1550 = vmatmul.mubr.bf16.gmra.mxu0 %v483
        %v1551 = vpop.f32.mrf.mxu0
        %v1552 = vadd.f32 0.0, %v1551
        %v1553 = vpop.f32.mrf.mxu0
        %v1554 = vadd.f32 0.0, %v1553
        %v1555 = vpop.f32.mrf.mxu0
        %v1556 = vadd.f32 0.0, %v1555
        %v1557 = vpop.f32.mrf.mxu0
        %v1558 = vadd.f32 0.0, %v1557
        %1559 = vmatprep.mubr.bf16.mxu0 0
        %1560 = vmatmul.mubr.bf16.gmra.mxu0 %v486
        %v1561 = vpop.f32.mrf.mxu0
        %v1562 = vadd.f32 0.0, %v1561
        %v1563 = vpop.f32.mrf.mxu0
        %v1564 = vadd.f32 0.0, %v1563
        %v1565 = vpop.f32.mrf.mxu0
        %v1566 = vadd.f32 0.0, %v1565
        %v1567 = vpop.f32.mrf.mxu0
        %v1568 = vadd.f32 0.0, %v1567
        %1569 = vmatprep.mubr.bf16.mxu0 0
        %1570 = vmatmul.mubr.bf16.gmra.mxu0 %v489
        %v1571 = vpop.f32.mrf.mxu0
        %v1572 = vadd.f32 0.0, %v1571
        %v1573 = vpop.f32.mrf.mxu0
        %v1574 = vadd.f32 0.0, %v1573
        %v1575 = vpop.f32.mrf.mxu0
        %v1576 = vadd.f32 0.0, %v1575
        %v1577 = vpop.f32.mrf.mxu0
        %v1578 = vadd.f32 0.0, %v1577
        %1579 = vmatprep.mubr.bf16.mxu0 0
        %1580 = vmatmul.mubr.bf16.gmra.mxu0 %v492
        %v1581 = vpop.f32.mrf.mxu0
        %v1582 = vadd.f32 0.0, %v1581
        %v1583 = vpop.f32.mrf.mxu0
        %v1584 = vadd.f32 0.0, %v1583
        %v1585 = vpop.f32.mrf.mxu0
        %v1586 = vadd.f32 0.0, %v1585
        %v1587 = vpop.f32.mrf.mxu0
        %v1588 = vadd.f32 0.0, %v1587
        %1589 = vmatprep.mubr.bf16.mxu0 0
        %1590 = vmatmul.mubr.bf16.gmra.mxu0 %v495
        %v1591 = vpop.f32.mrf.mxu0
        %v1592 = vadd.f32 0.0, %v1591
        %v1593 = vpop.f32.mrf.mxu0
        %v1594 = vadd.f32 0.0, %v1593
        %v1595 = vpop.f32.mrf.mxu0
        %v1596 = vadd.f32 0.0, %v1595
        %v1597 = vpop.f32.mrf.mxu0
        %v1598 = vadd.f32 0.0, %v1597
        %1599 = vmatprep.mubr.bf16.mxu0 0
        %1600 = vmatmul.mubr.bf16.gmra.mxu0 %v498
        %v1601 = vpop.f32.mrf.mxu0
        %v1602 = vadd.f32 0.0, %v1601
        %v1603 = vpop.f32.mrf.mxu0
        %v1604 = vadd.f32 0.0, %v1603
        %v1605 = vpop.f32.mrf.mxu0
        %v1606 = vadd.f32 0.0, %v1605
        %v1607 = vpop.f32.mrf.mxu0
        %v1608 = vadd.f32 0.0, %v1607
        %1609 = vmatprep.mubr.bf16.mxu0 0
        %1610 = vmatmul.mubr.bf16.gmra.mxu0 %v501
        %v1611 = vpop.f32.mrf.mxu0
        %v1612 = vadd.f32 0.0, %v1611
        %v1613 = vpop.f32.mrf.mxu0
        %v1614 = vadd.f32 0.0, %v1613
        %v1615 = vpop.f32.mrf.mxu0
        %v1616 = vadd.f32 0.0, %v1615
        %v1617 = vpop.f32.mrf.mxu0
        %v1618 = vadd.f32 0.0, %v1617
        %1619 = vmatprep.mubr.bf16.mxu0 0
        %1620 = vmatmul.mubr.bf16.gmra.mxu0 %v504
        %v1621 = vpop.f32.mrf.mxu0
        %v1622 = vadd.f32 0.0, %v1621
        %v1623 = vpop.f32.mrf.mxu0
        %v1624 = vadd.f32 0.0, %v1623
        %v1625 = vpop.f32.mrf.mxu0
        %v1626 = vadd.f32 0.0, %v1625
        %v1627 = vpop.f32.mrf.mxu0
        %v1628 = vadd.f32 0.0, %v1627
        %1629 = vmatprep.mubr.bf16.mxu0 0
        %1630 = vmatmul.mubr.bf16.gmra.mxu0 %v507
        %v1631 = vpop.f32.mrf.mxu0
        %v1632 = vadd.f32 0.0, %v1631
        %v1633 = vpop.f32.mrf.mxu0
        %v1634 = vadd.f32 0.0, %v1633
        %v1635 = vpop.f32.mrf.mxu0
        %v1636 = vadd.f32 0.0, %v1635
        %v1637 = vpop.f32.mrf.mxu0
        %v1638 = vadd.f32 0.0, %v1637
        %1639 = vmatprep.mubr.bf16.mxu0 0
        %1640 = vmatmul.mubr.bf16.gmra.mxu0 %v1031
        %v1641 = vpop.f32.mrf.mxu0
        %v1642 = vadd.f32 0.0, %v1641
        %v1643 = vpop.f32.mrf.mxu0
        %v1644 = vadd.f32 0.0, %v1643
        %v1645 = vpop.f32.mrf.mxu0
        %v1646 = vadd.f32 0.0, %v1645
        %v1647 = vpop.f32.mrf.mxu0
        %v1648 = vadd.f32 0.0, %v1647
        %1649 = vmatprep.mubr.bf16.mxu0 0
        %1650 = vmatmul.mubr.bf16.gmra.mxu0 %v1499
        %v1651 = vpop.f32.mrf.mxu0
        %v1652 = vadd.f32 0.0, %v1651
        %v1653 = vpop.f32.mrf.mxu0
        %v1654 = vadd.f32 0.0, %v1653
        %v1655 = vpop.f32.mrf.mxu0
        %v1656 = vadd.f32 0.0, %v1655
        %v1657 = vpop.f32.mrf.mxu0
        %v1658 = vadd.f32 0.0, %v1657
        %1659 = vdwg.mxu0
        %v1660 = vadd.f32 %v1426, %v1542
        %v1661 = vadd.f32 %v1427, %v1544
        %v1662 = vadd.f32 %v1428, %v1546
        %v1663 = vadd.f32 %v1429, %v1548
        %v1664 = vadd.f32 %v1430, %v1552
        %v1665 = vadd.f32 %v1431, %v1554
        %v1666 = vadd.f32 %v1432, %v1556
        %v1667 = vadd.f32 %v1433, %v1558
        %v1668 = vadd.f32 %v1434, %v1562
        %v1669 = vadd.f32 %v1435, %v1564
        %v1670 = vadd.f32 %v1436, %v1566
        %v1671 = vadd.f32 %v1437, %v1568
        %v1672 = vadd.f32 %v1438, %v1572
        %v1673 = vadd.f32 %v1439, %v1574
        %v1674 = vadd.f32 %v1440, %v1576
        %v1675 = vadd.f32 %v1441, %v1578
        %v1676 = vadd.f32 %v1442, %v1582
        %v1677 = vadd.f32 %v1443, %v1584
        %v1678 = vadd.f32 %v1444, %v1586
        %v1679 = vadd.f32 %v1445, %v1588
        %v1680 = vadd.f32 %v1446, %v1592
        %v1681 = vadd.f32 %v1447, %v1594
        %v1682 = vadd.f32 %v1448, %v1596
        %v1683 = vadd.f32 %v1449, %v1598
        %v1684 = vadd.f32 %v1450, %v1602
        %v1685 = vadd.f32 %v1451, %v1604
        %v1686 = vadd.f32 %v1452, %v1606
        %v1687 = vadd.f32 %v1453, %v1608
        %v1688 = vadd.f32 %v1454, %v1612
        %v1689 = vadd.f32 %v1455, %v1614
        %v1690 = vadd.f32 %v1456, %v1616
        %v1691 = vadd.f32 %v1457, %v1618
        %v1692 = vadd.f32 %v1458, %v1622
        %v1693 = vadd.f32 %v1459, %v1624
        %v1694 = vadd.f32 %v1460, %v1626
        %v1695 = vadd.f32 %v1461, %v1628
        %v1696 = vadd.f32 %v1462, %v1632
        %v1697 = vadd.f32 %v1463, %v1634
        %v1698 = vadd.f32 %v1464, %v1636
        %v1699 = vadd.f32 %v1465, %v1638
        %v1700 = vadd.f32 %v1466, %v1642
        %v1701 = vadd.f32 %v1467, %v1644
        %v1702 = vadd.f32 %v1468, %v1646
        %v1703 = vadd.f32 %v1469, %v1648
        %v1704 = vadd.f32 %v1470, %v1652
        %v1705 = vadd.f32 %v1471, %v1654
        %v1706 = vadd.f32 %v1472, %v1656
        %v1707 = vadd.f32 %v1473, %v1658
        %v1708 = vmax.f32 %v1660, %v1662
        %v1709 = vmax.f32 %v1661, %v1663
        %v1710 = vmax.f32 %v1664, %v1666
        %v1711 = vmax.f32 %v1665, %v1667
        %v1712 = vmax.f32 %v1668, %v1670
        %v1713 = vmax.f32 %v1669, %v1671
        %v1714 = vmax.f32 %v1672, %v1674
        %v1715 = vmax.f32 %v1673, %v1675
        %v1716 = vmax.f32 %v1676, %v1678
        %v1717 = vmax.f32 %v1677, %v1679
        %v1718 = vmax.f32 %v1680, %v1682
        %v1719 = vmax.f32 %v1681, %v1683
        %v1720 = vmax.f32 %v1684, %v1686
        %v1721 = vmax.f32 %v1685, %v1687
        %v1722 = vmax.f32 %v1688, %v1690
        %v1723 = vmax.f32 %v1689, %v1691
        %v1724 = vmax.f32 %v1692, %v1694
        %v1725 = vmax.f32 %v1693, %v1695
        %v1726 = vmax.f32 %v1696, %v1698
        %v1727 = vmax.f32 %v1697, %v1699
        %v1728 = vmax.f32 %v1700, %v1702
        %v1729 = vmax.f32 %v1701, %v1703
        %v1730 = vmax.f32 %v1704, %v1706
        %v1731 = vmax.f32 %v1705, %v1707
        %v1732 = vmax.f32 %v1708, %v1709
        %v1733 = vmax.f32 %v1710, %v1711
        %v1734 = vmax.f32 %v1712, %v1713
        %v1735 = vmax.f32 %v1714, %v1715
        %v1736 = vmax.f32 %v1716, %v1717
        %v1737 = vmax.f32 %v1718, %v1719
        %v1738 = vmax.f32 %v1720, %v1721
        %v1739 = vmax.f32 %v1722, %v1723
        %v1740 = vmax.f32 %v1724, %v1725
        %v1741 = vmax.f32 %v1726, %v1727
        %v1742 = vmax.f32 %v1728, %v1729
        %v1743 = vmax.f32 %v1730, %v1731
        %v1744 = vmax.f32 %v1732, 0.0
        %v1745 = vmax.f32 %v1733, 0.0
        %v1746 = vmax.f32 %v1734, 0.0
        %v1747 = vmax.f32 %v1735, 0.0
        %v1748 = vmax.f32 %v1736, 0.0
        %v1749 = vmax.f32 %v1737, 0.0
        %v1750 = vmax.f32 %v1738, 0.0
        %v1751 = vmax.f32 %v1739, 0.0
        %v1752 = vmax.f32 %v1740, 0.0
        %v1753 = vmax.f32 %v1741, 0.0
        %v1754 = vmax.f32 %v1742, 0.0
        %v1755 = vmax.f32 %v1743, 0.0
        %v1756 = vld [vmem:[%s4] sm:$0x3]
        %v1757 = vpack.c.bf16 %v1745, %v1744
        %v1758 = vpack.c.bf16 %v1747, %v1746
        %v1759 = vpack.c.bf16 %v1749, %v1748
        %v1760 = vpack.c.bf16 %v1751, %v1750
        %v1761 = vld [vmem:[#allocation7] sm:$0xff]
        %v1762 = vld [vmem:[#allocation7 + $0x8] sm:$0xff]
        %v1763 = vld [vmem:[#allocation7 + $0x10] sm:$0xff]
        %v1764 = vld [vmem:[#allocation7 + $0x18] sm:$0xff]
        %v1765 = vld [vmem:[#allocation7 + $0x20] sm:$0xff]
        %v1766 = vld [vmem:[#allocation7 + $0x28] sm:$0xff]
        %v1767 = vld [vmem:[#allocation7 + $0x30] sm:$0xff]
        %v1768 = vld [vmem:[#allocation7 + $0x38] sm:$0xff]
        %v1769 = vld [vmem:[#allocation7 + $0x40] sm:$0xff]
        %v1770 = vld [vmem:[#allocation7 + $0x48] sm:$0xff]
        %v1771 = vld [vmem:[#allocation7 + $0x50] sm:$0xff]
        %v1772 = vld [vmem:[#allocation7 + $0x58] sm:$0xff]
        %v1773 = vld [vmem:[#allocation7 + $0x60] sm:$0xff]
        %v1774 = vld [vmem:[#allocation7 + $0x68] sm:$0xff]
        %v1775 = vld [vmem:[#allocation7 + $0x70] sm:$0xff]
        %v1776 = vld [vmem:[#allocation7 + $0x78] sm:$0xff]
        %v1793 = vunpack.c.l.b16 %v1761
        %v1794 = vunpack.c.h.b16 %v1761
        %v1795 = vunpack.c.l.b16 %v1762
        %v1796 = vunpack.c.h.b16 %v1762
        %v1797 = vunpack.c.l.b16 %v1763
        %v1798 = vunpack.c.h.b16 %v1763
        %v1799 = vunpack.c.l.b16 %v1764
        %v1800 = vunpack.c.h.b16 %v1764
        %v1801 = vunpack.c.l.b16 %v1765
        %v1802 = vunpack.c.h.b16 %v1765
        %v1803 = vunpack.c.l.b16 %v1766
        %v1804 = vunpack.c.h.b16 %v1766
        %v1805 = vunpack.c.l.b16 %v1767
        %v1806 = vunpack.c.h.b16 %v1767
        %v1807 = vunpack.c.l.b16 %v1768
        %v1808 = vunpack.c.h.b16 %v1768
        %v1809 = vunpack.c.l.b16 %v1769
        %v1810 = vunpack.c.h.b16 %v1769
        %v1811 = vunpack.c.l.b16 %v1770
        %v1812 = vunpack.c.h.b16 %v1770
        %v1813 = vunpack.c.l.b16 %v1771
        %v1814 = vunpack.c.h.b16 %v1771
        %v1815 = vunpack.c.l.b16 %v1772
        %v1816 = vunpack.c.h.b16 %v1772
        %v1817 = vunpack.c.l.b16 %v1773
        %v1818 = vunpack.c.h.b16 %v1773
        %v1819 = vunpack.c.l.b16 %v1774
        %v1820 = vunpack.c.h.b16 %v1774
        %v1821 = vunpack.c.l.b16 %v1775
        %v1822 = vunpack.c.h.b16 %v1775
        %v1823 = vunpack.c.l.b16 %v1776
        %v1824 = vunpack.c.h.b16 %v1776
        %v1825 = vpack.c.b16 %v1795, %v1793
        %v1826 = vpack.c.b16 %v1796, %v1794
        %v1827 = vpack.c.b16 %v1799, %v1797
        %v1828 = vpack.c.b16 %v1800, %v1798
        %v1829 = vpack.c.b16 %v1803, %v1801
        %v1830 = vpack.c.b16 %v1804, %v1802
        %v1831 = vpack.c.b16 %v1807, %v1805
        %v1832 = vpack.c.b16 %v1808, %v1806
        %v1833 = vpack.c.b16 %v1811, %v1809
        %v1834 = vpack.c.b16 %v1812, %v1810
        %v1835 = vpack.c.b16 %v1815, %v1813
        %v1836 = vpack.c.b16 %v1816, %v1814
        %v1837 = vpack.c.b16 %v1819, %v1817
        %v1838 = vpack.c.b16 %v1820, %v1818
        %v1839 = vpack.c.b16 %v1823, %v1821
        %v1840 = vpack.c.b16 %v1824, %v1822
        %1857 = vmatprep.subr.bf16.mxu0 %v1840
        %1858 = vmatpush1.bf16.msra.mxu0 %v1839
        %1859 = vmatprep.subr.bf16.mxu0 %v1838
        %1860 = vmatpush1.bf16.msra.mxu0 %v1837
        %1861 = vmatprep.subr.bf16.mxu0 %v1836
        %1862 = vmatpush1.bf16.msra.mxu0 %v1835
        %1863 = vmatprep.subr.bf16.mxu0 %v1834
        %1864 = vmatpush1.bf16.msra.mxu0 %v1833
        %1865 = vmatprep.subr.bf16.mxu0 %v1832
        %1866 = vmatpush1.bf16.msra.mxu0 %v1831
        %1867 = vmatprep.subr.bf16.mxu0 %v1830
        %1868 = vmatpush1.bf16.msra.mxu0 %v1829
        %1869 = vmatprep.subr.bf16.mxu0 %v1828
        %1870 = vmatpush1.bf16.msra.mxu0 %v1827
        %1871 = vmatprep.subr.bf16.mxu0 %v1826
        %1872 = vmatpush1.bf16.msra.mxu0 %v1825
        %1873 = vmatprep.subr.bf16.mxu0 0
        %1874 = vmatpush2.bf16.msra.mxu0 0
        %1875 = vmatprep.subr.bf16.mxu0 0
        %1876 = vmatpush2.bf16.msra.mxu0 0
        %1877 = vmatprep.subr.bf16.mxu0 0
        %1878 = vmatpush2.bf16.msra.mxu0 0
        %1879 = vmatprep.subr.bf16.mxu0 0
        %1880 = vmatpush2.bf16.msra.mxu0 0
        %1881 = vmatprep.subr.bf16.mxu0 0
        %1882 = vmatpush2.bf16.msra.mxu0 0
        %1883 = vmatprep.subr.bf16.mxu0 0
        %1884 = vmatpush2.bf16.msra.mxu0 0
        %1885 = vmatprep.subr.bf16.mxu0 0
        %1886 = vmatpush2.bf16.msra.mxu0 0
        %1887 = vmatprep.subr.bf16.mxu0 0
        %1888 = vmatpush2.bf16.msra.mxu0 0
        %1889 = vmatprep.mubr.bf16.mxu0 0
        %1890 = vmatmul.mubr.bf16.gmra.mxu0 %v1757
        %v1891 = vpop.f32.mrf.mxu0
        %v1892 = vadd.f32 0.0, %v1891
        %v1893 = vpop.f32.mrf.mxu0
        %v1894 = vadd.f32 0.0, %v1893
        %v1895 = vpop.f32.mrf.mxu0
        %v1896 = vadd.f32 0.0, %v1895
        %v1897 = vpop.f32.mrf.mxu0
        %v1898 = vadd.f32 0.0, %v1897
        %1899 = vmatprep.mubr.bf16.mxu0 0
        %1900 = vmatmul.mubr.bf16.gmra.mxu0 %v1758
        %v1901 = vpop.f32.mrf.mxu0
        %v1902 = vadd.f32 0.0, %v1901
        %v1903 = vpop.f32.mrf.mxu0
        %v1904 = vadd.f32 0.0, %v1903
        %v1905 = vpop.f32.mrf.mxu0
        %v1906 = vadd.f32 0.0, %v1905
        %v1907 = vpop.f32.mrf.mxu0
        %v1908 = vadd.f32 0.0, %v1907
        %1909 = vmatprep.mubr.bf16.mxu0 0
        %1910 = vmatmul.mubr.bf16.gmra.mxu0 %v1759
        %v1911 = vpop.f32.mrf.mxu0
        %v1912 = vadd.f32 0.0, %v1911
        %v1913 = vpop.f32.mrf.mxu0
        %v1914 = vadd.f32 0.0, %v1913
        %v1915 = vpop.f32.mrf.mxu0
        %v1916 = vadd.f32 0.0, %v1915
        %v1917 = vpop.f32.mrf.mxu0
        %v1918 = vadd.f32 0.0, %v1917
        %1919 = vmatprep.mubr.bf16.mxu0 0
        %1920 = vmatmul.mubr.bf16.gmra.mxu0 %v1760
        %v1921 = vpop.f32.mrf.mxu0
        %v1922 = vadd.f32 0.0, %v1921
        %v1923 = vpop.f32.mrf.mxu0
        %v1924 = vadd.f32 0.0, %v1923
        %v1925 = vpop.f32.mrf.mxu0
        %v1926 = vadd.f32 0.0, %v1925
        %v1927 = vpop.f32.mrf.mxu0
        %v1928 = vadd.f32 0.0, %v1927
        %1929 = vdwg.mxu0
        %v1931 = vlaneseq
        %v1932 = vshrl.u32 %v1931, 7
        %v1933 = vsub.s32 0, %v1932
        %v1934 = vrot.slane %v1756, %v1933
        %v1935 = vlaneseq
        %v1936 = vshrl.u32 %v1935, 7
        %v1937 = vsub.s32 1, %v1936
        %v1938 = vrot.slane %v1756, %v1937
        %v1941 = vadd.f32 %v1934, %v1892
        %v1942 = vadd.f32 %v1938, %v1894
        %v1943 = vadd.f32 %v1934, %v1896
        %v1944 = vadd.f32 %v1938, %v1898
        %v1945 = vadd.f32 %v1934, %v1902
        %v1946 = vadd.f32 %v1938, %v1904
        %v1947 = vadd.f32 %v1934, %v1906
        %v1948 = vadd.f32 %v1938, %v1908
        %v1949 = vadd.f32 %v1934, %v1912
        %v1950 = vadd.f32 %v1938, %v1914
        %v1951 = vadd.f32 %v1934, %v1916
        %v1952 = vadd.f32 %v1938, %v1918
        %v1953 = vadd.f32 %v1934, %v1922
        %v1954 = vadd.f32 %v1938, %v1924
        %v1955 = vadd.f32 %v1934, %v1926
        %v1956 = vadd.f32 %v1938, %v1928
        %v1957 = vpack.c.bf16 %v1746, %v1745
        %v1958 = vpack.c.bf16 %v1748, %v1747
        %v1959 = vpack.c.bf16 %v1750, %v1749
        %v1960 = vpack.c.bf16 %v1752, %v1751
        %s1961 = scalar_lea.vmem [#allocation7], 128
        %v1962 = vld [vmem:[%s1961] sm:$0xff]
        %v1963 = vld [vmem:[%s1961 + $0x8] sm:$0xff]
        %v1964 = vld [vmem:[%s1961 + $0x10] sm:$0xff]
        %v1965 = vld [vmem:[%s1961 + $0x18] sm:$0xff]
        %v1966 = vld [vmem:[%s1961 + $0x20] sm:$0xff]
        %v1967 = vld [vmem:[%s1961 + $0x28] sm:$0xff]
        %v1968 = vld [vmem:[%s1961 + $0x30] sm:$0xff]
        %v1969 = vld [vmem:[%s1961 + $0x38] sm:$0xff]
        %v1970 = vld [vmem:[%s1961 + $0x40] sm:$0xff]
        %v1971 = vld [vmem:[%s1961 + $0x48] sm:$0xff]
        %v1972 = vld [vmem:[%s1961 + $0x50] sm:$0xff]
        %v1973 = vld [vmem:[%s1961 + $0x58] sm:$0xff]
        %v1974 = vld [vmem:[%s1961 + $0x60] sm:$0xff]
        %v1975 = vld [vmem:[%s1961 + $0x68] sm:$0xff]
        %v1976 = vld [vmem:[%s1961 + $0x70] sm:$0xff]
        %v1977 = vld [vmem:[%s1961 + $0x78] sm:$0xff]
        %v1994 = vunpack.c.l.b16 %v1962
        %v1995 = vunpack.c.h.b16 %v1962
        %v1996 = vunpack.c.l.b16 %v1963
        %v1997 = vunpack.c.h.b16 %v1963
        %v1998 = vunpack.c.l.b16 %v1964
        %v1999 = vunpack.c.h.b16 %v1964
        %v2000 = vunpack.c.l.b16 %v1965
        %v2001 = vunpack.c.h.b16 %v1965
        %v2002 = vunpack.c.l.b16 %v1966
        %v2003 = vunpack.c.h.b16 %v1966
        %v2004 = vunpack.c.l.b16 %v1967
        %v2005 = vunpack.c.h.b16 %v1967
        %v2006 = vunpack.c.l.b16 %v1968
        %v2007 = vunpack.c.h.b16 %v1968
        %v2008 = vunpack.c.l.b16 %v1969
        %v2009 = vunpack.c.h.b16 %v1969
        %v2010 = vunpack.c.l.b16 %v1970
        %v2011 = vunpack.c.h.b16 %v1970
        %v2012 = vunpack.c.l.b16 %v1971
        %v2013 = vunpack.c.h.b16 %v1971
        %v2014 = vunpack.c.l.b16 %v1972
        %v2015 = vunpack.c.h.b16 %v1972
        %v2016 = vunpack.c.l.b16 %v1973
        %v2017 = vunpack.c.h.b16 %v1973
        %v2018 = vunpack.c.l.b16 %v1974
        %v2019 = vunpack.c.h.b16 %v1974
        %v2020 = vunpack.c.l.b16 %v1975
        %v2021 = vunpack.c.h.b16 %v1975
        %v2022 = vunpack.c.l.b16 %v1976
        %v2023 = vunpack.c.h.b16 %v1976
        %v2024 = vunpack.c.l.b16 %v1977
        %v2025 = vunpack.c.h.b16 %v1977
        %v2026 = vpack.c.b16 %v1996, %v1994
        %v2027 = vpack.c.b16 %v1997, %v1995
        %v2028 = vpack.c.b16 %v2000, %v1998
        %v2029 = vpack.c.b16 %v2001, %v1999
        %v2030 = vpack.c.b16 %v2004, %v2002
        %v2031 = vpack.c.b16 %v2005, %v2003
        %v2032 = vpack.c.b16 %v2008, %v2006
        %v2033 = vpack.c.b16 %v2009, %v2007
        %v2034 = vpack.c.b16 %v2012, %v2010
        %v2035 = vpack.c.b16 %v2013, %v2011
        %v2036 = vpack.c.b16 %v2016, %v2014
        %v2037 = vpack.c.b16 %v2017, %v2015
        %v2038 = vpack.c.b16 %v2020, %v2018
        %v2039 = vpack.c.b16 %v2021, %v2019
        %v2040 = vpack.c.b16 %v2024, %v2022
        %v2041 = vpack.c.b16 %v2025, %v2023
        %2058 = vmatprep.subr.bf16.mxu0 %v2041
        %2059 = vmatpush1.bf16.msra.mxu0 %v2040
        %2060 = vmatprep.subr.bf16.mxu0 %v2039
        %2061 = vmatpush1.bf16.msra.mxu0 %v2038
        %2062 = vmatprep.subr.bf16.mxu0 %v2037
        %2063 = vmatpush1.bf16.msra.mxu0 %v2036
        %2064 = vmatprep.subr.bf16.mxu0 %v2035
        %2065 = vmatpush1.bf16.msra.mxu0 %v2034
        %2066 = vmatprep.subr.bf16.mxu0 %v2033
        %2067 = vmatpush1.bf16.msra.mxu0 %v2032
        %2068 = vmatprep.subr.bf16.mxu0 %v2031
        %2069 = vmatpush1.bf16.msra.mxu0 %v2030
        %2070 = vmatprep.subr.bf16.mxu0 %v2029
        %2071 = vmatpush1.bf16.msra.mxu0 %v2028
        %2072 = vmatprep.subr.bf16.mxu0 %v2027
        %2073 = vmatpush1.bf16.msra.mxu0 %v2026
        %2074 = vmatprep.subr.bf16.mxu0 0
        %2075 = vmatpush2.bf16.msra.mxu0 0
        %2076 = vmatprep.subr.bf16.mxu0 0
        %2077 = vmatpush2.bf16.msra.mxu0 0
        %2078 = vmatprep.subr.bf16.mxu0 0
        %2079 = vmatpush2.bf16.msra.mxu0 0
        %2080 = vmatprep.subr.bf16.mxu0 0
        %2081 = vmatpush2.bf16.msra.mxu0 0
        %2082 = vmatprep.subr.bf16.mxu0 0
        %2083 = vmatpush2.bf16.msra.mxu0 0
        %2084 = vmatprep.subr.bf16.mxu0 0
        %2085 = vmatpush2.bf16.msra.mxu0 0
        %2086 = vmatprep.subr.bf16.mxu0 0
        %2087 = vmatpush2.bf16.msra.mxu0 0
        %2088 = vmatprep.subr.bf16.mxu0 0
        %2089 = vmatpush2.bf16.msra.mxu0 0
        %2090 = vmatprep.mubr.bf16.mxu0 0
        %2091 = vmatmul.mubr.bf16.gmra.mxu0 %v1957
        %v2092 = vpop.f32.mrf.mxu0
        %v2093 = vadd.f32 0.0, %v2092
        %v2094 = vpop.f32.mrf.mxu0
        %v2095 = vadd.f32 0.0, %v2094
        %v2096 = vpop.f32.mrf.mxu0
        %v2097 = vadd.f32 0.0, %v2096
        %v2098 = vpop.f32.mrf.mxu0
        %v2099 = vadd.f32 0.0, %v2098
        %2100 = vmatprep.mubr.bf16.mxu0 0
        %2101 = vmatmul.mubr.bf16.gmra.mxu0 %v1958
        %v2102 = vpop.f32.mrf.mxu0
        %v2103 = vadd.f32 0.0, %v2102
        %v2104 = vpop.f32.mrf.mxu0
        %v2105 = vadd.f32 0.0, %v2104
        %v2106 = vpop.f32.mrf.mxu0
        %v2107 = vadd.f32 0.0, %v2106
        %v2108 = vpop.f32.mrf.mxu0
        %v2109 = vadd.f32 0.0, %v2108
        %2110 = vmatprep.mubr.bf16.mxu0 0
        %2111 = vmatmul.mubr.bf16.gmra.mxu0 %v1959
        %v2112 = vpop.f32.mrf.mxu0
        %v2113 = vadd.f32 0.0, %v2112
        %v2114 = vpop.f32.mrf.mxu0
        %v2115 = vadd.f32 0.0, %v2114
        %v2116 = vpop.f32.mrf.mxu0
        %v2117 = vadd.f32 0.0, %v2116
        %v2118 = vpop.f32.mrf.mxu0
        %v2119 = vadd.f32 0.0, %v2118
        %2120 = vmatprep.mubr.bf16.mxu0 0
        %2121 = vmatmul.mubr.bf16.gmra.mxu0 %v1960
        %v2122 = vpop.f32.mrf.mxu0
        %v2123 = vadd.f32 0.0, %v2122
        %v2124 = vpop.f32.mrf.mxu0
        %v2125 = vadd.f32 0.0, %v2124
        %v2126 = vpop.f32.mrf.mxu0
        %v2127 = vadd.f32 0.0, %v2126
        %v2128 = vpop.f32.mrf.mxu0
        %v2129 = vadd.f32 0.0, %v2128
        %2130 = vdwg.mxu0
        %v2131 = vadd.f32 %v1941, %v2093
        %v2132 = vadd.f32 %v1942, %v2095
        %v2133 = vadd.f32 %v1943, %v2097
        %v2134 = vadd.f32 %v1944, %v2099
        %v2135 = vadd.f32 %v1945, %v2103
        %v2136 = vadd.f32 %v1946, %v2105
        %v2137 = vadd.f32 %v1947, %v2107
        %v2138 = vadd.f32 %v1948, %v2109
        %v2139 = vadd.f32 %v1949, %v2113
        %v2140 = vadd.f32 %v1950, %v2115
        %v2141 = vadd.f32 %v1951, %v2117
        %v2142 = vadd.f32 %v1952, %v2119
        %v2143 = vadd.f32 %v1953, %v2123
        %v2144 = vadd.f32 %v1954, %v2125
        %v2145 = vadd.f32 %v1955, %v2127
        %v2146 = vadd.f32 %v1956, %v2129
        %v2147 = vpack.c.bf16 %v1753, %v1752
        %s2148 = scalar_lea.vmem [#allocation7], 256
        %v2149 = vld [vmem:[%s2148] sm:$0xff]
        %v2150 = vld [vmem:[%s2148 + $0x8] sm:$0xff]
        %v2151 = vld [vmem:[%s2148 + $0x10] sm:$0xff]
        %v2152 = vld [vmem:[%s2148 + $0x18] sm:$0xff]
        %v2153 = vld [vmem:[%s2148 + $0x20] sm:$0xff]
        %v2154 = vld [vmem:[%s2148 + $0x28] sm:$0xff]
        %v2155 = vld [vmem:[%s2148 + $0x30] sm:$0xff]
        %v2156 = vld [vmem:[%s2148 + $0x38] sm:$0xff]
        %v2157 = vld [vmem:[%s2148 + $0x40] sm:$0xff]
        %v2158 = vld [vmem:[%s2148 + $0x48] sm:$0xff]
        %v2159 = vld [vmem:[%s2148 + $0x50] sm:$0xff]
        %v2160 = vld [vmem:[%s2148 + $0x58] sm:$0xff]
        %v2161 = vld [vmem:[%s2148 + $0x60] sm:$0xff]
        %v2162 = vld [vmem:[%s2148 + $0x68] sm:$0xff]
        %v2163 = vld [vmem:[%s2148 + $0x70] sm:$0xff]
        %v2164 = vld [vmem:[%s2148 + $0x78] sm:$0xff]
        %v2181 = vunpack.c.l.b16 %v2149
        %v2182 = vunpack.c.h.b16 %v2149
        %v2183 = vunpack.c.l.b16 %v2150
        %v2184 = vunpack.c.h.b16 %v2150
        %v2185 = vunpack.c.l.b16 %v2151
        %v2186 = vunpack.c.h.b16 %v2151
        %v2187 = vunpack.c.l.b16 %v2152
        %v2188 = vunpack.c.h.b16 %v2152
        %v2189 = vunpack.c.l.b16 %v2153
        %v2190 = vunpack.c.h.b16 %v2153
        %v2191 = vunpack.c.l.b16 %v2154
        %v2192 = vunpack.c.h.b16 %v2154
        %v2193 = vunpack.c.l.b16 %v2155
        %v2194 = vunpack.c.h.b16 %v2155
        %v2195 = vunpack.c.l.b16 %v2156
        %v2196 = vunpack.c.h.b16 %v2156
        %v2197 = vunpack.c.l.b16 %v2157
        %v2198 = vunpack.c.h.b16 %v2157
        %v2199 = vunpack.c.l.b16 %v2158
        %v2200 = vunpack.c.h.b16 %v2158
        %v2201 = vunpack.c.l.b16 %v2159
        %v2202 = vunpack.c.h.b16 %v2159
        %v2203 = vunpack.c.l.b16 %v2160
        %v2204 = vunpack.c.h.b16 %v2160
        %v2205 = vunpack.c.l.b16 %v2161
        %v2206 = vunpack.c.h.b16 %v2161
        %v2207 = vunpack.c.l.b16 %v2162
        %v2208 = vunpack.c.h.b16 %v2162
        %v2209 = vunpack.c.l.b16 %v2163
        %v2210 = vunpack.c.h.b16 %v2163
        %v2211 = vunpack.c.l.b16 %v2164
        %v2212 = vunpack.c.h.b16 %v2164
        %v2213 = vpack.c.b16 %v2183, %v2181
        %v2214 = vpack.c.b16 %v2184, %v2182
        %v2215 = vpack.c.b16 %v2187, %v2185
        %v2216 = vpack.c.b16 %v2188, %v2186
        %v2217 = vpack.c.b16 %v2191, %v2189
        %v2218 = vpack.c.b16 %v2192, %v2190
        %v2219 = vpack.c.b16 %v2195, %v2193
        %v2220 = vpack.c.b16 %v2196, %v2194
        %v2221 = vpack.c.b16 %v2199, %v2197
        %v2222 = vpack.c.b16 %v2200, %v2198
        %v2223 = vpack.c.b16 %v2203, %v2201
        %v2224 = vpack.c.b16 %v2204, %v2202
        %v2225 = vpack.c.b16 %v2207, %v2205
        %v2226 = vpack.c.b16 %v2208, %v2206
        %v2227 = vpack.c.b16 %v2211, %v2209
        %v2228 = vpack.c.b16 %v2212, %v2210
        %2245 = vmatprep.subr.bf16.mxu0 %v2228
        %2246 = vmatpush1.bf16.msra.mxu0 %v2227
        %2247 = vmatprep.subr.bf16.mxu0 %v2226
        %2248 = vmatpush1.bf16.msra.mxu0 %v2225
        %2249 = vmatprep.subr.bf16.mxu0 %v2224
        %2250 = vmatpush1.bf16.msra.mxu0 %v2223
        %2251 = vmatprep.subr.bf16.mxu0 %v2222
        %2252 = vmatpush1.bf16.msra.mxu0 %v2221
        %2253 = vmatprep.subr.bf16.mxu0 %v2220
        %2254 = vmatpush1.bf16.msra.mxu0 %v2219
        %2255 = vmatprep.subr.bf16.mxu0 %v2218
        %2256 = vmatpush1.bf16.msra.mxu0 %v2217
        %2257 = vmatprep.subr.bf16.mxu0 %v2216
        %2258 = vmatpush1.bf16.msra.mxu0 %v2215
        %2259 = vmatprep.subr.bf16.mxu0 %v2214
        %2260 = vmatpush1.bf16.msra.mxu0 %v2213
        %2261 = vmatprep.subr.bf16.mxu0 0
        %2262 = vmatpush2.bf16.msra.mxu0 0
        %2263 = vmatprep.subr.bf16.mxu0 0
        %2264 = vmatpush2.bf16.msra.mxu0 0
        %2265 = vmatprep.subr.bf16.mxu0 0
        %2266 = vmatpush2.bf16.msra.mxu0 0
        %2267 = vmatprep.subr.bf16.mxu0 0
        %2268 = vmatpush2.bf16.msra.mxu0 0
        %2269 = vmatprep.subr.bf16.mxu0 0
        %2270 = vmatpush2.bf16.msra.mxu0 0
        %2271 = vmatprep.subr.bf16.mxu0 0
        %2272 = vmatpush2.bf16.msra.mxu0 0
        %2273 = vmatprep.subr.bf16.mxu0 0
        %2274 = vmatpush2.bf16.msra.mxu0 0
        %2275 = vmatprep.subr.bf16.mxu0 0
        %2276 = vmatpush2.bf16.msra.mxu0 0
        %2277 = vmatprep.mubr.bf16.mxu0 0
        %2278 = vmatmul.mubr.bf16.gmra.mxu0 %v1758
        %v2279 = vpop.f32.mrf.mxu0
        %v2280 = vadd.f32 0.0, %v2279
        %v2281 = vpop.f32.mrf.mxu0
        %v2282 = vadd.f32 0.0, %v2281
        %v2283 = vpop.f32.mrf.mxu0
        %v2284 = vadd.f32 0.0, %v2283
        %v2285 = vpop.f32.mrf.mxu0
        %v2286 = vadd.f32 0.0, %v2285
        %2287 = vmatprep.mubr.bf16.mxu0 0
        %2288 = vmatmul.mubr.bf16.gmra.mxu0 %v1759
        %v2289 = vpop.f32.mrf.mxu0
        %v2290 = vadd.f32 0.0, %v2289
        %v2291 = vpop.f32.mrf.mxu0
        %v2292 = vadd.f32 0.0, %v2291
        %v2293 = vpop.f32.mrf.mxu0
        %v2294 = vadd.f32 0.0, %v2293
        %v2295 = vpop.f32.mrf.mxu0
        %v2296 = vadd.f32 0.0, %v2295
        %2297 = vmatprep.mubr.bf16.mxu0 0
        %2298 = vmatmul.mubr.bf16.gmra.mxu0 %v1760
        %v2299 = vpop.f32.mrf.mxu0
        %v2300 = vadd.f32 0.0, %v2299
        %v2301 = vpop.f32.mrf.mxu0
        %v2302 = vadd.f32 0.0, %v2301
        %v2303 = vpop.f32.mrf.mxu0
        %v2304 = vadd.f32 0.0, %v2303
        %v2305 = vpop.f32.mrf.mxu0
        %v2306 = vadd.f32 0.0, %v2305
        %2307 = vmatprep.mubr.bf16.mxu0 0
        %2308 = vmatmul.mubr.bf16.gmra.mxu0 %v2147
        %v2309 = vpop.f32.mrf.mxu0
        %v2310 = vadd.f32 0.0, %v2309
        %v2311 = vpop.f32.mrf.mxu0
        %v2312 = vadd.f32 0.0, %v2311
        %v2313 = vpop.f32.mrf.mxu0
        %v2314 = vadd.f32 0.0, %v2313
        %v2315 = vpop.f32.mrf.mxu0
        %v2316 = vadd.f32 0.0, %v2315
        %2317 = vdwg.mxu0
        %v2318 = vadd.f32 %v2131, %v2280
        %v2319 = vadd.f32 %v2132, %v2282
        %v2320 = vadd.f32 %v2133, %v2284
        %v2321 = vadd.f32 %v2134, %v2286
        %v2322 = vadd.f32 %v2135, %v2290
        %v2323 = vadd.f32 %v2136, %v2292
        %v2324 = vadd.f32 %v2137, %v2294
        %v2325 = vadd.f32 %v2138, %v2296
        %v2326 = vadd.f32 %v2139, %v2300
        %v2327 = vadd.f32 %v2140, %v2302
        %v2328 = vadd.f32 %v2141, %v2304
        %v2329 = vadd.f32 %v2142, %v2306
        %v2330 = vadd.f32 %v2143, %v2310
        %v2331 = vadd.f32 %v2144, %v2312
        %v2332 = vadd.f32 %v2145, %v2314
        %v2333 = vadd.f32 %v2146, %v2316
        %v2334 = vpack.c.bf16 %v1754, %v1753
        %s2335 = scalar_lea.vmem [#allocation7], 384
        %v2336 = vld [vmem:[%s2335] sm:$0xff]
        %v2337 = vld [vmem:[%s2335 + $0x8] sm:$0xff]
        %v2338 = vld [vmem:[%s2335 + $0x10] sm:$0xff]
        %v2339 = vld [vmem:[%s2335 + $0x18] sm:$0xff]
        %v2340 = vld [vmem:[%s2335 + $0x20] sm:$0xff]
        %v2341 = vld [vmem:[%s2335 + $0x28] sm:$0xff]
        %v2342 = vld [vmem:[%s2335 + $0x30] sm:$0xff]
        %v2343 = vld [vmem:[%s2335 + $0x38] sm:$0xff]
        %v2344 = vld [vmem:[%s2335 + $0x40] sm:$0xff]
        %v2345 = vld [vmem:[%s2335 + $0x48] sm:$0xff]
        %v2346 = vld [vmem:[%s2335 + $0x50] sm:$0xff]
        %v2347 = vld [vmem:[%s2335 + $0x58] sm:$0xff]
        %v2348 = vld [vmem:[%s2335 + $0x60] sm:$0xff]
        %v2349 = vld [vmem:[%s2335 + $0x68] sm:$0xff]
        %v2350 = vld [vmem:[%s2335 + $0x70] sm:$0xff]
        %v2351 = vld [vmem:[%s2335 + $0x78] sm:$0xff]
        %v2368 = vunpack.c.l.b16 %v2336
        %v2369 = vunpack.c.h.b16 %v2336
        %v2370 = vunpack.c.l.b16 %v2337
        %v2371 = vunpack.c.h.b16 %v2337
        %v2372 = vunpack.c.l.b16 %v2338
        %v2373 = vunpack.c.h.b16 %v2338
        %v2374 = vunpack.c.l.b16 %v2339
        %v2375 = vunpack.c.h.b16 %v2339
        %v2376 = vunpack.c.l.b16 %v2340
        %v2377 = vunpack.c.h.b16 %v2340
        %v2378 = vunpack.c.l.b16 %v2341
        %v2379 = vunpack.c.h.b16 %v2341
        %v2380 = vunpack.c.l.b16 %v2342
        %v2381 = vunpack.c.h.b16 %v2342
        %v2382 = vunpack.c.l.b16 %v2343
        %v2383 = vunpack.c.h.b16 %v2343
        %v2384 = vunpack.c.l.b16 %v2344
        %v2385 = vunpack.c.h.b16 %v2344
        %v2386 = vunpack.c.l.b16 %v2345
        %v2387 = vunpack.c.h.b16 %v2345
        %v2388 = vunpack.c.l.b16 %v2346
        %v2389 = vunpack.c.h.b16 %v2346
        %v2390 = vunpack.c.l.b16 %v2347
        %v2391 = vunpack.c.h.b16 %v2347
        %v2392 = vunpack.c.l.b16 %v2348
        %v2393 = vunpack.c.h.b16 %v2348
        %v2394 = vunpack.c.l.b16 %v2349
        %v2395 = vunpack.c.h.b16 %v2349
        %v2396 = vunpack.c.l.b16 %v2350
        %v2397 = vunpack.c.h.b16 %v2350
        %v2398 = vunpack.c.l.b16 %v2351
        %v2399 = vunpack.c.h.b16 %v2351
        %v2400 = vpack.c.b16 %v2370, %v2368
        %v2401 = vpack.c.b16 %v2371, %v2369
        %v2402 = vpack.c.b16 %v2374, %v2372
        %v2403 = vpack.c.b16 %v2375, %v2373
        %v2404 = vpack.c.b16 %v2378, %v2376
        %v2405 = vpack.c.b16 %v2379, %v2377
        %v2406 = vpack.c.b16 %v2382, %v2380
        %v2407 = vpack.c.b16 %v2383, %v2381
        %v2408 = vpack.c.b16 %v2386, %v2384
        %v2409 = vpack.c.b16 %v2387, %v2385
        %v2410 = vpack.c.b16 %v2390, %v2388
        %v2411 = vpack.c.b16 %v2391, %v2389
        %v2412 = vpack.c.b16 %v2394, %v2392
        %v2413 = vpack.c.b16 %v2395, %v2393
        %v2414 = vpack.c.b16 %v2398, %v2396
        %v2415 = vpack.c.b16 %v2399, %v2397
        %2432 = vmatprep.subr.bf16.mxu0 %v2415
        %2433 = vmatpush1.bf16.msra.mxu0 %v2414
        %2434 = vmatprep.subr.bf16.mxu0 %v2413
        %2435 = vmatpush1.bf16.msra.mxu0 %v2412
        %2436 = vmatprep.subr.bf16.mxu0 %v2411
        %2437 = vmatpush1.bf16.msra.mxu0 %v2410
        %2438 = vmatprep.subr.bf16.mxu0 %v2409
        %2439 = vmatpush1.bf16.msra.mxu0 %v2408
        %2440 = vmatprep.subr.bf16.mxu0 %v2407
        %2441 = vmatpush1.bf16.msra.mxu0 %v2406
        %2442 = vmatprep.subr.bf16.mxu0 %v2405
        %2443 = vmatpush1.bf16.msra.mxu0 %v2404
        %2444 = vmatprep.subr.bf16.mxu0 %v2403
        %2445 = vmatpush1.bf16.msra.mxu0 %v2402
        %2446 = vmatprep.subr.bf16.mxu0 %v2401
        %2447 = vmatpush1.bf16.msra.mxu0 %v2400
        %2448 = vmatprep.subr.bf16.mxu0 0
        %2449 = vmatpush2.bf16.msra.mxu0 0
        %2450 = vmatprep.subr.bf16.mxu0 0
        %2451 = vmatpush2.bf16.msra.mxu0 0
        %2452 = vmatprep.subr.bf16.mxu0 0
        %2453 = vmatpush2.bf16.msra.mxu0 0
        %2454 = vmatprep.subr.bf16.mxu0 0
        %2455 = vmatpush2.bf16.msra.mxu0 0
        %2456 = vmatprep.subr.bf16.mxu0 0
        %2457 = vmatpush2.bf16.msra.mxu0 0
        %2458 = vmatprep.subr.bf16.mxu0 0
        %2459 = vmatpush2.bf16.msra.mxu0 0
        %2460 = vmatprep.subr.bf16.mxu0 0
        %2461 = vmatpush2.bf16.msra.mxu0 0
        %2462 = vmatprep.subr.bf16.mxu0 0
        %2463 = vmatpush2.bf16.msra.mxu0 0
        %2464 = vmatprep.mubr.bf16.mxu0 0
        %2465 = vmatmul.mubr.bf16.gmra.mxu0 %v1958
        %v2466 = vpop.f32.mrf.mxu0
        %v2467 = vadd.f32 0.0, %v2466
        %v2468 = vpop.f32.mrf.mxu0
        %v2469 = vadd.f32 0.0, %v2468
        %v2470 = vpop.f32.mrf.mxu0
        %v2471 = vadd.f32 0.0, %v2470
        %v2472 = vpop.f32.mrf.mxu0
        %v2473 = vadd.f32 0.0, %v2472
        %2474 = vmatprep.mubr.bf16.mxu0 0
        %2475 = vmatmul.mubr.bf16.gmra.mxu0 %v1959
        %v2476 = vpop.f32.mrf.mxu0
        %v2477 = vadd.f32 0.0, %v2476
        %v2478 = vpop.f32.mrf.mxu0
        %v2479 = vadd.f32 0.0, %v2478
        %v2480 = vpop.f32.mrf.mxu0
        %v2481 = vadd.f32 0.0, %v2480
        %v2482 = vpop.f32.mrf.mxu0
        %v2483 = vadd.f32 0.0, %v2482
        %2484 = vmatprep.mubr.bf16.mxu0 0
        %2485 = vmatmul.mubr.bf16.gmra.mxu0 %v1960
        %v2486 = vpop.f32.mrf.mxu0
        %v2487 = vadd.f32 0.0, %v2486
        %v2488 = vpop.f32.mrf.mxu0
        %v2489 = vadd.f32 0.0, %v2488
        %v2490 = vpop.f32.mrf.mxu0
        %v2491 = vadd.f32 0.0, %v2490
        %v2492 = vpop.f32.mrf.mxu0
        %v2493 = vadd.f32 0.0, %v2492
        %2494 = vmatprep.mubr.bf16.mxu0 0
        %2495 = vmatmul.mubr.bf16.gmra.mxu0 %v2334
        %v2496 = vpop.f32.mrf.mxu0
        %v2497 = vadd.f32 0.0, %v2496
        %v2498 = vpop.f32.mrf.mxu0
        %v2499 = vadd.f32 0.0, %v2498
        %v2500 = vpop.f32.mrf.mxu0
        %v2501 = vadd.f32 0.0, %v2500
        %v2502 = vpop.f32.mrf.mxu0
        %v2503 = vadd.f32 0.0, %v2502
        %2504 = vdwg.mxu0
        %v2505 = vadd.f32 %v2318, %v2467
        %v2506 = vadd.f32 %v2319, %v2469
        %v2507 = vadd.f32 %v2320, %v2471
        %v2508 = vadd.f32 %v2321, %v2473
        %v2509 = vadd.f32 %v2322, %v2477
        %v2510 = vadd.f32 %v2323, %v2479
        %v2511 = vadd.f32 %v2324, %v2481
        %v2512 = vadd.f32 %v2325, %v2483
        %v2513 = vadd.f32 %v2326, %v2487
        %v2514 = vadd.f32 %v2327, %v2489
        %v2515 = vadd.f32 %v2328, %v2491
        %v2516 = vadd.f32 %v2329, %v2493
        %v2517 = vadd.f32 %v2330, %v2497
        %v2518 = vadd.f32 %v2331, %v2499
        %v2519 = vadd.f32 %v2332, %v2501
        %v2520 = vadd.f32 %v2333, %v2503
        %v2521 = vpack.c.bf16 %v1755, %v1754
        %s2522 = scalar_lea.vmem [#allocation7], 512
        %v2523 = vld [vmem:[%s2522] sm:$0xff]
        %v2524 = vld [vmem:[%s2522 + $0x8] sm:$0xff]
        %v2525 = vld [vmem:[%s2522 + $0x10] sm:$0xff]
        %v2526 = vld [vmem:[%s2522 + $0x18] sm:$0xff]
        %v2527 = vld [vmem:[%s2522 + $0x20] sm:$0xff]
        %v2528 = vld [vmem:[%s2522 + $0x28] sm:$0xff]
        %v2529 = vld [vmem:[%s2522 + $0x30] sm:$0xff]
        %v2530 = vld [vmem:[%s2522 + $0x38] sm:$0xff]
        %v2531 = vld [vmem:[%s2522 + $0x40] sm:$0xff]
        %v2532 = vld [vmem:[%s2522 + $0x48] sm:$0xff]
        %v2533 = vld [vmem:[%s2522 + $0x50] sm:$0xff]
        %v2534 = vld [vmem:[%s2522 + $0x58] sm:$0xff]
        %v2535 = vld [vmem:[%s2522 + $0x60] sm:$0xff]
        %v2536 = vld [vmem:[%s2522 + $0x68] sm:$0xff]
        %v2537 = vld [vmem:[%s2522 + $0x70] sm:$0xff]
        %v2538 = vld [vmem:[%s2522 + $0x78] sm:$0xff]
        %v2555 = vunpack.c.l.b16 %v2523
        %v2556 = vunpack.c.h.b16 %v2523
        %v2557 = vunpack.c.l.b16 %v2524
        %v2558 = vunpack.c.h.b16 %v2524
        %v2559 = vunpack.c.l.b16 %v2525
        %v2560 = vunpack.c.h.b16 %v2525
        %v2561 = vunpack.c.l.b16 %v2526
        %v2562 = vunpack.c.h.b16 %v2526
        %v2563 = vunpack.c.l.b16 %v2527
        %v2564 = vunpack.c.h.b16 %v2527
        %v2565 = vunpack.c.l.b16 %v2528
        %v2566 = vunpack.c.h.b16 %v2528
        %v2567 = vunpack.c.l.b16 %v2529
        %v2568 = vunpack.c.h.b16 %v2529
        %v2569 = vunpack.c.l.b16 %v2530
        %v2570 = vunpack.c.h.b16 %v2530
        %v2571 = vunpack.c.l.b16 %v2531
        %v2572 = vunpack.c.h.b16 %v2531
        %v2573 = vunpack.c.l.b16 %v2532
        %v2574 = vunpack.c.h.b16 %v2532
        %v2575 = vunpack.c.l.b16 %v2533
        %v2576 = vunpack.c.h.b16 %v2533
        %v2577 = vunpack.c.l.b16 %v2534
        %v2578 = vunpack.c.h.b16 %v2534
        %v2579 = vunpack.c.l.b16 %v2535
        %v2580 = vunpack.c.h.b16 %v2535
        %v2581 = vunpack.c.l.b16 %v2536
        %v2582 = vunpack.c.h.b16 %v2536
        %v2583 = vunpack.c.l.b16 %v2537
        %v2584 = vunpack.c.h.b16 %v2537
        %v2585 = vunpack.c.l.b16 %v2538
        %v2586 = vunpack.c.h.b16 %v2538
        %v2587 = vpack.c.b16 %v2557, %v2555
        %v2588 = vpack.c.b16 %v2558, %v2556
        %v2589 = vpack.c.b16 %v2561, %v2559
        %v2590 = vpack.c.b16 %v2562, %v2560
        %v2591 = vpack.c.b16 %v2565, %v2563
        %v2592 = vpack.c.b16 %v2566, %v2564
        %v2593 = vpack.c.b16 %v2569, %v2567
        %v2594 = vpack.c.b16 %v2570, %v2568
        %v2595 = vpack.c.b16 %v2573, %v2571
        %v2596 = vpack.c.b16 %v2574, %v2572
        %v2597 = vpack.c.b16 %v2577, %v2575
        %v2598 = vpack.c.b16 %v2578, %v2576
        %v2599 = vpack.c.b16 %v2581, %v2579
        %v2600 = vpack.c.b16 %v2582, %v2580
        %v2601 = vpack.c.b16 %v2585, %v2583
        %v2602 = vpack.c.b16 %v2586, %v2584
        %2619 = vmatprep.subr.bf16.mxu0 %v2602
        %2620 = vmatpush1.bf16.msra.mxu0 %v2601
        %2621 = vmatprep.subr.bf16.mxu0 %v2600
        %2622 = vmatpush1.bf16.msra.mxu0 %v2599
        %2623 = vmatprep.subr.bf16.mxu0 %v2598
        %2624 = vmatpush1.bf16.msra.mxu0 %v2597
        %2625 = vmatprep.subr.bf16.mxu0 %v2596
        %2626 = vmatpush1.bf16.msra.mxu0 %v2595
        %2627 = vmatprep.subr.bf16.mxu0 %v2594
        %2628 = vmatpush1.bf16.msra.mxu0 %v2593
        %2629 = vmatprep.subr.bf16.mxu0 %v2592
        %2630 = vmatpush1.bf16.msra.mxu0 %v2591
        %2631 = vmatprep.subr.bf16.mxu0 %v2590
        %2632 = vmatpush1.bf16.msra.mxu0 %v2589
        %2633 = vmatprep.subr.bf16.mxu0 %v2588
        %2634 = vmatpush1.bf16.msra.mxu0 %v2587
        %2635 = vmatprep.subr.bf16.mxu0 0
        %2636 = vmatpush2.bf16.msra.mxu0 0
        %2637 = vmatprep.subr.bf16.mxu0 0
        %2638 = vmatpush2.bf16.msra.mxu0 0
        %2639 = vmatprep.subr.bf16.mxu0 0
        %2640 = vmatpush2.bf16.msra.mxu0 0
        %2641 = vmatprep.subr.bf16.mxu0 0
        %2642 = vmatpush2.bf16.msra.mxu0 0
        %2643 = vmatprep.subr.bf16.mxu0 0
        %2644 = vmatpush2.bf16.msra.mxu0 0
        %2645 = vmatprep.subr.bf16.mxu0 0
        %2646 = vmatpush2.bf16.msra.mxu0 0
        %2647 = vmatprep.subr.bf16.mxu0 0
        %2648 = vmatpush2.bf16.msra.mxu0 0
        %2649 = vmatprep.subr.bf16.mxu0 0
        %2650 = vmatpush2.bf16.msra.mxu0 0
        %2651 = vmatprep.mubr.bf16.mxu0 0
        %2652 = vmatmul.mubr.bf16.gmra.mxu0 %v1759
        %v2653 = vpop.f32.mrf.mxu0
        %v2654 = vadd.f32 0.0, %v2653
        %v2655 = vpop.f32.mrf.mxu0
        %v2656 = vadd.f32 0.0, %v2655
        %v2657 = vpop.f32.mrf.mxu0
        %v2658 = vadd.f32 0.0, %v2657
        %v2659 = vpop.f32.mrf.mxu0
        %v2660 = vadd.f32 0.0, %v2659
        %2661 = vmatprep.mubr.bf16.mxu0 0
        %2662 = vmatmul.mubr.bf16.gmra.mxu0 %v1760
        %v2663 = vpop.f32.mrf.mxu0
        %v2664 = vadd.f32 0.0, %v2663
        %v2665 = vpop.f32.mrf.mxu0
        %v2666 = vadd.f32 0.0, %v2665
        %v2667 = vpop.f32.mrf.mxu0
        %v2668 = vadd.f32 0.0, %v2667
        %v2669 = vpop.f32.mrf.mxu0
        %v2670 = vadd.f32 0.0, %v2669
        %2671 = vmatprep.mubr.bf16.mxu0 0
        %2672 = vmatmul.mubr.bf16.gmra.mxu0 %v2147
        %v2673 = vpop.f32.mrf.mxu0
        %v2674 = vadd.f32 0.0, %v2673
        %v2675 = vpop.f32.mrf.mxu0
        %v2676 = vadd.f32 0.0, %v2675
        %v2677 = vpop.f32.mrf.mxu0
        %v2678 = vadd.f32 0.0, %v2677
        %v2679 = vpop.f32.mrf.mxu0
        %v2680 = vadd.f32 0.0, %v2679
        %2681 = vmatprep.mubr.bf16.mxu0 0
        %2682 = vmatmul.mubr.bf16.gmra.mxu0 %v2521
        %v2683 = vpop.f32.mrf.mxu0
        %v2684 = vadd.f32 0.0, %v2683
        %v2685 = vpop.f32.mrf.mxu0
        %v2686 = vadd.f32 0.0, %v2685
        %v2687 = vpop.f32.mrf.mxu0
        %v2688 = vadd.f32 0.0, %v2687
        %v2689 = vpop.f32.mrf.mxu0
        %v2690 = vadd.f32 0.0, %v2689
        %2691 = vdwg.mxu0
        %v2692 = vadd.f32 %v2505, %v2654
        %v2693 = vadd.f32 %v2506, %v2656
        %v2694 = vadd.f32 %v2507, %v2658
        %v2695 = vadd.f32 %v2508, %v2660
        %v2696 = vadd.f32 %v2509, %v2664
        %v2697 = vadd.f32 %v2510, %v2666
        %v2698 = vadd.f32 %v2511, %v2668
        %v2699 = vadd.f32 %v2512, %v2670
        %v2700 = vadd.f32 %v2513, %v2674
        %v2701 = vadd.f32 %v2514, %v2676
        %v2702 = vadd.f32 %v2515, %v2678
        %v2703 = vadd.f32 %v2516, %v2680
        %v2704 = vadd.f32 %v2517, %v2684
        %v2705 = vadd.f32 %v2518, %v2686
        %v2706 = vadd.f32 %v2519, %v2688
        %v2707 = vadd.f32 %v2520, %v2690
        %v2708 = vmax.f32 %v2692, %v2694
        %v2709 = vmax.f32 %v2693, %v2695
        %v2710 = vmax.f32 %v2696, %v2698
        %v2711 = vmax.f32 %v2697, %v2699
        %v2712 = vmax.f32 %v2700, %v2702
        %v2713 = vmax.f32 %v2701, %v2703
        %v2714 = vmax.f32 %v2704, %v2706
        %v2715 = vmax.f32 %v2705, %v2707
        %v2716 = vmax.f32 %v2708, %v2709
        %v2717 = vmax.f32 %v2710, %v2711
        %v2718 = vmax.f32 %v2712, %v2713
        %v2719 = vmax.f32 %v2714, %v2715
        %v2720 = vmax.f32 %v2716, 0.0
        %v2721 = vmax.f32 %v2717, 0.0
        %v2722 = vmax.f32 %v2718, 0.0
        %v2723 = vmax.f32 %v2719, 0.0
        %v2724 = vld [vmem:[%s6] sm:$0x1]
        %v2725 = vpack.c.bf16 %v2720, %v2720
        %v2726 = vld [vmem:[#allocation8] sm:$0xf]
        %v2727 = vld [vmem:[#allocation8 + $0x4] sm:$0xf]
        %v2728 = vld [vmem:[#allocation8 + $0x8] sm:$0xf]
        %v2729 = vld [vmem:[#allocation8 + $0xc] sm:$0xf]
        %v2730 = vld [vmem:[#allocation8 + $0x10] sm:$0xf]
        %v2731 = vld [vmem:[#allocation8 + $0x14] sm:$0xf]
        %v2732 = vld [vmem:[#allocation8 + $0x18] sm:$0xf]
        %v2733 = vld [vmem:[#allocation8 + $0x1c] sm:$0xf]
        %v2734 = vld [vmem:[#allocation8 + $0x20] sm:$0xf]
        %v2735 = vld [vmem:[#allocation8 + $0x24] sm:$0xf]
        %v2736 = vld [vmem:[#allocation8 + $0x28] sm:$0xf]
        %v2737 = vld [vmem:[#allocation8 + $0x2c] sm:$0xf]
        %v2738 = vld [vmem:[#allocation8 + $0x30] sm:$0xf]
        %v2739 = vld [vmem:[#allocation8 + $0x34] sm:$0xf]
        %v2740 = vld [vmem:[#allocation8 + $0x38] sm:$0xf]
        %v2741 = vld [vmem:[#allocation8 + $0x3c] sm:$0xf]
        %v2758 = vunpack.c.l.b16 %v2726
        %v2759 = vunpack.c.l.b16 %v2727
        %v2760 = vunpack.c.l.b16 %v2728
        %v2761 = vunpack.c.l.b16 %v2729
        %v2762 = vunpack.c.l.b16 %v2730
        %v2763 = vunpack.c.l.b16 %v2731
        %v2764 = vunpack.c.l.b16 %v2732
        %v2765 = vunpack.c.l.b16 %v2733
        %v2766 = vunpack.c.l.b16 %v2734
        %v2767 = vunpack.c.l.b16 %v2735
        %v2768 = vunpack.c.l.b16 %v2736
        %v2769 = vunpack.c.l.b16 %v2737
        %v2770 = vunpack.c.l.b16 %v2738
        %v2771 = vunpack.c.l.b16 %v2739
        %v2772 = vunpack.c.l.b16 %v2740
        %v2773 = vunpack.c.l.b16 %v2741
        %v2774 = vpack.c.b16 %v2759, %v2758
        %v2775 = vpack.c.b16 %v2761, %v2760
        %v2776 = vpack.c.b16 %v2763, %v2762
        %v2777 = vpack.c.b16 %v2765, %v2764
        %v2778 = vpack.c.b16 %v2767, %v2766
        %v2779 = vpack.c.b16 %v2769, %v2768
        %v2780 = vpack.c.b16 %v2771, %v2770
        %v2781 = vpack.c.b16 %v2773, %v2772
        %2790 = vmatprep.subr.bf16.mxu0 0
        %2791 = vmatpush1.bf16.msra.mxu0 %v2781
        %2792 = vmatprep.subr.bf16.mxu0 0
        %2793 = vmatpush1.bf16.msra.mxu0 %v2780
        %2794 = vmatprep.subr.bf16.mxu0 0
        %2795 = vmatpush1.bf16.msra.mxu0 %v2779
        %2796 = vmatprep.subr.bf16.mxu0 0
        %2797 = vmatpush1.bf16.msra.mxu0 %v2778
        %2798 = vmatprep.subr.bf16.mxu0 0
        %2799 = vmatpush1.bf16.msra.mxu0 %v2777
        %2800 = vmatprep.subr.bf16.mxu0 0
        %2801 = vmatpush1.bf16.msra.mxu0 %v2776
        %2802 = vmatprep.subr.bf16.mxu0 0
        %2803 = vmatpush1.bf16.msra.mxu0 %v2775
        %2804 = vmatprep.subr.bf16.mxu0 0
        %2805 = vmatpush1.bf16.msra.mxu0 %v2774
        %2806 = vmatprep.subr.bf16.mxu0 0
        %2807 = vmatpush2.bf16.msra.mxu0 0
        %2808 = vmatprep.subr.bf16.mxu0 0
        %2809 = vmatpush2.bf16.msra.mxu0 0
        %2810 = vmatprep.subr.bf16.mxu0 0
        %2811 = vmatpush2.bf16.msra.mxu0 0
        %2812 = vmatprep.subr.bf16.mxu0 0
        %2813 = vmatpush2.bf16.msra.mxu0 0
        %2814 = vmatprep.subr.bf16.mxu0 0
        %2815 = vmatpush2.bf16.msra.mxu0 0
        %2816 = vmatprep.subr.bf16.mxu0 0
        %2817 = vmatpush2.bf16.msra.mxu0 0
        %2818 = vmatprep.subr.bf16.mxu0 0
        %2819 = vmatpush2.bf16.msra.mxu0 0
        %2820 = vmatprep.subr.bf16.mxu0 0
        %2821 = vmatpush2.bf16.msra.mxu0 0
        %2822 = vmatprep.mubr.bf16.mxu0 0
        %2823 = vmatmul.mubr.bf16.gmra.mxu0 %v2725
        %v2824 = vpop.f32.mrf.mxu0
        %v2825 = vadd.f32 0.0, %v2824
        %v2826 = vpop.f32.mrf.mxu0
        %v2827 = vpop.f32.mrf.mxu0
        %v2828 = vpop.f32.mrf.mxu0
        %2829 = vdwg.mxu0
        %v2831 = vlaneseq
        %v2832 = vshrl.u32 %v2831, 7
        %v2833 = vsub.s32 0, %v2832
        %v2834 = vrot.slane %v2724, %v2833
        %v2836 = vadd.f32 %v2834, %v2825
        %v2837 = vpack.c.bf16 %v2721, %v2721
        %s2838 = scalar_lea.vmem [#allocation8], 64
        %v2839 = vld [vmem:[%s2838] sm:$0xf]
        %v2840 = vld [vmem:[%s2838 + $0x4] sm:$0xf]
        %v2841 = vld [vmem:[%s2838 + $0x8] sm:$0xf]
        %v2842 = vld [vmem:[%s2838 + $0xc] sm:$0xf]
        %v2843 = vld [vmem:[%s2838 + $0x10] sm:$0xf]
        %v2844 = vld [vmem:[%s2838 + $0x14] sm:$0xf]
        %v2845 = vld [vmem:[%s2838 + $0x18] sm:$0xf]
        %v2846 = vld [vmem:[%s2838 + $0x1c] sm:$0xf]
        %v2847 = vld [vmem:[%s2838 + $0x20] sm:$0xf]
        %v2848 = vld [vmem:[%s2838 + $0x24] sm:$0xf]
        %v2849 = vld [vmem:[%s2838 + $0x28] sm:$0xf]
        %v2850 = vld [vmem:[%s2838 + $0x2c] sm:$0xf]
        %v2851 = vld [vmem:[%s2838 + $0x30] sm:$0xf]
        %v2852 = vld [vmem:[%s2838 + $0x34] sm:$0xf]
        %v2853 = vld [vmem:[%s2838 + $0x38] sm:$0xf]
        %v2854 = vld [vmem:[%s2838 + $0x3c] sm:$0xf]
        %v2871 = vunpack.c.l.b16 %v2839
        %v2872 = vunpack.c.l.b16 %v2840
        %v2873 = vunpack.c.l.b16 %v2841
        %v2874 = vunpack.c.l.b16 %v2842
        %v2875 = vunpack.c.l.b16 %v2843
        %v2876 = vunpack.c.l.b16 %v2844
        %v2877 = vunpack.c.l.b16 %v2845
        %v2878 = vunpack.c.l.b16 %v2846
        %v2879 = vunpack.c.l.b16 %v2847
        %v2880 = vunpack.c.l.b16 %v2848
        %v2881 = vunpack.c.l.b16 %v2849
        %v2882 = vunpack.c.l.b16 %v2850
        %v2883 = vunpack.c.l.b16 %v2851
        %v2884 = vunpack.c.l.b16 %v2852
        %v2885 = vunpack.c.l.b16 %v2853
        %v2886 = vunpack.c.l.b16 %v2854
        %v2887 = vpack.c.b16 %v2872, %v2871
        %v2888 = vpack.c.b16 %v2874, %v2873
        %v2889 = vpack.c.b16 %v2876, %v2875
        %v2890 = vpack.c.b16 %v2878, %v2877
        %v2891 = vpack.c.b16 %v2880, %v2879
        %v2892 = vpack.c.b16 %v2882, %v2881
        %v2893 = vpack.c.b16 %v2884, %v2883
        %v2894 = vpack.c.b16 %v2886, %v2885
        %2903 = vmatprep.subr.bf16.mxu0 0
        %2904 = vmatpush1.bf16.msra.mxu0 %v2894
        %2905 = vmatprep.subr.bf16.mxu0 0
        %2906 = vmatpush1.bf16.msra.mxu0 %v2893
        %2907 = vmatprep.subr.bf16.mxu0 0
        %2908 = vmatpush1.bf16.msra.mxu0 %v2892
        %2909 = vmatprep.subr.bf16.mxu0 0
        %2910 = vmatpush1.bf16.msra.mxu0 %v2891
        %2911 = vmatprep.subr.bf16.mxu0 0
        %2912 = vmatpush1.bf16.msra.mxu0 %v2890
        %2913 = vmatprep.subr.bf16.mxu0 0
        %2914 = vmatpush1.bf16.msra.mxu0 %v2889
        %2915 = vmatprep.subr.bf16.mxu0 0
        %2916 = vmatpush1.bf16.msra.mxu0 %v2888
        %2917 = vmatprep.subr.bf16.mxu0 0
        %2918 = vmatpush1.bf16.msra.mxu0 %v2887
        %2919 = vmatprep.subr.bf16.mxu0 0
        %2920 = vmatpush2.bf16.msra.mxu0 0
        %2921 = vmatprep.subr.bf16.mxu0 0
        %2922 = vmatpush2.bf16.msra.mxu0 0
        %2923 = vmatprep.subr.bf16.mxu0 0
        %2924 = vmatpush2.bf16.msra.mxu0 0
        %2925 = vmatprep.subr.bf16.mxu0 0
        %2926 = vmatpush2.bf16.msra.mxu0 0
        %2927 = vmatprep.subr.bf16.mxu0 0
        %2928 = vmatpush2.bf16.msra.mxu0 0
        %2929 = vmatprep.subr.bf16.mxu0 0
        %2930 = vmatpush2.bf16.msra.mxu0 0
        %2931 = vmatprep.subr.bf16.mxu0 0
        %2932 = vmatpush2.bf16.msra.mxu0 0
        %2933 = vmatprep.subr.bf16.mxu0 0
        %2934 = vmatpush2.bf16.msra.mxu0 0
        %2935 = vmatprep.mubr.bf16.mxu0 0
        %2936 = vmatmul.mubr.bf16.gmra.mxu0 %v2837
        %v2937 = vpop.f32.mrf.mxu0
        %v2938 = vadd.f32 0.0, %v2937
        %v2939 = vpop.f32.mrf.mxu0
        %v2940 = vpop.f32.mrf.mxu0
        %v2941 = vpop.f32.mrf.mxu0
        %2942 = vdwg.mxu0
        %v2943 = vadd.f32 %v2836, %v2938
        %v2944 = vpack.c.bf16 %v2722, %v2722
        %s2945 = scalar_lea.vmem [#allocation8], 128
        %v2946 = vld [vmem:[%s2945] sm:$0xf]
        %v2947 = vld [vmem:[%s2945 + $0x4] sm:$0xf]
        %v2948 = vld [vmem:[%s2945 + $0x8] sm:$0xf]
        %v2949 = vld [vmem:[%s2945 + $0xc] sm:$0xf]
        %v2950 = vld [vmem:[%s2945 + $0x10] sm:$0xf]
        %v2951 = vld [vmem:[%s2945 + $0x14] sm:$0xf]
        %v2952 = vld [vmem:[%s2945 + $0x18] sm:$0xf]
        %v2953 = vld [vmem:[%s2945 + $0x1c] sm:$0xf]
        %v2954 = vld [vmem:[%s2945 + $0x20] sm:$0xf]
        %v2955 = vld [vmem:[%s2945 + $0x24] sm:$0xf]
        %v2956 = vld [vmem:[%s2945 + $0x28] sm:$0xf]
        %v2957 = vld [vmem:[%s2945 + $0x2c] sm:$0xf]
        %v2958 = vld [vmem:[%s2945 + $0x30] sm:$0xf]
        %v2959 = vld [vmem:[%s2945 + $0x34] sm:$0xf]
        %v2960 = vld [vmem:[%s2945 + $0x38] sm:$0xf]
        %v2961 = vld [vmem:[%s2945 + $0x3c] sm:$0xf]
        %v2978 = vunpack.c.l.b16 %v2946
        %v2979 = vunpack.c.l.b16 %v2947
        %v2980 = vunpack.c.l.b16 %v2948
        %v2981 = vunpack.c.l.b16 %v2949
        %v2982 = vunpack.c.l.b16 %v2950
        %v2983 = vunpack.c.l.b16 %v2951
        %v2984 = vunpack.c.l.b16 %v2952
        %v2985 = vunpack.c.l.b16 %v2953
        %v2986 = vunpack.c.l.b16 %v2954
        %v2987 = vunpack.c.l.b16 %v2955
        %v2988 = vunpack.c.l.b16 %v2956
        %v2989 = vunpack.c.l.b16 %v2957
        %v2990 = vunpack.c.l.b16 %v2958
        %v2991 = vunpack.c.l.b16 %v2959
        %v2992 = vunpack.c.l.b16 %v2960
        %v2993 = vunpack.c.l.b16 %v2961
        %v2994 = vpack.c.b16 %v2979, %v2978
        %v2995 = vpack.c.b16 %v2981, %v2980
        %v2996 = vpack.c.b16 %v2983, %v2982
        %v2997 = vpack.c.b16 %v2985, %v2984
        %v2998 = vpack.c.b16 %v2987, %v2986
        %v2999 = vpack.c.b16 %v2989, %v2988
        %v3000 = vpack.c.b16 %v2991, %v2990
        %v3001 = vpack.c.b16 %v2993, %v2992
        %3010 = vmatprep.subr.bf16.mxu0 0
        %3011 = vmatpush1.bf16.msra.mxu0 %v3001
        %3012 = vmatprep.subr.bf16.mxu0 0
        %3013 = vmatpush1.bf16.msra.mxu0 %v3000
        %3014 = vmatprep.subr.bf16.mxu0 0
        %3015 = vmatpush1.bf16.msra.mxu0 %v2999
        %3016 = vmatprep.subr.bf16.mxu0 0
        %3017 = vmatpush1.bf16.msra.mxu0 %v2998
        %3018 = vmatprep.subr.bf16.mxu0 0
        %3019 = vmatpush1.bf16.msra.mxu0 %v2997
        %3020 = vmatprep.subr.bf16.mxu0 0
        %3021 = vmatpush1.bf16.msra.mxu0 %v2996
        %3022 = vmatprep.subr.bf16.mxu0 0
        %3023 = vmatpush1.bf16.msra.mxu0 %v2995
        %3024 = vmatprep.subr.bf16.mxu0 0
        %3025 = vmatpush1.bf16.msra.mxu0 %v2994
        %3026 = vmatprep.subr.bf16.mxu0 0
        %3027 = vmatpush2.bf16.msra.mxu0 0
        %3028 = vmatprep.subr.bf16.mxu0 0
        %3029 = vmatpush2.bf16.msra.mxu0 0
        %3030 = vmatprep.subr.bf16.mxu0 0
        %3031 = vmatpush2.bf16.msra.mxu0 0
        %3032 = vmatprep.subr.bf16.mxu0 0
        %3033 = vmatpush2.bf16.msra.mxu0 0
        %3034 = vmatprep.subr.bf16.mxu0 0
        %3035 = vmatpush2.bf16.msra.mxu0 0
        %3036 = vmatprep.subr.bf16.mxu0 0
        %3037 = vmatpush2.bf16.msra.mxu0 0
        %3038 = vmatprep.subr.bf16.mxu0 0
        %3039 = vmatpush2.bf16.msra.mxu0 0
        %3040 = vmatprep.subr.bf16.mxu0 0
        %3041 = vmatpush2.bf16.msra.mxu0 0
        %3042 = vmatprep.mubr.bf16.mxu0 0
        %3043 = vmatmul.mubr.bf16.gmra.mxu0 %v2944
        %v3044 = vpop.f32.mrf.mxu0
        %v3045 = vadd.f32 0.0, %v3044
        %v3046 = vpop.f32.mrf.mxu0
        %v3047 = vpop.f32.mrf.mxu0
        %v3048 = vpop.f32.mrf.mxu0
        %3049 = vdwg.mxu0
        %v3050 = vadd.f32 %v2943, %v3045
        %v3051 = vpack.c.bf16 %v2723, %v2723
        %s3052 = scalar_lea.vmem [#allocation8], 192
        %v3053 = vld [vmem:[%s3052] sm:$0xf]
        %v3054 = vld [vmem:[%s3052 + $0x4] sm:$0xf]
        %v3055 = vld [vmem:[%s3052 + $0x8] sm:$0xf]
        %v3056 = vld [vmem:[%s3052 + $0xc] sm:$0xf]
        %v3057 = vld [vmem:[%s3052 + $0x10] sm:$0xf]
        %v3058 = vld [vmem:[%s3052 + $0x14] sm:$0xf]
        %v3059 = vld [vmem:[%s3052 + $0x18] sm:$0xf]
        %v3060 = vld [vmem:[%s3052 + $0x1c] sm:$0xf]
        %v3061 = vld [vmem:[%s3052 + $0x20] sm:$0xf]
        %v3062 = vld [vmem:[%s3052 + $0x24] sm:$0xf]
        %v3063 = vld [vmem:[%s3052 + $0x28] sm:$0xf]
        %v3064 = vld [vmem:[%s3052 + $0x2c] sm:$0xf]
        %v3065 = vld [vmem:[%s3052 + $0x30] sm:$0xf]
        %v3066 = vld [vmem:[%s3052 + $0x34] sm:$0xf]
        %v3067 = vld [vmem:[%s3052 + $0x38] sm:$0xf]
        %v3068 = vld [vmem:[%s3052 + $0x3c] sm:$0xf]
        %v3085 = vunpack.c.l.b16 %v3053
        %v3086 = vunpack.c.l.b16 %v3054
        %v3087 = vunpack.c.l.b16 %v3055
        %v3088 = vunpack.c.l.b16 %v3056
        %v3089 = vunpack.c.l.b16 %v3057
        %v3090 = vunpack.c.l.b16 %v3058
        %v3091 = vunpack.c.l.b16 %v3059
        %v3092 = vunpack.c.l.b16 %v3060
        %v3093 = vunpack.c.l.b16 %v3061
        %v3094 = vunpack.c.l.b16 %v3062
        %v3095 = vunpack.c.l.b16 %v3063
        %v3096 = vunpack.c.l.b16 %v3064
        %v3097 = vunpack.c.l.b16 %v3065
        %v3098 = vunpack.c.l.b16 %v3066
        %v3099 = vunpack.c.l.b16 %v3067
        %v3100 = vunpack.c.l.b16 %v3068
        %v3101 = vpack.c.b16 %v3086, %v3085
        %v3102 = vpack.c.b16 %v3088, %v3087
        %v3103 = vpack.c.b16 %v3090, %v3089
        %v3104 = vpack.c.b16 %v3092, %v3091
        %v3105 = vpack.c.b16 %v3094, %v3093
        %v3106 = vpack.c.b16 %v3096, %v3095
        %v3107 = vpack.c.b16 %v3098, %v3097
        %v3108 = vpack.c.b16 %v3100, %v3099
        %3117 = vmatprep.subr.bf16.mxu0 0
        %3118 = vmatpush1.bf16.msra.mxu0 %v3108
        %3119 = vmatprep.subr.bf16.mxu0 0
        %3120 = vmatpush1.bf16.msra.mxu0 %v3107
        %3121 = vmatprep.subr.bf16.mxu0 0
        %3122 = vmatpush1.bf16.msra.mxu0 %v3106
        %3123 = vmatprep.subr.bf16.mxu0 0
        %3124 = vmatpush1.bf16.msra.mxu0 %v3105
        %3125 = vmatprep.subr.bf16.mxu0 0
        %3126 = vmatpush1.bf16.msra.mxu0 %v3104
        %3127 = vmatprep.subr.bf16.mxu0 0
        %3128 = vmatpush1.bf16.msra.mxu0 %v3103
        %3129 = vmatprep.subr.bf16.mxu0 0
        %3130 = vmatpush1.bf16.msra.mxu0 %v3102
        %3131 = vmatprep.subr.bf16.mxu0 0
        %3132 = vmatpush1.bf16.msra.mxu0 %v3101
        %3133 = vmatprep.subr.bf16.mxu0 0
        %3134 = vmatpush2.bf16.msra.mxu0 0
        %3135 = vmatprep.subr.bf16.mxu0 0
        %3136 = vmatpush2.bf16.msra.mxu0 0
        %3137 = vmatprep.subr.bf16.mxu0 0
        %3138 = vmatpush2.bf16.msra.mxu0 0
        %3139 = vmatprep.subr.bf16.mxu0 0
        %3140 = vmatpush2.bf16.msra.mxu0 0
        %3141 = vmatprep.subr.bf16.mxu0 0
        %3142 = vmatpush2.bf16.msra.mxu0 0
        %3143 = vmatprep.subr.bf16.mxu0 0
        %3144 = vmatpush2.bf16.msra.mxu0 0
        %3145 = vmatprep.subr.bf16.mxu0 0
        %3146 = vmatpush2.bf16.msra.mxu0 0
        %3147 = vmatprep.subr.bf16.mxu0 0
        %3148 = vmatpush2.bf16.msra.mxu0 0
        %3149 = vmatprep.mubr.bf16.mxu0 0
        %3150 = vmatmul.mubr.bf16.gmra.mxu0 %v3051
        %v3151 = vpop.f32.mrf.mxu0
        %v3152 = vadd.f32 0.0, %v3151
        %v3153 = vpop.f32.mrf.mxu0
        %v3154 = vpop.f32.mrf.mxu0
        %v3155 = vpop.f32.mrf.mxu0
        %3156 = vdwg.mxu0
        %v3157 = vadd.f32 %v3050, %v3152
        %v3158 = vmax.f32 %v3157, 0.0
        %v3159 = vpack.c.bf16 %v3158, %v3158
        %v3160 = vld [vmem:[#allocation10] sm:$0xf]
        %v3161 = vld [vmem:[#allocation10 + $0x4] sm:$0xf]
        %v3162 = vld [vmem:[#allocation10 + $0x8] sm:$0xf]
        %v3163 = vld [vmem:[#allocation10 + $0xc] sm:$0xf]
        %v3164 = vld [vmem:[#allocation10 + $0x10] sm:$0xf]
        %v3165 = vld [vmem:[#allocation10 + $0x14] sm:$0xf]
        %v3166 = vld [vmem:[#allocation10 + $0x18] sm:$0xf]
        %v3167 = vld [vmem:[#allocation10 + $0x1c] sm:$0xf]
        %v3168 = vld [vmem:[#allocation10 + $0x20] sm:$0xf]
        %v3169 = vld [vmem:[#allocation10 + $0x24] sm:$0xf]
        %v3170 = vld [vmem:[#allocation10 + $0x28] sm:$0xf]
        %v3171 = vld [vmem:[#allocation10 + $0x2c] sm:$0xf]
        %v3172 = vld [vmem:[#allocation10 + $0x30] sm:$0xf]
        %v3173 = vld [vmem:[#allocation10 + $0x34] sm:$0xf]
        %v3174 = vld [vmem:[#allocation10 + $0x38] sm:$0xf]
        %v3175 = vld [vmem:[#allocation10 + $0x3c] sm:$0xf]
        %v3176 = vld [vmem:[%s8] sm:$0x1]
        %v3178 = vlaneseq
        %v3179 = vshrl.u32 %v3178, 7
        %v3180 = vsub.s32 0, %v3179
        %v3181 = vrot.slane %v3176, %v3180
        %v3199 = vunpack.c.l.b16 %v3160
        %v3200 = vunpack.c.l.b16 %v3161
        %v3201 = vunpack.c.l.b16 %v3162
        %v3202 = vunpack.c.l.b16 %v3163
        %v3203 = vunpack.c.l.b16 %v3164
        %v3204 = vunpack.c.l.b16 %v3165
        %v3205 = vunpack.c.l.b16 %v3166
        %v3206 = vunpack.c.l.b16 %v3167
        %v3207 = vunpack.c.l.b16 %v3168
        %v3208 = vunpack.c.l.b16 %v3169
        %v3209 = vunpack.c.l.b16 %v3170
        %v3210 = vunpack.c.l.b16 %v3171
        %v3211 = vunpack.c.l.b16 %v3172
        %v3212 = vunpack.c.l.b16 %v3173
        %v3213 = vunpack.c.l.b16 %v3174
        %v3214 = vunpack.c.l.b16 %v3175
        %v3215 = vpack.c.b16 %v3200, %v3199
        %v3216 = vpack.c.b16 %v3202, %v3201
        %v3217 = vpack.c.b16 %v3204, %v3203
        %v3218 = vpack.c.b16 %v3206, %v3205
        %v3219 = vpack.c.b16 %v3208, %v3207
        %v3220 = vpack.c.b16 %v3210, %v3209
        %v3221 = vpack.c.b16 %v3212, %v3211
        %v3222 = vpack.c.b16 %v3214, %v3213
        %3231 = vmatprep.subr.bf16.mxu0 0
        %3232 = vmatpush1.bf16.msra.mxu0 %v3222
        %3233 = vmatprep.subr.bf16.mxu0 0
        %3234 = vmatpush1.bf16.msra.mxu0 %v3221
        %3235 = vmatprep.subr.bf16.mxu0 0
        %3236 = vmatpush1.bf16.msra.mxu0 %v3220
        %3237 = vmatprep.subr.bf16.mxu0 0
        %3238 = vmatpush1.bf16.msra.mxu0 %v3219
        %3239 = vmatprep.subr.bf16.mxu0 0
        %3240 = vmatpush1.bf16.msra.mxu0 %v3218
        %3241 = vmatprep.subr.bf16.mxu0 0
        %3242 = vmatpush1.bf16.msra.mxu0 %v3217
        %3243 = vmatprep.subr.bf16.mxu0 0
        %3244 = vmatpush1.bf16.msra.mxu0 %v3216
        %3245 = vmatprep.subr.bf16.mxu0 0
        %3246 = vmatpush1.bf16.msra.mxu0 %v3215
        %3247 = vmatprep.subr.bf16.mxu0 0
        %3248 = vmatpush2.bf16.msra.mxu0 0
        %3249 = vmatprep.subr.bf16.mxu0 0
        %3250 = vmatpush2.bf16.msra.mxu0 0
        %3251 = vmatprep.subr.bf16.mxu0 0
        %3252 = vmatpush2.bf16.msra.mxu0 0
        %3253 = vmatprep.subr.bf16.mxu0 0
        %3254 = vmatpush2.bf16.msra.mxu0 0
        %3255 = vmatprep.subr.bf16.mxu0 0
        %3256 = vmatpush2.bf16.msra.mxu0 0
        %3257 = vmatprep.subr.bf16.mxu0 0
        %3258 = vmatpush2.bf16.msra.mxu0 0
        %3259 = vmatprep.subr.bf16.mxu0 0
        %3260 = vmatpush2.bf16.msra.mxu0 0
        %3261 = vmatprep.subr.bf16.mxu0 0
        %3262 = vmatpush2.bf16.msra.mxu0 0
        %3263 = vmatprep.mubr.bf16.mxu0 0
        %3264 = vmatmul.mubr.bf16.gmra.mxu0 %v3159
        %v3265 = vpop.f32.mrf.mxu0
        %v3266 = vadd.f32 %v3181, %v3265
        %v3267 = vpop.f32.mrf.mxu0
        %v3268 = vpop.f32.mrf.mxu0
        %v3269 = vpop.f32.mrf.mxu0
        %3270 = vdwg.mxu0
        %3271 = vst [vmem:[%s407] sm:$0xff] %v3266
        %s3272 = sand.u32 %s230, 1
        %s3273 = scalar_lea.sflag [#allocation4], %s3272
        %s3274 = sand.u32 %s230, 1
        %s3275 = smul.addr %s3274, 8
        %s3276 = scalar_lea.vmem [#allocation11], %s3275
        // Predicated region
        $region77: #{net_forward_impl.1} parent=55 // pred_check
          %p3277 = pneg %p240
        $region78: #{net_forward_impl.1} parent=55 // pred_check_branch
          %3279 = sbr.rel (%p3277) target = $region80
        $region79: #{net_forward_impl.1} parent=55 // pred_region
          %s3281 = ssub.s32 128, 128
          %3282 = vsyncadd %s3273, %s3281
          %s3283 = smul.addr %s28, 128
          %s3284 = scalar_lea.hbm %s9, %s3283
          %s3286 = sshll.u32 %s3276, 4
          %s3287 = int_to_ptr.vmem [resolvable:$true] %s3286
          %3289 = dma.vmem_to_hbm [thread:$0]  %s3287, 128, %s3284, %s3273
        $region80: #{net_forward_impl.1} parent=55 // pred_fallthru
          _
      $region56: #{net_forward_impl.1} parent=5 // pred_fallthru
        _
      %p3290 = scmp.le.s32.totalorder 2, %s23
      // Predicated region
      $region81: #{net_forward_impl.1} parent=5 // pred_check
        %p3291 = pneg %p3290
      $region82: #{net_forward_impl.1} parent=5 // pred_check_branch
        %3293 = sbr.rel (%p3291) target = $region84
      $region83: #{net_forward_impl.1} parent=5 // pred_region
        %s3294 = ssub.s32 %s23, 2
        // Predicated region
        $region85: #{net_forward_impl.1} parent=83 // pred_check
          %p3295 = pneg %p246
        $region86: #{net_forward_impl.1} parent=83 // pred_check_branch
          %3297 = sbr.rel (%p3295) target = $region88
        $region87: #{net_forward_impl.1} parent=83 // pred_region
          %s3298 = sand.u32 %s231, 1
          %s3299 = scalar_lea.sflag [#allocation4], %s3298
          %s3300 = sand.u32 %s231, 1
          %s3301 = smul.addr %s3300, 8
          %s3302 = scalar_lea.vmem [#allocation11], %s3301
          %3303 = dma.done %s3299, 128
        $region88: #{net_forward_impl.1} parent=83 // pred_fallthru
          _
      $region84: #{net_forward_impl.1} parent=5 // pred_fallthru
        _
    $region6: #{net_forward_impl.1} parent=1 // loop_footer
      %s27 = sadd.s32 1, %s23
    $region7: #{net_forward_impl.1} parent=1 // loop_footer_branch
      %22 = sbr.rel target = $region3
    $region8: #{net_forward_impl.1} parent=1 // loop_exit
      _
    %3304 = vsyncpa [#allocation3], 1
    %s3305 = scalar_lea.sflag [#allocation3], 1
    %3306 = vsyncpa %s3305, 1
    %3307 = vsyncpa [#allocation6], 1
    %3308 = vsyncpa [#allocation9], 1
    %3309 = vsyncpa [#allocation4], 1
    %s3310 = scalar_lea.sflag [#allocation4], 1
    %3311 = vsyncpa %s3310, 1

</llo_original>
